<compile_context>
chip_gen: v6e
topology: v6e:2x2x1
jax: 0.10.0
libtpu: 0.0.40
codegen_flags: <defaults>
</compile_context>

<pallas_src>
import numpy as np

import jax
import jax.numpy as jnp
from jax.experimental import pallas as pl
from jax.experimental.pallas import tpu as pltpu


# ------------------------------ Pallas kernel -------------------------------

def _policy_kernel(x_ref, w1_ref, b1_ref, w2_ref, b2_ref,
                   fc1_ref, fb1_ref, fc2_ref, fb2_ref, fc3_ref, fb3_ref,
                   o_ref):
    f32, bf16 = jnp.float32, jnp.bfloat16

    x = x_ref[0].astype(f32)              # (H, W*C) tile for this image
    k = w1_ref.shape[0]                   # 5
    h1 = x.shape[0] - k + 1               # 28  (conv1 output rows)
    p1 = h1 // 2                          # 14
    h2 = p1 - k + 1                       # 10  (conv2 output rows)
    p2 = h2 // 2                          # 5

    def sel(rows, width):
        # sel[r, i] = 1 iff i == 2r  (row compaction after the H pair-max)
        r = jax.lax.broadcasted_iota(jnp.int32, (rows, width), 0)
        c = jax.lax.broadcasted_iota(jnp.int32, (rows, width), 1)
        return (c == 2 * r).astype(bf16)

    def conv_pool_relu(inp, w_ref, b_ref, h_out):
        # conv as k shifted matmuls (bf16 operands, f32 accumulation)
        acc = jnp.dot(inp[0:h_out, :].astype(bf16), w_ref[0],
                      preferred_element_type=f32)
        for di in range(1, k):
            acc = acc + jnp.dot(inp[di:di + h_out, :].astype(bf16), w_ref[di],
                                preferred_element_type=f32)
        y = jnp.maximum(acc + b_ref[...], 0.0)              # bias + ReLU, f32
        # fused 2x2 max-pool: H pairs (max + selection matmul), W pairs
        # (max of shifted lanes; compaction folded into the next weights).
        rmax = jnp.maximum(y[:-1, :], y[1:, :])
        prow = jnp.dot(sel(h_out // 2, h_out - 1), rmax.astype(bf16),
                       preferred_element_type=f32)
        return jnp.maximum(prow[:, :-1], prow[:, 1:])       # (h_out//2, n-1)

    z1 = conv_pool_relu(x, w1_ref, b1_ref, h1)              # (14, 279)
    z2 = conv_pool_relu(z1, w2_ref, b2_ref, h2)             # (5, 199)

    # fc1: contract the p2 feature rows against their folded weight slabs
    s = jnp.dot(z2[0:1, :].astype(bf16), fc1_ref[0], preferred_element_type=f32)
    for r in range(1, p2):
        s = s + jnp.dot(z2[r:r + 1, :].astype(bf16), fc1_ref[r],
                        preferred_element_type=f32)
    a1 = jnp.maximum(s + fb1_ref[...], 0.0)                                 # (1, 256)
    a2 = jnp.maximum(jnp.dot(a1.astype(bf16), fc2_ref[...],
                             preferred_element_type=f32) + fb2_ref[...], 0.0)  # (1, 128)
    logits = jnp.dot(a2.astype(bf16), fc3_ref[...],
                     preferred_element_type=f32) + fb3_ref[...]             # (1, 2)
    m = jnp.max(logits, axis=-1, keepdims=True)
    e = jnp.exp(logits - m)
    o_ref[0] = (e / jnp.sum(e, axis=-1, keepdims=True)).astype(o_ref.dtype)


# ----------------------- host-side weight preparation ------------------------

def _xavier_uniform(key, shape, fan_in, fan_out):
    bound = (6.0 / (fan_in + fan_out)) ** 0.5
    return jax.random.uniform(key, shape, jnp.float32, -bound, bound)


def _bias(key, shape, fan_in):
    bound = 1.0 / (fan_in ** 0.5)
    return jax.random.uniform(key, shape, jnp.float32, -bound, bound)


def init_dense_params(key, number_of_frames):
    nf = number_of_frames
    ks = jax.random.split(key, 10)
    return {
        "conv1_w": _xavier_uniform(ks[0], (10, nf, 5, 5), nf * 25, 10 * 25),
        "conv1_b": _bias(ks[1], (10,), nf * 25),
        "conv2_w": _xavier_uniform(ks[2], (20, 10, 5, 5), 10 * 25, 20 * 25),
        "conv2_b": _bias(ks[3], (20,), 10 * 25),
        # fc weights stored as (in, out)
        "fc1_w": _xavier_uniform(ks[4], (500, 256), 500, 256),
        "fc1_b": _bias(ks[5], (256,), 500),
        "fc2_w": _xavier_uniform(ks[6], (256, 128), 256, 128),
        "fc2_b": _bias(ks[7], (128,), 256),
        "fc3_w": _xavier_uniform(ks[8], (128, 2), 128, 2),
        "fc3_b": _bias(ks[9], (2,), 128),
    }


def _fold_conv(w, in_width, c_stride, w_stride, w_out):
    """Fold (O, C, k, k) conv weights into k shifted-matmul matrices.

    Input lane of (channel c, column w_in) is  c*c_stride + w_in*w_stride.
    Output lane of (channel o, column j)   is  o*w_out + j  (channel-major).
    """
    O, C, k, _ = np.asarray(w).shape
    w = np.asarray(w, np.float32)
    out = np.zeros((k, in_width, w_out * O), np.float32)
    for di in range(k):
        for dj in range(k):
            tap = w[:, :, di, dj].T                       # (C, O)
            for j in range(w_out):
                rows = np.arange(C) * c_stride + (j + dj) * w_stride
                out[di, rows, j::w_out] = tap
    return out


def _fold_fc1(w, feat_width):
    """Permute fc1 rows from torch's (c, h, w) flatten order into the kernel's
    per-row, lane-sparse feature layout (slab index = h, lane = c*10 + 2*w)."""
    w = np.asarray(w, np.float32)                         # (500, 256)
    out = np.zeros((5, feat_width, w.shape[1]), np.float32)
    for c in range(20):
        for h in range(5):
            for j in range(5):
                out[h, c * 10 + 2 * j, :] = w[c * 25 + h * 5 + j, :]
    return out


def fold_params(dense, number_of_frames):
    nf = number_of_frames
    n1 = 28 * 10                                          # conv1 output lanes
    n2 = 10 * 20                                          # conv2 output lanes
    w1f = _fold_conv(dense["conv1_w"], in_width=32 * nf, c_stride=1,
                     w_stride=nf, w_out=28)               # (5, 32*nf, 280)
    w2f = _fold_conv(dense["conv2_w"], in_width=n1 - 1, c_stride=28,
                     w_stride=2, w_out=10)                # (5, 279, 200)
    fc1f = _fold_fc1(dense["fc1_w"], feat_width=n2 - 1)   # (5, 199, 256)
    bf16, f32 = jnp.bfloat16, jnp.float32
    return {
        "w1": jnp.asarray(w1f, bf16),
        "b1": jnp.asarray(np.repeat(np.asarray(dense["conv1_b"]), 28)[None], f32),
        "w2": jnp.asarray(w2f, bf16),
        "b2": jnp.asarray(np.repeat(np.asarray(dense["conv2_b"]), 10)[None], f32),
        "fc1": jnp.asarray(fc1f, bf16),
        "fb1": jnp.asarray(dense["fc1_b"], f32)[None, :],
        "fc2": jnp.asarray(dense["fc2_w"], bf16),
        "fb2": jnp.asarray(dense["fc2_b"], f32)[None, :],
        "fc3": jnp.asarray(dense["fc3_w"], bf16),
        "fb3": jnp.asarray(dense["fc3_b"], f32)[None, :],
    }


# -------------------------------- forward -----------------------------------

def policy_forward(kparams, x):
    """x: (B, C, 32, 32) NCHW float32 -> (B, 2) softmax probabilities."""
    B, C, H, W = x.shape
    # one-time NHWC + lane-merge + bf16 cast of the (tiny) network input
    x2 = jnp.transpose(x, (0, 2, 3, 1)).reshape(B, H, W * C).astype(jnp.bfloat16)

    order = ["w1", "b1", "w2", "b2", "fc1", "fb1", "fc2", "fb2", "fc3", "fb3"]
    weights = [kparams[name] for name in order]

    def _const_spec(arr):
        return pl.BlockSpec(arr.shape, lambda b, nd=arr.ndim: (0,) * nd)

    in_specs = [pl.BlockSpec((1, H, W * C), lambda b: (b, 0, 0))]
    in_specs += [_const_spec(a) for a in weights]

    flops = 2 * B * (5 * 28 * (W * C) * 280 + 5 * 10 * 279 * 200
                     + 14 * 27 * 280 + 5 * 9 * 200
                     + 5 * 199 * 256 + 256 * 128 + 128 * 2)
    bytes_accessed = int(x2.size * 2 + B * 2 * 4
                         + sum(a.size * a.dtype.itemsize for a in weights))

    out = pl.pallas_call(
        _policy_kernel,
        out_shape=jax.ShapeDtypeStruct((B, 1, 2), jnp.float32),
        grid=(B,),
        in_specs=in_specs,
        out_specs=pl.BlockSpec((1, 1, 2), lambda b: (b, 0, 0)),
        compiler_params=pltpu.CompilerParams(
            dimension_semantics=("parallel",)),
        cost_estimate=pl.CostEstimate(flops=flops, transcendentals=2 * B,
                                      bytes_accessed=bytes_accessed),
    )(x2, *weights)
    return out.reshape(B, 2)


# ------------------------- pure-JAX f32 reference ---------------------------

def policy_reference(dense, x):
    def conv(h, w, b):
        y = jax.lax.conv_general_dilated(
            h, w, window_strides=(1, 1), padding="VALID",
            dimension_numbers=("NCHW", "OIHW", "NCHW"))
        return y + b[None, :, None, None]

    def pool_relu(h):
        m = jax.lax.reduce_window(h, -jnp.inf, jax.lax.max,
                                  (1, 1, 2, 2), (1, 1, 2, 2), "VALID")
        return jax.nn.relu(m)

    h = pool_relu(conv(x, dense["conv1_w"], dense["conv1_b"]))
    h = pool_relu(conv(h, dense["conv2_w"], dense["conv2_b"]))
    h = h.reshape(h.shape[0], -1)
    h = jax.nn.relu(h @ dense["fc1_w"] + dense["fc1_b"])
    h = jax.nn.relu(h @ dense["fc2_w"] + dense["fc2_b"])
    z = h @ dense["fc3_w"] + dense["fc3_b"]
    return jax.nn.softmax(z, axis=-1)


if __name__ == "__main__":
    key = jax.random.PRNGKey(0)
    number_of_frames = 4
    batch = 2
    pkey, xkey = jax.random.split(key)
    dense = init_dense_params(pkey, number_of_frames)
    kparams = fold_params(dense, number_of_frames)
    # input spatial size must be 32x32 so the flatten hits 20*5*5 = 500
    x = jax.random.normal(xkey, (batch, number_of_frames, 32, 32), jnp.float32)

    fwd = jax.jit(policy_forward)
    out = jax.block_until_ready(fwd(kparams, x))

    ref = policy_reference(dense, x)
    assert out.shape == (batch, 2), out.shape
    assert jnp.allclose(jnp.sum(out, axis=1), 1.0, atol=1e-5)
    assert jnp.allclose(out, ref, atol=5e-2), (out, ref)
    print("KERNEL_OK")
</pallas_src>

<mosaic_0001>
module attributes {stable_mosaic.version = 11 : i64} {
  func.func @_policy_kernel(%arg0: i32, %arg1: memref<1x32x128xbf16, #tpu.memory_space<vmem>>, %arg2: memref<5x128x280xbf16, #tpu.memory_space<vmem>>, %arg3: memref<1x280xf32, #tpu.memory_space<vmem>>, %arg4: memref<5x279x200xbf16, #tpu.memory_space<vmem>>, %arg5: memref<1x200xf32, #tpu.memory_space<vmem>>, %arg6: memref<5x199x256xbf16, #tpu.memory_space<vmem>>, %arg7: memref<1x256xf32, #tpu.memory_space<vmem>>, %arg8: memref<256x128xbf16, #tpu.memory_space<vmem>>, %arg9: memref<1x128xf32, #tpu.memory_space<vmem>>, %arg10: memref<128x2xbf16, #tpu.memory_space<vmem>>, %arg11: memref<1x2xf32, #tpu.memory_space<vmem>>, %arg12: memref<1x1x2xf32, #tpu.memory_space<vmem>>) attributes {dimension_semantics = [#tpu.dimension_semantics<parallel>], iteration_bounds = array<i64: 2>, scalar_prefetch = 0 : i64, scratch_operands = 0 : i64, tpu.core_type = #tpu.core_type<tc>, window_params = [{transform_indices = @transform_0, window_bounds = array<i64: 1, 32, 128>}, {pipeline_mode = #tpu.pipeline_mode<synchronous>, transform_indices = @transform_1, window_bounds = array<i64: 5, 128, 280>}, {pipeline_mode = #tpu.pipeline_mode<synchronous>, transform_indices = @transform_2, window_bounds = array<i64: 1, 280>}, {pipeline_mode = #tpu.pipeline_mode<synchronous>, transform_indices = @transform_3, window_bounds = array<i64: 5, 279, 200>}, {pipeline_mode = #tpu.pipeline_mode<synchronous>, transform_indices = @transform_4, window_bounds = array<i64: 1, 200>}, {pipeline_mode = #tpu.pipeline_mode<synchronous>, transform_indices = @transform_5, window_bounds = array<i64: 5, 199, 256>}, {pipeline_mode = #tpu.pipeline_mode<synchronous>, transform_indices = @transform_6, window_bounds = array<i64: 1, 256>}, {pipeline_mode = #tpu.pipeline_mode<synchronous>, transform_indices = @transform_7, window_bounds = array<i64: 256, 128>}, {pipeline_mode = #tpu.pipeline_mode<synchronous>, transform_indices = @transform_8, window_bounds = array<i64: 1, 128>}, {pipeline_mode = #tpu.pipeline_mode<synchronous>, transform_indices = @transform_9, window_bounds = array<i64: 128, 2>}, {pipeline_mode = #tpu.pipeline_mode<synchronous>, transform_indices = @transform_10, window_bounds = array<i64: 1, 2>}, {transform_indices = @transform_11, window_bounds = array<i64: 1, 1, 2>}]} {
    %c0 = arith.constant 0 : index
    %c0_0 = arith.constant 0 : index
    %c0_1 = arith.constant 0 : index
    %0 = vector.load %arg1[%c0, %c0_0, %c0_1] : memref<1x32x128xbf16, #tpu.memory_space<vmem>>, vector<1x32x128xbf16>
    %1 = vector.shape_cast %0 : vector<1x32x128xbf16> to vector<32x128xbf16>
    %2 = arith.extf %1 : vector<32x128xbf16> to vector<32x128xf32>
    %3 = vector.extract_strided_slice %2 {offsets = [0, 0], sizes = [28, 128], strides = [1, 1]} : vector<32x128xf32> to vector<28x128xf32>
    %4 = arith.truncf %3 : vector<28x128xf32> to vector<28x128xbf16>
    %c0_2 = arith.constant 0 : index
    %c0_3 = arith.constant 0 : index
    %c0_4 = arith.constant 0 : index
    %5 = vector.load %arg2[%c0_2, %c0_3, %c0_4] : memref<5x128x280xbf16, #tpu.memory_space<vmem>>, vector<1x128x280xbf16>
    %6 = vector.shape_cast %5 : vector<1x128x280xbf16> to vector<128x280xbf16>
    %cst = arith.constant dense<0.000000e+00> : vector<28x280xf32>
    %7 = tpu.matmul %4, %6, %cst {dimension_numbers = #tpu.dot_dimension_numbers<[1], [0], [0], [1], [0, 0, 1, 1], [], []>} : vector<28x128xbf16>, vector<128x280xbf16>, vector<28x280xf32> -> vector<28x280xf32>
    %8 = vector.extract_strided_slice %2 {offsets = [1, 0], sizes = [28, 128], strides = [1, 1]} : vector<32x128xf32> to vector<28x128xf32>
    %9 = arith.truncf %8 : vector<28x128xf32> to vector<28x128xbf16>
    %c1 = arith.constant 1 : index
    %c0_5 = arith.constant 0 : index
    %c0_6 = arith.constant 0 : index
    %10 = vector.load %arg2[%c1, %c0_5, %c0_6] : memref<5x128x280xbf16, #tpu.memory_space<vmem>>, vector<1x128x280xbf16>
    %11 = vector.shape_cast %10 : vector<1x128x280xbf16> to vector<128x280xbf16>
    %cst_7 = arith.constant dense<0.000000e+00> : vector<28x280xf32>
    %12 = tpu.matmul %9, %11, %cst_7 {dimension_numbers = #tpu.dot_dimension_numbers<[1], [0], [0], [1], [0, 0, 1, 1], [], []>} : vector<28x128xbf16>, vector<128x280xbf16>, vector<28x280xf32> -> vector<28x280xf32>
    %13 = arith.addf %7, %12 : vector<28x280xf32>
    %14 = vector.extract_strided_slice %2 {offsets = [2, 0], sizes = [28, 128], strides = [1, 1]} : vector<32x128xf32> to vector<28x128xf32>
    %15 = arith.truncf %14 : vector<28x128xf32> to vector<28x128xbf16>
    %c2 = arith.constant 2 : index
    %c0_8 = arith.constant 0 : index
    %c0_9 = arith.constant 0 : index
    %16 = vector.load %arg2[%c2, %c0_8, %c0_9] : memref<5x128x280xbf16, #tpu.memory_space<vmem>>, vector<1x128x280xbf16>
    %17 = vector.shape_cast %16 : vector<1x128x280xbf16> to vector<128x280xbf16>
    %cst_10 = arith.constant dense<0.000000e+00> : vector<28x280xf32>
    %18 = tpu.matmul %15, %17, %cst_10 {dimension_numbers = #tpu.dot_dimension_numbers<[1], [0], [0], [1], [0, 0, 1, 1], [], []>} : vector<28x128xbf16>, vector<128x280xbf16>, vector<28x280xf32> -> vector<28x280xf32>
    %19 = arith.addf %13, %18 : vector<28x280xf32>
    %20 = vector.extract_strided_slice %2 {offsets = [3, 0], sizes = [28, 128], strides = [1, 1]} : vector<32x128xf32> to vector<28x128xf32>
    %21 = arith.truncf %20 : vector<28x128xf32> to vector<28x128xbf16>
    %c3 = arith.constant 3 : index
    %c0_11 = arith.constant 0 : index
    %c0_12 = arith.constant 0 : index
    %22 = vector.load %arg2[%c3, %c0_11, %c0_12] : memref<5x128x280xbf16, #tpu.memory_space<vmem>>, vector<1x128x280xbf16>
    %23 = vector.shape_cast %22 : vector<1x128x280xbf16> to vector<128x280xbf16>
    %cst_13 = arith.constant dense<0.000000e+00> : vector<28x280xf32>
    %24 = tpu.matmul %21, %23, %cst_13 {dimension_numbers = #tpu.dot_dimension_numbers<[1], [0], [0], [1], [0, 0, 1, 1], [], []>} : vector<28x128xbf16>, vector<128x280xbf16>, vector<28x280xf32> -> vector<28x280xf32>
    %25 = arith.addf %19, %24 : vector<28x280xf32>
    %26 = vector.extract_strided_slice %2 {offsets = [4, 0], sizes = [28, 128], strides = [1, 1]} : vector<32x128xf32> to vector<28x128xf32>
    %27 = arith.truncf %26 : vector<28x128xf32> to vector<28x128xbf16>
    %c4 = arith.constant 4 : index
    %c0_14 = arith.constant 0 : index
    %c0_15 = arith.constant 0 : index
    %28 = vector.load %arg2[%c4, %c0_14, %c0_15] : memref<5x128x280xbf16, #tpu.memory_space<vmem>>, vector<1x128x280xbf16>
    %29 = vector.shape_cast %28 : vector<1x128x280xbf16> to vector<128x280xbf16>
    %cst_16 = arith.constant dense<0.000000e+00> : vector<28x280xf32>
    %30 = tpu.matmul %27, %29, %cst_16 {dimension_numbers = #tpu.dot_dimension_numbers<[1], [0], [0], [1], [0, 0, 1, 1], [], []>} : vector<28x128xbf16>, vector<128x280xbf16>, vector<28x280xf32> -> vector<28x280xf32>
    %31 = arith.addf %25, %30 : vector<28x280xf32>
    %c0_17 = arith.constant 0 : index
    %c0_18 = arith.constant 0 : index
    %32 = vector.load %arg3[%c0_17, %c0_18] : memref<1x280xf32, #tpu.memory_space<vmem>>, vector<1x280xf32>
    %33 = vector.broadcast %32 : vector<1x280xf32> to vector<28x280xf32>
    %34 = arith.addf %31, %33 : vector<28x280xf32>
    %cst_19 = arith.constant 0.000000e+00 : f32
    %35 = vector.broadcast %cst_19 : f32 to vector<28x280xf32>
    %36 = arith.maximumf %34, %35 : vector<28x280xf32>
    %37 = vector.extract_strided_slice %36 {offsets = [0, 0], sizes = [27, 280], strides = [1, 1]} : vector<28x280xf32> to vector<27x280xf32>
    %38 = vector.extract_strided_slice %36 {offsets = [1, 0], sizes = [27, 280], strides = [1, 1]} : vector<28x280xf32> to vector<27x280xf32>
    %39 = arith.maximumf %37, %38 : vector<27x280xf32>
    %40 = tpu.iota {dimensions = array<i32: 0>} : vector<14x27xi32>
    %41 = tpu.iota {dimensions = array<i32: 1>} : vector<14x27xi32>
    %c2_i32 = arith.constant 2 : i32
    %42 = vector.broadcast %c2_i32 : i32 to vector<14x27xi32>
    %43 = arith.muli %42, %40 : vector<14x27xi32>
    %44 = arith.cmpi eq, %41, %43 : vector<14x27xi32>
    %45 = arith.extui %44 : vector<14x27xi1> to vector<14x27xi32>
    %46 = arith.sitofp %45 : vector<14x27xi32> to vector<14x27xf32>
    %47 = arith.truncf %46 : vector<14x27xf32> to vector<14x27xbf16>
    %48 = arith.truncf %39 : vector<27x280xf32> to vector<27x280xbf16>
    %cst_20 = arith.constant dense<0.000000e+00> : vector<14x280xf32>
    %49 = tpu.matmul %47, %48, %cst_20 {dimension_numbers = #tpu.dot_dimension_numbers<[1], [0], [0], [1], [0, 0, 1, 1], [], []>} : vector<14x27xbf16>, vector<27x280xbf16>, vector<14x280xf32> -> vector<14x280xf32>
    %50 = vector.extract_strided_slice %49 {offsets = [0, 0], sizes = [14, 279], strides = [1, 1]} : vector<14x280xf32> to vector<14x279xf32>
    %51 = vector.extract_strided_slice %49 {offsets = [0, 1], sizes = [14, 279], strides = [1, 1]} : vector<14x280xf32> to vector<14x279xf32>
    %52 = arith.maximumf %50, %51 : vector<14x279xf32>
    %53 = vector.extract_strided_slice %52 {offsets = [0, 0], sizes = [10, 279], strides = [1, 1]} : vector<14x279xf32> to vector<10x279xf32>
    %54 = arith.truncf %53 : vector<10x279xf32> to vector<10x279xbf16>
    %c0_21 = arith.constant 0 : index
    %c0_22 = arith.constant 0 : index
    %c0_23 = arith.constant 0 : index
    %55 = vector.load %arg4[%c0_21, %c0_22, %c0_23] : memref<5x279x200xbf16, #tpu.memory_space<vmem>>, vector<1x279x200xbf16>
    %56 = vector.shape_cast %55 : vector<1x279x200xbf16> to vector<279x200xbf16>
    %cst_24 = arith.constant dense<0.000000e+00> : vector<10x200xf32>
    %57 = tpu.matmul %54, %56, %cst_24 {dimension_numbers = #tpu.dot_dimension_numbers<[1], [0], [0], [1], [0, 0, 1, 1], [], []>} : vector<10x279xbf16>, vector<279x200xbf16>, vector<10x200xf32> -> vector<10x200xf32>
    %58 = vector.extract_strided_slice %52 {offsets = [1, 0], sizes = [10, 279], strides = [1, 1]} : vector<14x279xf32> to vector<10x279xf32>
    %59 = arith.truncf %58 : vector<10x279xf32> to vector<10x279xbf16>
    %c1_25 = arith.constant 1 : index
    %c0_26 = arith.constant 0 : index
    %c0_27 = arith.constant 0 : index
    %60 = vector.load %arg4[%c1_25, %c0_26, %c0_27] : memref<5x279x200xbf16, #tpu.memory_space<vmem>>, vector<1x279x200xbf16>
    %61 = vector.shape_cast %60 : vector<1x279x200xbf16> to vector<279x200xbf16>
    %cst_28 = arith.constant dense<0.000000e+00> : vector<10x200xf32>
    %62 = tpu.matmul %59, %61, %cst_28 {dimension_numbers = #tpu.dot_dimension_numbers<[1], [0], [0], [1], [0, 0, 1, 1], [], []>} : vector<10x279xbf16>, vector<279x200xbf16>, vector<10x200xf32> -> vector<10x200xf32>
    %63 = arith.addf %57, %62 : vector<10x200xf32>
    %64 = vector.extract_strided_slice %52 {offsets = [2, 0], sizes = [10, 279], strides = [1, 1]} : vector<14x279xf32> to vector<10x279xf32>
    %65 = arith.truncf %64 : vector<10x279xf32> to vector<10x279xbf16>
    %c2_29 = arith.constant 2 : index
    %c0_30 = arith.constant 0 : index
    %c0_31 = arith.constant 0 : index
    %66 = vector.load %arg4[%c2_29, %c0_30, %c0_31] : memref<5x279x200xbf16, #tpu.memory_space<vmem>>, vector<1x279x200xbf16>
    %67 = vector.shape_cast %66 : vector<1x279x200xbf16> to vector<279x200xbf16>
    %cst_32 = arith.constant dense<0.000000e+00> : vector<10x200xf32>
    %68 = tpu.matmul %65, %67, %cst_32 {dimension_numbers = #tpu.dot_dimension_numbers<[1], [0], [0], [1], [0, 0, 1, 1], [], []>} : vector<10x279xbf16>, vector<279x200xbf16>, vector<10x200xf32> -> vector<10x200xf32>
    %69 = arith.addf %63, %68 : vector<10x200xf32>
    %70 = vector.extract_strided_slice %52 {offsets = [3, 0], sizes = [10, 279], strides = [1, 1]} : vector<14x279xf32> to vector<10x279xf32>
    %71 = arith.truncf %70 : vector<10x279xf32> to vector<10x279xbf16>
    %c3_33 = arith.constant 3 : index
    %c0_34 = arith.constant 0 : index
    %c0_35 = arith.constant 0 : index
    %72 = vector.load %arg4[%c3_33, %c0_34, %c0_35] : memref<5x279x200xbf16, #tpu.memory_space<vmem>>, vector<1x279x200xbf16>
    %73 = vector.shape_cast %72 : vector<1x279x200xbf16> to vector<279x200xbf16>
    %cst_36 = arith.constant dense<0.000000e+00> : vector<10x200xf32>
    %74 = tpu.matmul %71, %73, %cst_36 {dimension_numbers = #tpu.dot_dimension_numbers<[1], [0], [0], [1], [0, 0, 1, 1], [], []>} : vector<10x279xbf16>, vector<279x200xbf16>, vector<10x200xf32> -> vector<10x200xf32>
    %75 = arith.addf %69, %74 : vector<10x200xf32>
    %76 = vector.extract_strided_slice %52 {offsets = [4, 0], sizes = [10, 279], strides = [1, 1]} : vector<14x279xf32> to vector<10x279xf32>
    %77 = arith.truncf %76 : vector<10x279xf32> to vector<10x279xbf16>
    %c4_37 = arith.constant 4 : index
    %c0_38 = arith.constant 0 : index
    %c0_39 = arith.constant 0 : index
    %78 = vector.load %arg4[%c4_37, %c0_38, %c0_39] : memref<5x279x200xbf16, #tpu.memory_space<vmem>>, vector<1x279x200xbf16>
    %79 = vector.shape_cast %78 : vector<1x279x200xbf16> to vector<279x200xbf16>
    %cst_40 = arith.constant dense<0.000000e+00> : vector<10x200xf32>
    %80 = tpu.matmul %77, %79, %cst_40 {dimension_numbers = #tpu.dot_dimension_numbers<[1], [0], [0], [1], [0, 0, 1, 1], [], []>} : vector<10x279xbf16>, vector<279x200xbf16>, vector<10x200xf32> -> vector<10x200xf32>
    %81 = arith.addf %75, %80 : vector<10x200xf32>
    %c0_41 = arith.constant 0 : index
    %c0_42 = arith.constant 0 : index
    %82 = vector.load %arg5[%c0_41, %c0_42] : memref<1x200xf32, #tpu.memory_space<vmem>>, vector<1x200xf32>
    %83 = vector.broadcast %82 : vector<1x200xf32> to vector<10x200xf32>
    %84 = arith.addf %81, %83 : vector<10x200xf32>
    %cst_43 = arith.constant 0.000000e+00 : f32
    %85 = vector.broadcast %cst_43 : f32 to vector<10x200xf32>
    %86 = arith.maximumf %84, %85 : vector<10x200xf32>
    %87 = vector.extract_strided_slice %86 {offsets = [0, 0], sizes = [9, 200], strides = [1, 1]} : vector<10x200xf32> to vector<9x200xf32>
    %88 = vector.extract_strided_slice %86 {offsets = [1, 0], sizes = [9, 200], strides = [1, 1]} : vector<10x200xf32> to vector<9x200xf32>
    %89 = arith.maximumf %87, %88 : vector<9x200xf32>
    %90 = tpu.iota {dimensions = array<i32: 0>} : vector<5x9xi32>
    %91 = tpu.iota {dimensions = array<i32: 1>} : vector<5x9xi32>
    %c2_i32_44 = arith.constant 2 : i32
    %92 = vector.broadcast %c2_i32_44 : i32 to vector<5x9xi32>
    %93 = arith.muli %92, %90 : vector<5x9xi32>
    %94 = arith.cmpi eq, %91, %93 : vector<5x9xi32>
    %95 = arith.extui %94 : vector<5x9xi1> to vector<5x9xi32>
    %96 = arith.sitofp %95 : vector<5x9xi32> to vector<5x9xf32>
    %97 = arith.truncf %96 : vector<5x9xf32> to vector<5x9xbf16>
    %98 = arith.truncf %89 : vector<9x200xf32> to vector<9x200xbf16>
    %cst_45 = arith.constant dense<0.000000e+00> : vector<5x200xf32>
    %99 = tpu.matmul %97, %98, %cst_45 {dimension_numbers = #tpu.dot_dimension_numbers<[1], [0], [0], [1], [0, 0, 1, 1], [], []>} : vector<5x9xbf16>, vector<9x200xbf16>, vector<5x200xf32> -> vector<5x200xf32>
    %100 = vector.extract_strided_slice %99 {offsets = [0, 0], sizes = [5, 199], strides = [1, 1]} : vector<5x200xf32> to vector<5x199xf32>
    %101 = vector.extract_strided_slice %99 {offsets = [0, 1], sizes = [5, 199], strides = [1, 1]} : vector<5x200xf32> to vector<5x199xf32>
    %102 = arith.maximumf %100, %101 : vector<5x199xf32>
    %103 = vector.extract_strided_slice %102 {offsets = [0, 0], sizes = [1, 199], strides = [1, 1]} : vector<5x199xf32> to vector<1x199xf32>
    %104 = arith.truncf %103 : vector<1x199xf32> to vector<1x199xbf16>
    %c0_46 = arith.constant 0 : index
    %c0_47 = arith.constant 0 : index
    %c0_48 = arith.constant 0 : index
    %105 = vector.load %arg6[%c0_46, %c0_47, %c0_48] : memref<5x199x256xbf16, #tpu.memory_space<vmem>>, vector<1x199x256xbf16>
    %106 = vector.shape_cast %105 : vector<1x199x256xbf16> to vector<199x256xbf16>
    %cst_49 = arith.constant dense<0.000000e+00> : vector<1x256xf32>
    %107 = tpu.matmul %104, %106, %cst_49 {dimension_numbers = #tpu.dot_dimension_numbers<[1], [0], [0], [1], [0, 0, 1, 1], [], []>} : vector<1x199xbf16>, vector<199x256xbf16>, vector<1x256xf32> -> vector<1x256xf32>
    %108 = vector.extract_strided_slice %102 {offsets = [1, 0], sizes = [1, 199], strides = [1, 1]} : vector<5x199xf32> to vector<1x199xf32>
    %109 = arith.truncf %108 : vector<1x199xf32> to vector<1x199xbf16>
    %c1_50 = arith.constant 1 : index
    %c0_51 = arith.constant 0 : index
    %c0_52 = arith.constant 0 : index
    %110 = vector.load %arg6[%c1_50, %c0_51, %c0_52] : memref<5x199x256xbf16, #tpu.memory_space<vmem>>, vector<1x199x256xbf16>
    %111 = vector.shape_cast %110 : vector<1x199x256xbf16> to vector<199x256xbf16>
    %cst_53 = arith.constant dense<0.000000e+00> : vector<1x256xf32>
    %112 = tpu.matmul %109, %111, %cst_53 {dimension_numbers = #tpu.dot_dimension_numbers<[1], [0], [0], [1], [0, 0, 1, 1], [], []>} : vector<1x199xbf16>, vector<199x256xbf16>, vector<1x256xf32> -> vector<1x256xf32>
    %113 = arith.addf %107, %112 : vector<1x256xf32>
    %114 = vector.extract_strided_slice %102 {offsets = [2, 0], sizes = [1, 199], strides = [1, 1]} : vector<5x199xf32> to vector<1x199xf32>
    %115 = arith.truncf %114 : vector<1x199xf32> to vector<1x199xbf16>
    %c2_54 = arith.constant 2 : index
    %c0_55 = arith.constant 0 : index
    %c0_56 = arith.constant 0 : index
    %116 = vector.load %arg6[%c2_54, %c0_55, %c0_56] : memref<5x199x256xbf16, #tpu.memory_space<vmem>>, vector<1x199x256xbf16>
    %117 = vector.shape_cast %116 : vector<1x199x256xbf16> to vector<199x256xbf16>
    %cst_57 = arith.constant dense<0.000000e+00> : vector<1x256xf32>
    %118 = tpu.matmul %115, %117, %cst_57 {dimension_numbers = #tpu.dot_dimension_numbers<[1], [0], [0], [1], [0, 0, 1, 1], [], []>} : vector<1x199xbf16>, vector<199x256xbf16>, vector<1x256xf32> -> vector<1x256xf32>
    %119 = arith.addf %113, %118 : vector<1x256xf32>
    %120 = vector.extract_strided_slice %102 {offsets = [3, 0], sizes = [1, 199], strides = [1, 1]} : vector<5x199xf32> to vector<1x199xf32>
    %121 = arith.truncf %120 : vector<1x199xf32> to vector<1x199xbf16>
    %c3_58 = arith.constant 3 : index
    %c0_59 = arith.constant 0 : index
    %c0_60 = arith.constant 0 : index
    %122 = vector.load %arg6[%c3_58, %c0_59, %c0_60] : memref<5x199x256xbf16, #tpu.memory_space<vmem>>, vector<1x199x256xbf16>
    %123 = vector.shape_cast %122 : vector<1x199x256xbf16> to vector<199x256xbf16>
    %cst_61 = arith.constant dense<0.000000e+00> : vector<1x256xf32>
    %124 = tpu.matmul %121, %123, %cst_61 {dimension_numbers = #tpu.dot_dimension_numbers<[1], [0], [0], [1], [0, 0, 1, 1], [], []>} : vector<1x199xbf16>, vector<199x256xbf16>, vector<1x256xf32> -> vector<1x256xf32>
    %125 = arith.addf %119, %124 : vector<1x256xf32>
    %126 = vector.extract_strided_slice %102 {offsets = [4, 0], sizes = [1, 199], strides = [1, 1]} : vector<5x199xf32> to vector<1x199xf32>
    %127 = arith.truncf %126 : vector<1x199xf32> to vector<1x199xbf16>
    %c4_62 = arith.constant 4 : index
    %c0_63 = arith.constant 0 : index
    %c0_64 = arith.constant 0 : index
    %128 = vector.load %arg6[%c4_62, %c0_63, %c0_64] : memref<5x199x256xbf16, #tpu.memory_space<vmem>>, vector<1x199x256xbf16>
    %129 = vector.shape_cast %128 : vector<1x199x256xbf16> to vector<199x256xbf16>
    %cst_65 = arith.constant dense<0.000000e+00> : vector<1x256xf32>
    %130 = tpu.matmul %127, %129, %cst_65 {dimension_numbers = #tpu.dot_dimension_numbers<[1], [0], [0], [1], [0, 0, 1, 1], [], []>} : vector<1x199xbf16>, vector<199x256xbf16>, vector<1x256xf32> -> vector<1x256xf32>
    %131 = arith.addf %125, %130 : vector<1x256xf32>
    %c0_66 = arith.constant 0 : index
    %c0_67 = arith.constant 0 : index
    %132 = vector.load %arg7[%c0_66, %c0_67] : memref<1x256xf32, #tpu.memory_space<vmem>>, vector<1x256xf32>
    %133 = arith.addf %131, %132 : vector<1x256xf32>
    %cst_68 = arith.constant 0.000000e+00 : f32
    %134 = vector.broadcast %cst_68 : f32 to vector<1x256xf32>
    %135 = arith.maximumf %133, %134 : vector<1x256xf32>
    %136 = arith.truncf %135 : vector<1x256xf32> to vector<1x256xbf16>
    %c0_69 = arith.constant 0 : index
    %c0_70 = arith.constant 0 : index
    %137 = vector.load %arg8[%c0_69, %c0_70] : memref<256x128xbf16, #tpu.memory_space<vmem>>, vector<256x128xbf16>
    %cst_71 = arith.constant dense<0.000000e+00> : vector<1x128xf32>
    %138 = tpu.matmul %136, %137, %cst_71 {dimension_numbers = #tpu.dot_dimension_numbers<[1], [0], [0], [1], [0, 0, 1, 1], [], []>} : vector<1x256xbf16>, vector<256x128xbf16>, vector<1x128xf32> -> vector<1x128xf32>
    %c0_72 = arith.constant 0 : index
    %c0_73 = arith.constant 0 : index
    %139 = vector.load %arg9[%c0_72, %c0_73] : memref<1x128xf32, #tpu.memory_space<vmem>>, vector<1x128xf32>
    %140 = arith.addf %138, %139 : vector<1x128xf32>
    %cst_74 = arith.constant 0.000000e+00 : f32
    %141 = vector.broadcast %cst_74 : f32 to vector<1x128xf32>
    %142 = arith.maximumf %140, %141 : vector<1x128xf32>
    %143 = arith.truncf %142 : vector<1x128xf32> to vector<1x128xbf16>
    %c0_75 = arith.constant 0 : index
    %c0_76 = arith.constant 0 : index
    %144 = vector.load %arg10[%c0_75, %c0_76] : memref<128x2xbf16, #tpu.memory_space<vmem>>, vector<128x2xbf16>
    %cst_77 = arith.constant dense<0.000000e+00> : vector<1x2xf32>
    %145 = tpu.matmul %143, %144, %cst_77 {dimension_numbers = #tpu.dot_dimension_numbers<[1], [0], [0], [1], [0, 0, 1, 1], [], []>} : vector<1x128xbf16>, vector<128x2xbf16>, vector<1x2xf32> -> vector<1x2xf32>
    %c0_78 = arith.constant 0 : index
    %c0_79 = arith.constant 0 : index
    %146 = vector.load %arg11[%c0_78, %c0_79] : memref<1x2xf32, #tpu.memory_space<vmem>>, vector<1x2xf32>
    %147 = arith.addf %145, %146 : vector<1x2xf32>
    %cst_80 = arith.constant dense<0xFF800000> : vector<1xf32>
    %148 = vector.multi_reduction <maximumf>, %147, %cst_80 [1] : vector<1x2xf32> to vector<1xf32>
    %149 = vector.shape_cast %148 : vector<1xf32> to vector<1x1xf32>
    %150 = vector.broadcast %149 : vector<1x1xf32> to vector<1x2xf32>
    %151 = arith.subf %147, %150 : vector<1x2xf32>
    %152 = math.exp %151 : vector<1x2xf32>
    %cst_81 = arith.constant dense<0.000000e+00> : vector<1xf32>
    %153 = vector.multi_reduction <add>, %152, %cst_81 [1] : vector<1x2xf32> to vector<1xf32>
    %154 = vector.shape_cast %153 : vector<1xf32> to vector<1x1xf32>
    %155 = vector.broadcast %154 : vector<1x1xf32> to vector<1x2xf32>
    %156 = arith.divf %152, %155 : vector<1x2xf32>
    %c0_82 = arith.constant 0 : index
    %c0_83 = arith.constant 0 : index
    %c0_84 = arith.constant 0 : index
    %157 = vector.load %arg12[%c0_82, %c0_83, %c0_84] : memref<1x1x2xf32, #tpu.memory_space<vmem>>, vector<1x1x2xf32>
    %158 = vector.shape_cast %157 : vector<1x1x2xf32> to vector<1x2xf32>
    %159 = vector.shape_cast %156 : vector<1x2xf32> to vector<1x1x2xf32>
    tpu.vector_store %arg12[%c0_82, %c0_83, %c0_84], %159 {strides = array<i32>} : memref<1x1x2xf32, #tpu.memory_space<vmem>>, vector<1x1x2xf32>,
    return
  }
  func.func @transform_0(%arg0: i32) -> (i32, i32, i32) {
    %c0_i32 = arith.constant 0 : i32
    %c0_i32_0 = arith.constant 0 : i32
    %c0_i32_1 = arith.constant 0 : i32
    return %arg0, %c0_i32, %c0_i32_0 : i32, i32, i32
  }
  func.func @transform_1(%arg0: i32) -> (i32, i32, i32) {
    %c0_i32 = arith.constant 0 : i32
    %c0_i32_0 = arith.constant 0 : i32
    %c0_i32_1 = arith.constant 0 : i32
    %c0_i32_2 = arith.constant 0 : i32
    return %c0_i32, %c0_i32_0, %c0_i32_1 : i32, i32, i32
  }
  func.func @transform_2(%arg0: i32) -> (i32, i32) {
    %c0_i32 = arith.constant 0 : i32
    %c0_i32_0 = arith.constant 0 : i32
    %c0_i32_1 = arith.constant 0 : i32
    return %c0_i32, %c0_i32_0 : i32, i32
  }
  func.func @transform_3(%arg0: i32) -> (i32, i32, i32) {
    %c0_i32 = arith.constant 0 : i32
    %c0_i32_0 = arith.constant 0 : i32
    %c0_i32_1 = arith.constant 0 : i32
    %c0_i32_2 = arith.constant 0 : i32
    return %c0_i32, %c0_i32_0, %c0_i32_1 : i32, i32, i32
  }
  func.func @transform_4(%arg0: i32) -> (i32, i32) {
    %c0_i32 = arith.constant 0 : i32
    %c0_i32_0 = arith.constant 0 : i32
    %c0_i32_1 = arith.constant 0 : i32
    return %c0_i32, %c0_i32_0 : i32, i32
  }
  func.func @transform_5(%arg0: i32) -> (i32, i32, i32) {
    %c0_i32 = arith.constant 0 : i32
    %c0_i32_0 = arith.constant 0 : i32
    %c0_i32_1 = arith.constant 0 : i32
    %c0_i32_2 = arith.constant 0 : i32
    return %c0_i32, %c0_i32_0, %c0_i32_1 : i32, i32, i32
  }
  func.func @transform_6(%arg0: i32) -> (i32, i32) {
    %c0_i32 = arith.constant 0 : i32
    %c0_i32_0 = arith.constant 0 : i32
    %c0_i32_1 = arith.constant 0 : i32
    return %c0_i32, %c0_i32_0 : i32, i32
  }
  func.func @transform_7(%arg0: i32) -> (i32, i32) {
    %c0_i32 = arith.constant 0 : i32
    %c0_i32_0 = arith.constant 0 : i32
    %c0_i32_1 = arith.constant 0 : i32
    return %c0_i32, %c0_i32_0 : i32, i32
  }
  func.func @transform_8(%arg0: i32) -> (i32, i32) {
    %c0_i32 = arith.constant 0 : i32
    %c0_i32_0 = arith.constant 0 : i32
    %c0_i32_1 = arith.constant 0 : i32
    return %c0_i32, %c0_i32_0 : i32, i32
  }
  func.func @transform_9(%arg0: i32) -> (i32, i32) {
    %c0_i32 = arith.constant 0 : i32
    %c0_i32_0 = arith.constant 0 : i32
    %c0_i32_1 = arith.constant 0 : i32
    return %c0_i32, %c0_i32_0 : i32, i32
  }
  func.func @transform_10(%arg0: i32) -> (i32, i32) {
    %c0_i32 = arith.constant 0 : i32
    %c0_i32_0 = arith.constant 0 : i32
    %c0_i32_1 = arith.constant 0 : i32
    return %c0_i32, %c0_i32_0 : i32, i32
  }
  func.func @transform_11(%arg0: i32) -> (i32, i32, i32) {
    %c0_i32 = arith.constant 0 : i32
    %c0_i32_0 = arith.constant 0 : i32
    %c0_i32_1 = arith.constant 0 : i32
    return %arg0, %c0_i32, %c0_i32_0 : i32, i32, i32
  }
}

</mosaic_0001>

<llo_original>
// kernel: policy_forward.1
$region0: #{policy_forward.1}
  #allocation0 [shape = 'u32[]', space=smem, size = 0x4, offset = 0x4, fixed_abs, tag = 'smem constant byte address 0x4 - core index']
  #allocation1 [shape = 'u32[144,128]{1,0:T(1,128)}', space=vmem, size = 0x12000, scoped, tag = 'internal scratch']
  %s0 = inlined_call_operand.vmem [shape: bf16[2,32,128], index: 0, kind: input, shape index: {}]
  %s1 = inlined_call_operand.vmem [shape: bf16[5,128,280], index: 1, kind: input, shape index: {}]
  %s2 = inlined_call_operand.vmem [shape: f32[1,280], index: 2, kind: input, shape index: {}]
  %s3 = inlined_call_operand.vmem [shape: bf16[5,279,200], index: 3, kind: input, shape index: {}]
  %s4 = inlined_call_operand.vmem [shape: f32[1,200], index: 4, kind: input, shape index: {}]
  %s5 = inlined_call_operand.vmem [shape: bf16[5,199,256], index: 5, kind: input, shape index: {}]
  %s6 = inlined_call_operand.vmem [shape: f32[1,256], index: 6, kind: input, shape index: {}]
  %s7 = inlined_call_operand.vmem [shape: bf16[256,128], index: 7, kind: input, shape index: {}]
  %s8 = inlined_call_operand.vmem [shape: f32[1,128], index: 8, kind: input, shape index: {}]
  %s9 = inlined_call_operand.vmem [shape: bf16[128,2], index: 9, kind: input, shape index: {}]
  %s10 = inlined_call_operand.vmem [shape: f32[1,2], index: 10, kind: input, shape index: {}]
  %s11 = inlined_call_operand.hbm [shape: f32[2,1,2], index: 11, kind: output, shape index: {}]
  %s12 = sld [smem:[#allocation0]]
  $region77: #{policy_forward.1} parent=0
    _
  %s14 = ssub.s32 1, %s12
  %s15 = scalar_select 0, %s14, %s12
  $region1: #{policy_forward.1} parent=0
    #allocation2 [shape = 'u8[1024]{0}', space=vmem, size = 0x400, scoped, tag = 'output window, operand 0']
    #allocation3 [shape = 's32[2]{0}', space=sflag, size = 0x8, scoped, tag = 'scoped memory for policy_forward.1']
    %16 = vsyncpa [#allocation3], 0
    %s17 = scalar_lea.sflag [#allocation3], 1
    %18 = vsyncpa %s17, 0
    loop: start=0, step=1, limit=4
    $region2: #{policy_forward.1} parent=1 // loop_pre_header
      _
    $region3: #{policy_forward.1} parent=1 // loop_header
      %s20 = sphi 0, %s24
      %p21 = scmp.ge.s32.totalorder %s20, 4
      %s30 = sphi 0, %s32
      %s33 = sphi 0, %s30
      %s34 = sphi 0, %s33
      %s50 = sphi 0, %s34
      %s54 = sphi 0, %s54
      %s56 = sphi 0, %s54
      %s57 = sphi 0, %s56
      %s71 = sphi 0, %s57
      %s75 = sphi 0, %s75
      %s77 = sphi 0, %s75
      %s78 = sphi 0, %s77
      %s92 = sphi 0, %s78
      %s96 = sphi 0, %s96
      %s98 = sphi 0, %s96
      %s99 = sphi 0, %s98
      %s113 = sphi 0, %s99
      %s117 = sphi 0, %s117
      %s119 = sphi 0, %s117
      %s120 = sphi 0, %s119
      %s134 = sphi 0, %s120
      %s138 = sphi 0, %s138
      %s140 = sphi 0, %s138
      %s141 = sphi 0, %s140
      %s155 = sphi 0, %s141
      %s159 = sphi 0, %s159
      %s161 = sphi 0, %s159
      %s162 = sphi 0, %s161
      %s176 = sphi 0, %s162
      %s180 = sphi 0, %s180
      %s182 = sphi 0, %s180
      %s183 = sphi 0, %s182
      %s197 = sphi 0, %s183
      %s201 = sphi 0, %s201
      %s203 = sphi 0, %s201
      %s204 = sphi 0, %s203
      %s218 = sphi 0, %s204
      %s222 = sphi 0, %s222
      %s224 = sphi 0, %s222
      %s225 = sphi 0, %s224
      %s239 = sphi 0, %s225
      %s243 = sphi 0, %s243
      %s245 = sphi 0, %s243
      %s246 = sphi 0, %s245
      %s260 = sphi 0, %s246
      %s266 = sphi 0, %s268
      %s269 = sphi 0, %s266
      %s270 = sphi 0, %s269
      %s286 = sphi 0, %s270
    $region4: #{policy_forward.1} parent=1 // loop_header_branch
      %23 = sbr.rel (%p21) target = $region8
    $region5: #{policy_forward.1} parent=1 // loop_body
      %s25 = ssub.s32 %s20, 1
      %s26 = ssub.s32 %s20, 2
      %s27 = sadd.s32 %s20, 1
      %s28 = ssub.s32 %s20, %s27
      %p29 = scmp.eq.s32.totalorder %s28, 0
      %s31 = sadd.s32 %s30, 1
      %s32 = scalar_select %p29, %s30, %s31
      %p35 = pneg %p29
      %p36 = scmp.eq.s32.totalorder %s20, 1
      %p37 = por %p35, %p36
      %p38 = scmp.ne.s32.totalorder %s30, %s33
      %p39 = scmp.eq.s32.totalorder %s20, 0
      %p40 = por %p38, %p39
      %p41 = scmp.ne.s32.totalorder %s30, %s33
      %p42 = scmp.eq.s32.totalorder %s25, 1
      %p43 = por %p41, %p42
      %p44 = scmp.ne.s32.totalorder %s33, %s34
      %p45 = scmp.eq.s32.totalorder %s25, 0
      %p46 = por %p44, %p45
      %p47 = scmp.ne.s32.totalorder %s33, %s34
      %p48 = scmp.eq.s32.totalorder %s26, 1
      %p49 = por %p47, %p48
      %p51 = scmp.ne.s32.totalorder %s34, %s50
      %p52 = scmp.eq.s32.totalorder %s26, 0
      %p53 = por %p51, %p52
      %s55 = sadd.s32 %s54, 1
      %p58 = scmp.eq.s32.totalorder %s20, 1
      %p59 = scmp.ne.s32.totalorder %s54, %s56
      %p60 = scmp.eq.s32.totalorder %s20, 0
      %p61 = por %p59, %p60
      %p62 = scmp.ne.s32.totalorder %s54, %s56
      %p63 = scmp.eq.s32.totalorder %s25, 1
      %p64 = por %p62, %p63
      %p65 = scmp.ne.s32.totalorder %s56, %s57
      %p66 = scmp.eq.s32.totalorder %s25, 0
      %p67 = por %p65, %p66
      %p68 = scmp.ne.s32.totalorder %s56, %s57
      %p69 = scmp.eq.s32.totalorder %s26, 1
      %p70 = por %p68, %p69
      %p72 = scmp.ne.s32.totalorder %s57, %s71
      %p73 = scmp.eq.s32.totalorder %s26, 0
      %p74 = por %p72, %p73
      %s76 = sadd.s32 %s75, 1
      %p79 = scmp.eq.s32.totalorder %s20, 1
      %p80 = scmp.ne.s32.totalorder %s75, %s77
      %p81 = scmp.eq.s32.totalorder %s20, 0
      %p82 = por %p80, %p81
      %p83 = scmp.ne.s32.totalorder %s75, %s77
      %p84 = scmp.eq.s32.totalorder %s25, 1
      %p85 = por %p83, %p84
      %p86 = scmp.ne.s32.totalorder %s77, %s78
      %p87 = scmp.eq.s32.totalorder %s25, 0
      %p88 = por %p86, %p87
      %p89 = scmp.ne.s32.totalorder %s77, %s78
      %p90 = scmp.eq.s32.totalorder %s26, 1
      %p91 = por %p89, %p90
      %p93 = scmp.ne.s32.totalorder %s78, %s92
      %p94 = scmp.eq.s32.totalorder %s26, 0
      %p95 = por %p93, %p94
      %s97 = sadd.s32 %s96, 1
      %p100 = scmp.eq.s32.totalorder %s20, 1
      %p101 = scmp.ne.s32.totalorder %s96, %s98
      %p102 = scmp.eq.s32.totalorder %s20, 0
      %p103 = por %p101, %p102
      %p104 = scmp.ne.s32.totalorder %s96, %s98
      %p105 = scmp.eq.s32.totalorder %s25, 1
      %p106 = por %p104, %p105
      %p107 = scmp.ne.s32.totalorder %s98, %s99
      %p108 = scmp.eq.s32.totalorder %s25, 0
      %p109 = por %p107, %p108
      %p110 = scmp.ne.s32.totalorder %s98, %s99
      %p111 = scmp.eq.s32.totalorder %s26, 1
      %p112 = por %p110, %p111
      %p114 = scmp.ne.s32.totalorder %s99, %s113
      %p115 = scmp.eq.s32.totalorder %s26, 0
      %p116 = por %p114, %p115
      %s118 = sadd.s32 %s117, 1
      %p121 = scmp.eq.s32.totalorder %s20, 1
      %p122 = scmp.ne.s32.totalorder %s117, %s119
      %p123 = scmp.eq.s32.totalorder %s20, 0
      %p124 = por %p122, %p123
      %p125 = scmp.ne.s32.totalorder %s117, %s119
      %p126 = scmp.eq.s32.totalorder %s25, 1
      %p127 = por %p125, %p126
      %p128 = scmp.ne.s32.totalorder %s119, %s120
      %p129 = scmp.eq.s32.totalorder %s25, 0
      %p130 = por %p128, %p129
      %p131 = scmp.ne.s32.totalorder %s119, %s120
      %p132 = scmp.eq.s32.totalorder %s26, 1
      %p133 = por %p131, %p132
      %p135 = scmp.ne.s32.totalorder %s120, %s134
      %p136 = scmp.eq.s32.totalorder %s26, 0
      %p137 = por %p135, %p136
      %s139 = sadd.s32 %s138, 1
      %p142 = scmp.eq.s32.totalorder %s20, 1
      %p143 = scmp.ne.s32.totalorder %s138, %s140
      %p144 = scmp.eq.s32.totalorder %s20, 0
      %p145 = por %p143, %p144
      %p146 = scmp.ne.s32.totalorder %s138, %s140
      %p147 = scmp.eq.s32.totalorder %s25, 1
      %p148 = por %p146, %p147
      %p149 = scmp.ne.s32.totalorder %s140, %s141
      %p150 = scmp.eq.s32.totalorder %s25, 0
      %p151 = por %p149, %p150
      %p152 = scmp.ne.s32.totalorder %s140, %s141
      %p153 = scmp.eq.s32.totalorder %s26, 1
      %p154 = por %p152, %p153
      %p156 = scmp.ne.s32.totalorder %s141, %s155
      %p157 = scmp.eq.s32.totalorder %s26, 0
      %p158 = por %p156, %p157
      %s160 = sadd.s32 %s159, 1
      %p163 = scmp.eq.s32.totalorder %s20, 1
      %p164 = scmp.ne.s32.totalorder %s159, %s161
      %p165 = scmp.eq.s32.totalorder %s20, 0
      %p166 = por %p164, %p165
      %p167 = scmp.ne.s32.totalorder %s159, %s161
      %p168 = scmp.eq.s32.totalorder %s25, 1
      %p169 = por %p167, %p168
      %p170 = scmp.ne.s32.totalorder %s161, %s162
      %p171 = scmp.eq.s32.totalorder %s25, 0
      %p172 = por %p170, %p171
      %p173 = scmp.ne.s32.totalorder %s161, %s162
      %p174 = scmp.eq.s32.totalorder %s26, 1
      %p175 = por %p173, %p174
      %p177 = scmp.ne.s32.totalorder %s162, %s176
      %p178 = scmp.eq.s32.totalorder %s26, 0
      %p179 = por %p177, %p178
      %s181 = sadd.s32 %s180, 1
      %p184 = scmp.eq.s32.totalorder %s20, 1
      %p185 = scmp.ne.s32.totalorder %s180, %s182
      %p186 = scmp.eq.s32.totalorder %s20, 0
      %p187 = por %p185, %p186
      %p188 = scmp.ne.s32.totalorder %s180, %s182
      %p189 = scmp.eq.s32.totalorder %s25, 1
      %p190 = por %p188, %p189
      %p191 = scmp.ne.s32.totalorder %s182, %s183
      %p192 = scmp.eq.s32.totalorder %s25, 0
      %p193 = por %p191, %p192
      %p194 = scmp.ne.s32.totalorder %s182, %s183
      %p195 = scmp.eq.s32.totalorder %s26, 1
      %p196 = por %p194, %p195
      %p198 = scmp.ne.s32.totalorder %s183, %s197
      %p199 = scmp.eq.s32.totalorder %s26, 0
      %p200 = por %p198, %p199
      %s202 = sadd.s32 %s201, 1
      %p205 = scmp.eq.s32.totalorder %s20, 1
      %p206 = scmp.ne.s32.totalorder %s201, %s203
      %p207 = scmp.eq.s32.totalorder %s20, 0
      %p208 = por %p206, %p207
      %p209 = scmp.ne.s32.totalorder %s201, %s203
      %p210 = scmp.eq.s32.totalorder %s25, 1
      %p211 = por %p209, %p210
      %p212 = scmp.ne.s32.totalorder %s203, %s204
      %p213 = scmp.eq.s32.totalorder %s25, 0
      %p214 = por %p212, %p213
      %p215 = scmp.ne.s32.totalorder %s203, %s204
      %p216 = scmp.eq.s32.totalorder %s26, 1
      %p217 = por %p215, %p216
      %p219 = scmp.ne.s32.totalorder %s204, %s218
      %p220 = scmp.eq.s32.totalorder %s26, 0
      %p221 = por %p219, %p220
      %s223 = sadd.s32 %s222, 1
      %p226 = scmp.eq.s32.totalorder %s20, 1
      %p227 = scmp.ne.s32.totalorder %s222, %s224
      %p228 = scmp.eq.s32.totalorder %s20, 0
      %p229 = por %p227, %p228
      %p230 = scmp.ne.s32.totalorder %s222, %s224
      %p231 = scmp.eq.s32.totalorder %s25, 1
      %p232 = por %p230, %p231
      %p233 = scmp.ne.s32.totalorder %s224, %s225
      %p234 = scmp.eq.s32.totalorder %s25, 0
      %p235 = por %p233, %p234
      %p236 = scmp.ne.s32.totalorder %s224, %s225
      %p237 = scmp.eq.s32.totalorder %s26, 1
      %p238 = por %p236, %p237
      %p240 = scmp.ne.s32.totalorder %s225, %s239
      %p241 = scmp.eq.s32.totalorder %s26, 0
      %p242 = por %p240, %p241
      %s244 = sadd.s32 %s243, 1
      %p247 = scmp.eq.s32.totalorder %s20, 1
      %p248 = scmp.ne.s32.totalorder %s243, %s245
      %p249 = scmp.eq.s32.totalorder %s20, 0
      %p250 = por %p248, %p249
      %p251 = scmp.ne.s32.totalorder %s243, %s245
      %p252 = scmp.eq.s32.totalorder %s25, 1
      %p253 = por %p251, %p252
      %p254 = scmp.ne.s32.totalorder %s245, %s246
      %p255 = scmp.eq.s32.totalorder %s25, 0
      %p256 = por %p254, %p255
      %p257 = scmp.ne.s32.totalorder %s245, %s246
      %p258 = scmp.eq.s32.totalorder %s26, 1
      %p259 = por %p257, %p258
      %p261 = scmp.ne.s32.totalorder %s246, %s260
      %p262 = scmp.eq.s32.totalorder %s26, 0
      %p263 = por %p261, %p262
      %s264 = ssub.s32 %s20, %s27
      %p265 = scmp.eq.s32.totalorder %s264, 0
      %s267 = sadd.s32 %s266, 1
      %s268 = scalar_select %p265, %s266, %s267
      %p271 = pneg %p265
      %p272 = scmp.eq.s32.totalorder %s20, 1
      %p273 = por %p271, %p272
      %p274 = scmp.ne.s32.totalorder %s266, %s269
      %p275 = scmp.eq.s32.totalorder %s20, 0
      %p276 = por %p274, %p275
      %p277 = scmp.ne.s32.totalorder %s266, %s269
      %p278 = scmp.eq.s32.totalorder %s25, 1
      %p279 = por %p277, %p278
      %p280 = scmp.ne.s32.totalorder %s269, %s270
      %p281 = scmp.eq.s32.totalorder %s25, 0
      %p282 = por %p280, %p281
      %p283 = scmp.ne.s32.totalorder %s269, %s270
      %p284 = scmp.eq.s32.totalorder %s26, 1
      %p285 = por %p283, %p284
      %p287 = scmp.ne.s32.totalorder %s270, %s286
      %p288 = scmp.eq.s32.totalorder %s26, 0
      %p289 = por %p287, %p288
      %p290 = scmp.le.s32.totalorder 1, %s20
      %p291 = scmp.lt.s32.totalorder %s20, 3
      %p292 = pnand %p290, %p291
      %p293 = pneg %p292
      // Predicated region
      $region9: #{policy_forward.1} parent=5 // pred_check
        _
      $region10: #{policy_forward.1} parent=5 // pred_check_branch
        %295 = sbr.rel (%p292) target = $region12
      $region11: #{policy_forward.1} parent=5 // pred_region
        %s296 = ssub.s32 %s20, 1
        // Predicated region
        $region13: #{policy_forward.1} parent=11 // pred_check
          %p297 = pneg %p67
        $region14: #{policy_forward.1} parent=11 // pred_check_branch
          %299 = sbr.rel (%p297) target = $region16
        $region15: #{policy_forward.1} parent=11 // pred_region
          _
        $region16: #{policy_forward.1} parent=11 // pred_fallthru
          _
        // Predicated region
        $region17: #{policy_forward.1} parent=11 // pred_check
          %p300 = pneg %p88
        $region18: #{policy_forward.1} parent=11 // pred_check_branch
          %302 = sbr.rel (%p300) target = $region20
        $region19: #{policy_forward.1} parent=11 // pred_region
          _
        $region20: #{policy_forward.1} parent=11 // pred_fallthru
          _
        // Predicated region
        $region21: #{policy_forward.1} parent=11 // pred_check
          %p303 = pneg %p109
        $region22: #{policy_forward.1} parent=11 // pred_check_branch
          %305 = sbr.rel (%p303) target = $region24
        $region23: #{policy_forward.1} parent=11 // pred_region
          _
        $region24: #{policy_forward.1} parent=11 // pred_fallthru
          _
        // Predicated region
        $region25: #{policy_forward.1} parent=11 // pred_check
          %p306 = pneg %p130
        $region26: #{policy_forward.1} parent=11 // pred_check_branch
          %308 = sbr.rel (%p306) target = $region28
        $region27: #{policy_forward.1} parent=11 // pred_region
          _
        $region28: #{policy_forward.1} parent=11 // pred_fallthru
          _
        // Predicated region
        $region29: #{policy_forward.1} parent=11 // pred_check
          %p309 = pneg %p151
        $region30: #{policy_forward.1} parent=11 // pred_check_branch
          %311 = sbr.rel (%p309) target = $region32
        $region31: #{policy_forward.1} parent=11 // pred_region
          _
        $region32: #{policy_forward.1} parent=11 // pred_fallthru
          _
        // Predicated region
        $region33: #{policy_forward.1} parent=11 // pred_check
          %p312 = pneg %p172
        $region34: #{policy_forward.1} parent=11 // pred_check_branch
          %314 = sbr.rel (%p312) target = $region36
        $region35: #{policy_forward.1} parent=11 // pred_region
          _
        $region36: #{policy_forward.1} parent=11 // pred_fallthru
          _
        // Predicated region
        $region37: #{policy_forward.1} parent=11 // pred_check
          %p315 = pneg %p193
        $region38: #{policy_forward.1} parent=11 // pred_check_branch
          %317 = sbr.rel (%p315) target = $region40
        $region39: #{policy_forward.1} parent=11 // pred_region
          _
        $region40: #{policy_forward.1} parent=11 // pred_fallthru
          _
        // Predicated region
        $region41: #{policy_forward.1} parent=11 // pred_check
          %p318 = pneg %p214
        $region42: #{policy_forward.1} parent=11 // pred_check_branch
          %320 = sbr.rel (%p318) target = $region44
        $region43: #{policy_forward.1} parent=11 // pred_region
          _
        $region44: #{policy_forward.1} parent=11 // pred_fallthru
          _
        // Predicated region
        $region45: #{policy_forward.1} parent=11 // pred_check
          %p321 = pneg %p235
        $region46: #{policy_forward.1} parent=11 // pred_check_branch
          %323 = sbr.rel (%p321) target = $region48
        $region47: #{policy_forward.1} parent=11 // pred_region
          _
        $region48: #{policy_forward.1} parent=11 // pred_fallthru
          _
        // Predicated region
        $region49: #{policy_forward.1} parent=11 // pred_check
          %p324 = pneg %p256
        $region50: #{policy_forward.1} parent=11 // pred_check_branch
          %326 = sbr.rel (%p324) target = $region52
        $region51: #{policy_forward.1} parent=11 // pred_region
          _
        $region52: #{policy_forward.1} parent=11 // pred_fallthru
          _
      $region12: #{policy_forward.1} parent=5 // pred_fallthru
        _
      %p327 = scmp.lt.s32.totalorder %s20, 2
      // Predicated region
      $region53: #{policy_forward.1} parent=5 // pred_check
        %p328 = pneg %p327
      $region54: #{policy_forward.1} parent=5 // pred_check_branch
        %330 = sbr.rel (%p328) target = $region56
      $region55: #{policy_forward.1} parent=5 // pred_region
        // Predicated region
        $region57: #{policy_forward.1} parent=55 // pred_check
          %p331 = pneg %p40
        $region58: #{policy_forward.1} parent=55 // pred_check_branch
          %333 = sbr.rel (%p331) target = $region60
        $region59: #{policy_forward.1} parent=55 // pred_region
          %p334 = scmp.lt.s32.totalorder %s20, 1
          %s335 = scalar_select %p334, %s20, 1
          %s336 = smul.addr %s335, 4
          %s337 = smul.addr %s336, 4
          %s338 = scalar_lea.vmem %s0, %s337
        $region60: #{policy_forward.1} parent=55 // pred_fallthru
          _
      $region56: #{policy_forward.1} parent=5 // pred_fallthru
        _
      %p339 = scmp.le.s32.totalorder 1, %s20
      %p340 = scmp.lt.s32.totalorder %s20, 3
      %p341 = pnand %p339, %p340
      %p342 = pneg %p341
      // Predicated region
      $region61: #{policy_forward.1} parent=5 // pred_check
        _
      $region62: #{policy_forward.1} parent=5 // pred_check_branch
        %344 = sbr.rel (%p341) target = $region64
      $region63: #{policy_forward.1} parent=5 // pred_region
        %s345 = ssub.s32 %s20, 1
        %p346 = scmp.lt.s32.totalorder %s25, 1
        %s347 = scalar_select %p346, %s25, 1
        %s348 = smul.addr %s347, 4
        %s349 = smul.addr %s348, 4
        %s350 = scalar_lea.vmem %s0, %s349
        %p351 = pneg %p46
        %p352 = pneg %p43
        %p353 = pneg %p67
        %p354 = pneg %p64
        %p355 = pneg %p88
        %p356 = pneg %p85
        %p357 = pneg %p109
        %p358 = pneg %p106
        %p359 = pneg %p130
        %p360 = pneg %p127
        %p361 = pneg %p151
        %p362 = pneg %p148
        %p363 = pneg %p172
        %p364 = pneg %p169
        %p365 = pneg %p193
        %p366 = pneg %p190
        %p367 = pneg %p214
        %p368 = pneg %p211
        %p369 = pneg %p235
        %p370 = pneg %p232
        %p371 = pneg %p256
        %p372 = pneg %p253
        %p373 = pneg %p282
        %p374 = pneg %p279
        %s375 = sand.u32 %s269, 1
        %s376 = scalar_lea.sflag [#allocation3], %s375
        %s377 = sand.u32 %s269, 1
        %s378 = scalar_lea.vmem [#allocation2], %s377
        %p379 = scmp.lt.s32.totalorder %s25, 1
        %s380 = scalar_select %p379, %s25, 1
        %s381 = smul.addr %s380, 4
        %s382 = smul.addr %s381, 4
        %s383 = scalar_lea.vmem %s0, %s382
        %v385 = vld [vmem:[%s383] sm:$0xf]
        %v386 = vld [vmem:[%s383 + $0x4] sm:$0xf]
        %v387 = vld [vmem:[%s383 + $0x8] sm:$0xf]
        %v388 = vld [vmem:[%s383 + $0xc] sm:$0xf]
        %v389 = vunpack.c.l.bf16 %v385
        %v390 = vunpack.c.l.bf16 %v386
        %v391 = vunpack.c.l.bf16 %v387
        %v392 = vunpack.c.l.bf16 %v388
        %v393 = vpack.c.bf16 %v390, %v389
        %v394 = vpack.c.bf16 %v392, %v391
        %v395 = vld [vmem:[%s1] sm:$0xff]
        %v396 = vld [vmem:[%s1 + $0x8] sm:$0xf]
        %v397 = vld [vmem:[%s1 + $0xc] sm:$0xff]
        %v398 = vld [vmem:[%s1 + $0x14] sm:$0xf]
        %v399 = vld [vmem:[%s1 + $0x18] sm:$0xff]
        %v400 = vld [vmem:[%s1 + $0x20] sm:$0xf]
        %v401 = vld [vmem:[%s1 + $0x24] sm:$0xff]
        %v402 = vld [vmem:[%s1 + $0x2c] sm:$0xf]
        %v403 = vld [vmem:[%s1 + $0x30] sm:$0xff]
        %v404 = vld [vmem:[%s1 + $0x38] sm:$0xf]
        %v405 = vld [vmem:[%s1 + $0x3c] sm:$0xff]
        %v406 = vld [vmem:[%s1 + $0x44] sm:$0xf]
        %v407 = vld [vmem:[%s1 + $0x48] sm:$0xff]
        %v408 = vld [vmem:[%s1 + $0x50] sm:$0xf]
        %v409 = vld [vmem:[%s1 + $0x54] sm:$0xff]
        %v410 = vld [vmem:[%s1 + $0x5c] sm:$0xf]
        %v411 = vld [vmem:[%s1 + $0x60] sm:$0xff]
        %v412 = vld [vmem:[%s1 + $0x68] sm:$0xf]
        %v413 = vld [vmem:[%s1 + $0x6c] sm:$0xff]
        %v414 = vld [vmem:[%s1 + $0x74] sm:$0xf]
        %v415 = vld [vmem:[%s1 + $0x78] sm:$0xff]
        %v416 = vld [vmem:[%s1 + $0x80] sm:$0xf]
        %v417 = vld [vmem:[%s1 + $0x84] sm:$0xff]
        %v418 = vld [vmem:[%s1 + $0x8c] sm:$0xf]
        %v419 = vld [vmem:[%s1 + $0x90] sm:$0xff]
        %v420 = vld [vmem:[%s1 + $0x98] sm:$0xf]
        %v421 = vld [vmem:[%s1 + $0x9c] sm:$0xff]
        %v422 = vld [vmem:[%s1 + $0xa4] sm:$0xf]
        %v423 = vld [vmem:[%s1 + $0xa8] sm:$0xff]
        %v424 = vld [vmem:[%s1 + $0xb0] sm:$0xf]
        %v425 = vld [vmem:[%s1 + $0xb4] sm:$0xff]
        %v426 = vld [vmem:[%s1 + $0xbc] sm:$0xf]
        %s427 = scalar_lea.vmem %s1, 192
        %v428 = vld [vmem:[%s427] sm:$0xff]
        %v429 = vld [vmem:[%s427 + $0x8] sm:$0xf]
        %v430 = vld [vmem:[%s427 + $0xc] sm:$0xff]
        %v431 = vld [vmem:[%s427 + $0x14] sm:$0xf]
        %v432 = vld [vmem:[%s427 + $0x18] sm:$0xff]
        %v433 = vld [vmem:[%s427 + $0x20] sm:$0xf]
        %v434 = vld [vmem:[%s427 + $0x24] sm:$0xff]
        %v435 = vld [vmem:[%s427 + $0x2c] sm:$0xf]
        %v436 = vld [vmem:[%s427 + $0x30] sm:$0xff]
        %v437 = vld [vmem:[%s427 + $0x38] sm:$0xf]
        %v438 = vld [vmem:[%s427 + $0x3c] sm:$0xff]
        %v439 = vld [vmem:[%s427 + $0x44] sm:$0xf]
        %v440 = vld [vmem:[%s427 + $0x48] sm:$0xff]
        %v441 = vld [vmem:[%s427 + $0x50] sm:$0xf]
        %v442 = vld [vmem:[%s427 + $0x54] sm:$0xff]
        %v443 = vld [vmem:[%s427 + $0x5c] sm:$0xf]
        %v444 = vld [vmem:[%s427 + $0x60] sm:$0xff]
        %v445 = vld [vmem:[%s427 + $0x68] sm:$0xf]
        %v446 = vld [vmem:[%s427 + $0x6c] sm:$0xff]
        %v447 = vld [vmem:[%s427 + $0x74] sm:$0xf]
        %v448 = vld [vmem:[%s427 + $0x78] sm:$0xff]
        %v449 = vld [vmem:[%s427 + $0x80] sm:$0xf]
        %v450 = vld [vmem:[%s427 + $0x84] sm:$0xff]
        %v451 = vld [vmem:[%s427 + $0x8c] sm:$0xf]
        %v452 = vld [vmem:[%s427 + $0x90] sm:$0xff]
        %v453 = vld [vmem:[%s427 + $0x98] sm:$0xf]
        %v454 = vld [vmem:[%s427 + $0x9c] sm:$0xff]
        %v455 = vld [vmem:[%s427 + $0xa4] sm:$0xf]
        %v456 = vld [vmem:[%s427 + $0xa8] sm:$0xff]
        %v457 = vld [vmem:[%s427 + $0xb0] sm:$0xf]
        %v458 = vld [vmem:[%s427 + $0xb4] sm:$0xff]
        %v459 = vld [vmem:[%s427 + $0xbc] sm:$0xf]
        %vm460 = vsmask.f32 7424
        %v462 = vshrl.u32 %v393, 16
        %v464 = vshll.u32 %v393, 16
        %v466 = vrot.slane %v464, 1
        %v467 = vor.u32 %v462, %v466
        %v469 = vshll.u32 %v394, 16
        %v471 = vrot.slane %v469, 1
        %v472 = vsel %vm460, %v467, %v471
        %v473 = vshrl.u32 %v394, 16
        %v475 = vor.u32 %v473, %v471
        %v510 = vunpack.c.l.b16 %v428
        %v511 = vunpack.c.h.b16 %v428
        %v512 = vunpack.c.l.b16 %v429
        %v513 = vunpack.c.l.b16 %v430
        %v514 = vunpack.c.h.b16 %v430
        %v515 = vunpack.c.l.b16 %v431
        %v516 = vunpack.c.l.b16 %v432
        %v517 = vunpack.c.h.b16 %v432
        %v518 = vunpack.c.l.b16 %v433
        %v519 = vunpack.c.l.b16 %v434
        %v520 = vunpack.c.h.b16 %v434
        %v521 = vunpack.c.l.b16 %v435
        %v522 = vunpack.c.l.b16 %v436
        %v523 = vunpack.c.h.b16 %v436
        %v524 = vunpack.c.l.b16 %v437
        %v525 = vunpack.c.l.b16 %v438
        %v526 = vunpack.c.h.b16 %v438
        %v527 = vunpack.c.l.b16 %v439
        %v528 = vunpack.c.l.b16 %v440
        %v529 = vunpack.c.h.b16 %v440
        %v530 = vunpack.c.l.b16 %v441
        %v531 = vunpack.c.l.b16 %v442
        %v532 = vunpack.c.h.b16 %v442
        %v533 = vunpack.c.l.b16 %v443
        %v534 = vunpack.c.l.b16 %v444
        %v535 = vunpack.c.h.b16 %v444
        %v536 = vunpack.c.l.b16 %v445
        %v537 = vunpack.c.l.b16 %v446
        %v538 = vunpack.c.h.b16 %v446
        %v539 = vunpack.c.l.b16 %v447
        %v540 = vunpack.c.l.b16 %v448
        %v541 = vunpack.c.h.b16 %v448
        %v542 = vunpack.c.l.b16 %v449
        %v543 = vunpack.c.l.b16 %v450
        %v544 = vunpack.c.h.b16 %v450
        %v545 = vunpack.c.l.b16 %v451
        %v546 = vunpack.c.l.b16 %v452
        %v547 = vunpack.c.h.b16 %v452
        %v548 = vunpack.c.l.b16 %v453
        %v549 = vunpack.c.l.b16 %v454
        %v550 = vunpack.c.h.b16 %v454
        %v551 = vunpack.c.l.b16 %v455
        %v552 = vunpack.c.l.b16 %v456
        %v553 = vunpack.c.h.b16 %v456
        %v554 = vunpack.c.l.b16 %v457
        %v555 = vunpack.c.l.b16 %v458
        %v556 = vunpack.c.h.b16 %v458
        %v557 = vunpack.c.l.b16 %v459
        %v558 = vpack.c.b16 %v513, %v510
        %v559 = vpack.c.b16 %v514, %v511
        %v560 = vpack.c.b16 %v515, %v512
        %v561 = vpack.c.b16 %v519, %v516
        %v562 = vpack.c.b16 %v520, %v517
        %v563 = vpack.c.b16 %v521, %v518
        %v564 = vpack.c.b16 %v525, %v522
        %v565 = vpack.c.b16 %v526, %v523
        %v566 = vpack.c.b16 %v527, %v524
        %v567 = vpack.c.b16 %v531, %v528
        %v568 = vpack.c.b16 %v532, %v529
        %v569 = vpack.c.b16 %v533, %v530
        %v570 = vpack.c.b16 %v537, %v534
        %v571 = vpack.c.b16 %v538, %v535
        %v572 = vpack.c.b16 %v539, %v536
        %v573 = vpack.c.b16 %v543, %v540
        %v574 = vpack.c.b16 %v544, %v541
        %v575 = vpack.c.b16 %v545, %v542
        %v576 = vpack.c.b16 %v549, %v546
        %v577 = vpack.c.b16 %v550, %v547
        %v578 = vpack.c.b16 %v551, %v548
        %v579 = vpack.c.b16 %v555, %v552
        %v580 = vpack.c.b16 %v556, %v553
        %v581 = vpack.c.b16 %v557, %v554
        %606 = vmatprep.subr.bf16.mxu0 %v580
        %607 = vmatpush1.bf16.msra.mxu0 %v579
        %608 = vmatprep.subr.bf16.mxu0 %v577
        %609 = vmatpush1.bf16.msra.mxu0 %v576
        %610 = vmatprep.subr.bf16.mxu0 %v574
        %611 = vmatpush1.bf16.msra.mxu0 %v573
        %612 = vmatprep.subr.bf16.mxu0 %v571
        %613 = vmatpush1.bf16.msra.mxu0 %v570
        %614 = vmatprep.subr.bf16.mxu0 %v568
        %615 = vmatpush1.bf16.msra.mxu0 %v567
        %616 = vmatprep.subr.bf16.mxu0 %v565
        %617 = vmatpush1.bf16.msra.mxu0 %v564
        %618 = vmatprep.subr.bf16.mxu0 %v562
        %619 = vmatpush1.bf16.msra.mxu0 %v561
        %620 = vmatprep.subr.bf16.mxu0 %v559
        %621 = vmatpush1.bf16.msra.mxu0 %v558
        %622 = vmatprep.subr.bf16.mxu0 0
        %623 = vmatpush2.bf16.msra.mxu0 0
        %624 = vmatprep.subr.bf16.mxu0 0
        %625 = vmatpush2.bf16.msra.mxu0 0
        %626 = vmatprep.subr.bf16.mxu0 0
        %627 = vmatpush2.bf16.msra.mxu0 0
        %628 = vmatprep.subr.bf16.mxu0 0
        %629 = vmatpush2.bf16.msra.mxu0 0
        %630 = vmatprep.subr.bf16.mxu0 0
        %631 = vmatpush2.bf16.msra.mxu0 0
        %632 = vmatprep.subr.bf16.mxu0 0
        %633 = vmatpush2.bf16.msra.mxu0 0
        %634 = vmatprep.subr.bf16.mxu0 0
        %635 = vmatpush2.bf16.msra.mxu0 0
        %636 = vmatprep.subr.bf16.mxu0 0
        %637 = vmatpush2.bf16.msra.mxu0 0
        %638 = vmatprep.mubr.bf16.mxu0 0
        %639 = vmatmul.mubr.bf16.gmra.mxu0 %v472
        %v640 = vpop.f32.mrf.mxu0
        %v641 = vadd.f32 0.0, %v640
        %v642 = vpop.f32.mrf.mxu0
        %v643 = vadd.f32 0.0, %v642
        %v644 = vpop.f32.mrf.mxu0
        %v645 = vadd.f32 0.0, %v644
        %v646 = vpop.f32.mrf.mxu0
        %v647 = vadd.f32 0.0, %v646
        %648 = vmatprep.mubr.bf16.mxu0 0
        %649 = vmatmul.mubr.bf16.gmra.mxu0 %v475
        %v650 = vpop.f32.mrf.mxu0
        %v651 = vadd.f32 0.0, %v650
        %v652 = vpop.f32.mrf.mxu0
        %v653 = vadd.f32 0.0, %v652
        %v654 = vpop.f32.mrf.mxu0
        %v655 = vadd.f32 0.0, %v654
        %v656 = vpop.f32.mrf.mxu0
        %v657 = vadd.f32 0.0, %v656
        %658 = vdwg.mxu0
        %659 = vmatprep.subr.bf16.mxu0 0
        %660 = vmatpush1.bf16.msra.mxu0 %v581
        %661 = vmatprep.subr.bf16.mxu0 0
        %662 = vmatpush1.bf16.msra.mxu0 %v578
        %663 = vmatprep.subr.bf16.mxu0 0
        %664 = vmatpush1.bf16.msra.mxu0 %v575
        %665 = vmatprep.subr.bf16.mxu0 0
        %666 = vmatpush1.bf16.msra.mxu0 %v572
        %667 = vmatprep.subr.bf16.mxu0 0
        %668 = vmatpush1.bf16.msra.mxu0 %v569
        %669 = vmatprep.subr.bf16.mxu0 0
        %670 = vmatpush1.bf16.msra.mxu0 %v566
        %671 = vmatprep.subr.bf16.mxu0 0
        %672 = vmatpush1.bf16.msra.mxu0 %v563
        %673 = vmatprep.subr.bf16.mxu0 0
        %674 = vmatpush1.bf16.msra.mxu0 %v560
        %675 = vmatprep.subr.bf16.mxu0 0
        %676 = vmatpush2.bf16.msra.mxu0 0
        %677 = vmatprep.subr.bf16.mxu0 0
        %678 = vmatpush2.bf16.msra.mxu0 0
        %679 = vmatprep.subr.bf16.mxu0 0
        %680 = vmatpush2.bf16.msra.mxu0 0
        %681 = vmatprep.subr.bf16.mxu0 0
        %682 = vmatpush2.bf16.msra.mxu0 0
        %683 = vmatprep.subr.bf16.mxu0 0
        %684 = vmatpush2.bf16.msra.mxu0 0
        %685 = vmatprep.subr.bf16.mxu0 0
        %686 = vmatpush2.bf16.msra.mxu0 0
        %687 = vmatprep.subr.bf16.mxu0 0
        %688 = vmatpush2.bf16.msra.mxu0 0
        %689 = vmatprep.subr.bf16.mxu0 0
        %690 = vmatpush2.bf16.msra.mxu0 0
        %691 = vmatprep.mubr.bf16.mxu0 0
        %692 = vmatmul.mubr.bf16.gmra.mxu0 %v472
        %v693 = vpop.f32.mrf.mxu0
        %v694 = vadd.f32 0.0, %v693
        %v695 = vpop.f32.mrf.mxu0
        %v696 = vpop.f32.mrf.mxu0
        %v697 = vadd.f32 0.0, %v696
        %v698 = vpop.f32.mrf.mxu0
        %699 = vmatprep.mubr.bf16.mxu0 0
        %700 = vmatmul.mubr.bf16.gmra.mxu0 %v475
        %v701 = vpop.f32.mrf.mxu0
        %v702 = vadd.f32 0.0, %v701
        %v703 = vpop.f32.mrf.mxu0
        %v704 = vpop.f32.mrf.mxu0
        %v705 = vadd.f32 0.0, %v704
        %v706 = vpop.f32.mrf.mxu0
        %707 = vdwg.mxu0
        %v740 = vunpack.c.l.b16 %v395
        %v741 = vunpack.c.h.b16 %v395
        %v742 = vunpack.c.l.b16 %v396
        %v743 = vunpack.c.l.b16 %v397
        %v744 = vunpack.c.h.b16 %v397
        %v745 = vunpack.c.l.b16 %v398
        %v746 = vunpack.c.l.b16 %v399
        %v747 = vunpack.c.h.b16 %v399
        %v748 = vunpack.c.l.b16 %v400
        %v749 = vunpack.c.l.b16 %v401
        %v750 = vunpack.c.h.b16 %v401
        %v751 = vunpack.c.l.b16 %v402
        %v752 = vunpack.c.l.b16 %v403
        %v753 = vunpack.c.h.b16 %v403
        %v754 = vunpack.c.l.b16 %v404
        %v755 = vunpack.c.l.b16 %v405
        %v756 = vunpack.c.h.b16 %v405
        %v757 = vunpack.c.l.b16 %v406
        %v758 = vunpack.c.l.b16 %v407
        %v759 = vunpack.c.h.b16 %v407
        %v760 = vunpack.c.l.b16 %v408
        %v761 = vunpack.c.l.b16 %v409
        %v762 = vunpack.c.h.b16 %v409
        %v763 = vunpack.c.l.b16 %v410
        %v764 = vunpack.c.l.b16 %v411
        %v765 = vunpack.c.h.b16 %v411
        %v766 = vunpack.c.l.b16 %v412
        %v767 = vunpack.c.l.b16 %v413
        %v768 = vunpack.c.h.b16 %v413
        %v769 = vunpack.c.l.b16 %v414
        %v770 = vunpack.c.l.b16 %v415
        %v771 = vunpack.c.h.b16 %v415
        %v772 = vunpack.c.l.b16 %v416
        %v773 = vunpack.c.l.b16 %v417
        %v774 = vunpack.c.h.b16 %v417
        %v775 = vunpack.c.l.b16 %v418
        %v776 = vunpack.c.l.b16 %v419
        %v777 = vunpack.c.h.b16 %v419
        %v778 = vunpack.c.l.b16 %v420
        %v779 = vunpack.c.l.b16 %v421
        %v780 = vunpack.c.h.b16 %v421
        %v781 = vunpack.c.l.b16 %v422
        %v782 = vunpack.c.l.b16 %v423
        %v783 = vunpack.c.h.b16 %v423
        %v784 = vunpack.c.l.b16 %v424
        %v785 = vunpack.c.l.b16 %v425
        %v786 = vunpack.c.h.b16 %v425
        %v787 = vunpack.c.l.b16 %v426
        %v788 = vpack.c.b16 %v743, %v740
        %v789 = vpack.c.b16 %v744, %v741
        %v790 = vpack.c.b16 %v745, %v742
        %v791 = vpack.c.b16 %v749, %v746
        %v792 = vpack.c.b16 %v750, %v747
        %v793 = vpack.c.b16 %v751, %v748
        %v794 = vpack.c.b16 %v755, %v752
        %v795 = vpack.c.b16 %v756, %v753
        %v796 = vpack.c.b16 %v757, %v754
        %v797 = vpack.c.b16 %v761, %v758
        %v798 = vpack.c.b16 %v762, %v759
        %v799 = vpack.c.b16 %v763, %v760
        %v800 = vpack.c.b16 %v767, %v764
        %v801 = vpack.c.b16 %v768, %v765
        %v802 = vpack.c.b16 %v769, %v766
        %v803 = vpack.c.b16 %v773, %v770
        %v804 = vpack.c.b16 %v774, %v771
        %v805 = vpack.c.b16 %v775, %v772
        %v806 = vpack.c.b16 %v779, %v776
        %v807 = vpack.c.b16 %v780, %v777
        %v808 = vpack.c.b16 %v781, %v778
        %v809 = vpack.c.b16 %v785, %v782
        %v810 = vpack.c.b16 %v786, %v783
        %v811 = vpack.c.b16 %v787, %v784
        %836 = vmatprep.subr.bf16.mxu0 %v810
        %837 = vmatpush1.bf16.msra.mxu0 %v809
        %838 = vmatprep.subr.bf16.mxu0 %v807
        %839 = vmatpush1.bf16.msra.mxu0 %v806
        %840 = vmatprep.subr.bf16.mxu0 %v804
        %841 = vmatpush1.bf16.msra.mxu0 %v803
        %842 = vmatprep.subr.bf16.mxu0 %v801
        %843 = vmatpush1.bf16.msra.mxu0 %v800
        %844 = vmatprep.subr.bf16.mxu0 %v798
        %845 = vmatpush1.bf16.msra.mxu0 %v797
        %846 = vmatprep.subr.bf16.mxu0 %v795
        %847 = vmatpush1.bf16.msra.mxu0 %v794
        %848 = vmatprep.subr.bf16.mxu0 %v792
        %849 = vmatpush1.bf16.msra.mxu0 %v791
        %850 = vmatprep.subr.bf16.mxu0 %v789
        %851 = vmatpush1.bf16.msra.mxu0 %v788
        %852 = vmatprep.subr.bf16.mxu0 0
        %853 = vmatpush2.bf16.msra.mxu0 0
        %854 = vmatprep.subr.bf16.mxu0 0
        %855 = vmatpush2.bf16.msra.mxu0 0
        %856 = vmatprep.subr.bf16.mxu0 0
        %857 = vmatpush2.bf16.msra.mxu0 0
        %858 = vmatprep.subr.bf16.mxu0 0
        %859 = vmatpush2.bf16.msra.mxu0 0
        %860 = vmatprep.subr.bf16.mxu0 0
        %861 = vmatpush2.bf16.msra.mxu0 0
        %862 = vmatprep.subr.bf16.mxu0 0
        %863 = vmatpush2.bf16.msra.mxu0 0
        %864 = vmatprep.subr.bf16.mxu0 0
        %865 = vmatpush2.bf16.msra.mxu0 0
        %866 = vmatprep.subr.bf16.mxu0 0
        %867 = vmatpush2.bf16.msra.mxu0 0
        %868 = vmatprep.mubr.bf16.mxu0 0
        %869 = vmatmul.mubr.bf16.gmra.mxu0 %v393
        %v870 = vpop.f32.mrf.mxu0
        %v871 = vadd.f32 %v641, %v870
        %v872 = vpop.f32.mrf.mxu0
        %v873 = vadd.f32 %v643, %v872
        %v874 = vpop.f32.mrf.mxu0
        %v875 = vadd.f32 %v645, %v874
        %v876 = vpop.f32.mrf.mxu0
        %v877 = vadd.f32 %v647, %v876
        %878 = vmatprep.mubr.bf16.mxu0 0
        %879 = vmatmul.mubr.bf16.gmra.mxu0 %v394
        %v880 = vpop.f32.mrf.mxu0
        %v881 = vadd.f32 %v651, %v880
        %v882 = vpop.f32.mrf.mxu0
        %v883 = vadd.f32 %v653, %v882
        %v884 = vpop.f32.mrf.mxu0
        %v885 = vadd.f32 %v655, %v884
        %v886 = vpop.f32.mrf.mxu0
        %v887 = vadd.f32 %v657, %v886
        %888 = vdwg.mxu0
        %889 = vmatprep.subr.bf16.mxu0 0
        %890 = vmatpush1.bf16.msra.mxu0 %v811
        %891 = vmatprep.subr.bf16.mxu0 0
        %892 = vmatpush1.bf16.msra.mxu0 %v808
        %893 = vmatprep.subr.bf16.mxu0 0
        %894 = vmatpush1.bf16.msra.mxu0 %v805
        %895 = vmatprep.subr.bf16.mxu0 0
        %896 = vmatpush1.bf16.msra.mxu0 %v802
        %897 = vmatprep.subr.bf16.mxu0 0
        %898 = vmatpush1.bf16.msra.mxu0 %v799
        %899 = vmatprep.subr.bf16.mxu0 0
        %900 = vmatpush1.bf16.msra.mxu0 %v796
        %901 = vmatprep.subr.bf16.mxu0 0
        %902 = vmatpush1.bf16.msra.mxu0 %v793
        %903 = vmatprep.subr.bf16.mxu0 0
        %904 = vmatpush1.bf16.msra.mxu0 %v790
        %905 = vmatprep.subr.bf16.mxu0 0
        %906 = vmatpush2.bf16.msra.mxu0 0
        %907 = vmatprep.subr.bf16.mxu0 0
        %908 = vmatpush2.bf16.msra.mxu0 0
        %909 = vmatprep.subr.bf16.mxu0 0
        %910 = vmatpush2.bf16.msra.mxu0 0
        %911 = vmatprep.subr.bf16.mxu0 0
        %912 = vmatpush2.bf16.msra.mxu0 0
        %913 = vmatprep.subr.bf16.mxu0 0
        %914 = vmatpush2.bf16.msra.mxu0 0
        %915 = vmatprep.subr.bf16.mxu0 0
        %916 = vmatpush2.bf16.msra.mxu0 0
        %917 = vmatprep.subr.bf16.mxu0 0
        %918 = vmatpush2.bf16.msra.mxu0 0
        %919 = vmatprep.subr.bf16.mxu0 0
        %920 = vmatpush2.bf16.msra.mxu0 0
        %921 = vmatprep.mubr.bf16.mxu0 0
        %922 = vmatmul.mubr.bf16.gmra.mxu0 %v393
        %v923 = vpop.f32.mrf.mxu0
        %v924 = vadd.f32 %v694, %v923
        %v925 = vpop.f32.mrf.mxu0
        %v926 = vpop.f32.mrf.mxu0
        %v927 = vadd.f32 %v697, %v926
        %v928 = vpop.f32.mrf.mxu0
        %929 = vmatprep.mubr.bf16.mxu0 0
        %930 = vmatmul.mubr.bf16.gmra.mxu0 %v394
        %v931 = vpop.f32.mrf.mxu0
        %v932 = vadd.f32 %v702, %v931
        %v933 = vpop.f32.mrf.mxu0
        %v934 = vpop.f32.mrf.mxu0
        %v935 = vadd.f32 %v705, %v934
        %v936 = vpop.f32.mrf.mxu0
        %937 = vdwg.mxu0
        %s938 = scalar_lea.vmem %s1, 384
        %v939 = vld [vmem:[%s938] sm:$0xff]
        %v940 = vld [vmem:[%s938 + $0x8] sm:$0xf]
        %v941 = vld [vmem:[%s938 + $0xc] sm:$0xff]
        %v942 = vld [vmem:[%s938 + $0x14] sm:$0xf]
        %v943 = vld [vmem:[%s938 + $0x18] sm:$0xff]
        %v944 = vld [vmem:[%s938 + $0x20] sm:$0xf]
        %v945 = vld [vmem:[%s938 + $0x24] sm:$0xff]
        %v946 = vld [vmem:[%s938 + $0x2c] sm:$0xf]
        %v947 = vld [vmem:[%s938 + $0x30] sm:$0xff]
        %v948 = vld [vmem:[%s938 + $0x38] sm:$0xf]
        %v949 = vld [vmem:[%s938 + $0x3c] sm:$0xff]
        %v950 = vld [vmem:[%s938 + $0x44] sm:$0xf]
        %v951 = vld [vmem:[%s938 + $0x48] sm:$0xff]
        %v952 = vld [vmem:[%s938 + $0x50] sm:$0xf]
        %v953 = vld [vmem:[%s938 + $0x54] sm:$0xff]
        %v954 = vld [vmem:[%s938 + $0x5c] sm:$0xf]
        %v955 = vld [vmem:[%s938 + $0x60] sm:$0xff]
        %v956 = vld [vmem:[%s938 + $0x68] sm:$0xf]
        %v957 = vld [vmem:[%s938 + $0x6c] sm:$0xff]
        %v958 = vld [vmem:[%s938 + $0x74] sm:$0xf]
        %v959 = vld [vmem:[%s938 + $0x78] sm:$0xff]
        %v960 = vld [vmem:[%s938 + $0x80] sm:$0xf]
        %v961 = vld [vmem:[%s938 + $0x84] sm:$0xff]
        %v962 = vld [vmem:[%s938 + $0x8c] sm:$0xf]
        %v963 = vld [vmem:[%s938 + $0x90] sm:$0xff]
        %v964 = vld [vmem:[%s938 + $0x98] sm:$0xf]
        %v965 = vld [vmem:[%s938 + $0x9c] sm:$0xff]
        %v966 = vld [vmem:[%s938 + $0xa4] sm:$0xf]
        %v967 = vld [vmem:[%s938 + $0xa8] sm:$0xff]
        %v968 = vld [vmem:[%s938 + $0xb0] sm:$0xf]
        %v969 = vld [vmem:[%s938 + $0xb4] sm:$0xff]
        %v970 = vld [vmem:[%s938 + $0xbc] sm:$0xf]
        %vm973 = vcmask 1046528
        %v974 = vrot.slane %v393, 1
        %v975 = vrot.slane %v394, 1
        %v976 = vsel %vm973, %v974, %v975
        %v1011 = vunpack.c.l.b16 %v939
        %v1012 = vunpack.c.h.b16 %v939
        %v1013 = vunpack.c.l.b16 %v940
        %v1014 = vunpack.c.l.b16 %v941
        %v1015 = vunpack.c.h.b16 %v941
        %v1016 = vunpack.c.l.b16 %v942
        %v1017 = vunpack.c.l.b16 %v943
        %v1018 = vunpack.c.h.b16 %v943
        %v1019 = vunpack.c.l.b16 %v944
        %v1020 = vunpack.c.l.b16 %v945
        %v1021 = vunpack.c.h.b16 %v945
        %v1022 = vunpack.c.l.b16 %v946
        %v1023 = vunpack.c.l.b16 %v947
        %v1024 = vunpack.c.h.b16 %v947
        %v1025 = vunpack.c.l.b16 %v948
        %v1026 = vunpack.c.l.b16 %v949
        %v1027 = vunpack.c.h.b16 %v949
        %v1028 = vunpack.c.l.b16 %v950
        %v1029 = vunpack.c.l.b16 %v951
        %v1030 = vunpack.c.h.b16 %v951
        %v1031 = vunpack.c.l.b16 %v952
        %v1032 = vunpack.c.l.b16 %v953
        %v1033 = vunpack.c.h.b16 %v953
        %v1034 = vunpack.c.l.b16 %v954
        %v1035 = vunpack.c.l.b16 %v955
        %v1036 = vunpack.c.h.b16 %v955
        %v1037 = vunpack.c.l.b16 %v956
        %v1038 = vunpack.c.l.b16 %v957
        %v1039 = vunpack.c.h.b16 %v957
        %v1040 = vunpack.c.l.b16 %v958
        %v1041 = vunpack.c.l.b16 %v959
        %v1042 = vunpack.c.h.b16 %v959
        %v1043 = vunpack.c.l.b16 %v960
        %v1044 = vunpack.c.l.b16 %v961
        %v1045 = vunpack.c.h.b16 %v961
        %v1046 = vunpack.c.l.b16 %v962
        %v1047 = vunpack.c.l.b16 %v963
        %v1048 = vunpack.c.h.b16 %v963
        %v1049 = vunpack.c.l.b16 %v964
        %v1050 = vunpack.c.l.b16 %v965
        %v1051 = vunpack.c.h.b16 %v965
        %v1052 = vunpack.c.l.b16 %v966
        %v1053 = vunpack.c.l.b16 %v967
        %v1054 = vunpack.c.h.b16 %v967
        %v1055 = vunpack.c.l.b16 %v968
        %v1056 = vunpack.c.l.b16 %v969
        %v1057 = vunpack.c.h.b16 %v969
        %v1058 = vunpack.c.l.b16 %v970
        %v1059 = vpack.c.b16 %v1014, %v1011
        %v1060 = vpack.c.b16 %v1015, %v1012
        %v1061 = vpack.c.b16 %v1016, %v1013
        %v1062 = vpack.c.b16 %v1020, %v1017
        %v1063 = vpack.c.b16 %v1021, %v1018
        %v1064 = vpack.c.b16 %v1022, %v1019
        %v1065 = vpack.c.b16 %v1026, %v1023
        %v1066 = vpack.c.b16 %v1027, %v1024
        %v1067 = vpack.c.b16 %v1028, %v1025
        %v1068 = vpack.c.b16 %v1032, %v1029
        %v1069 = vpack.c.b16 %v1033, %v1030
        %v1070 = vpack.c.b16 %v1034, %v1031
        %v1071 = vpack.c.b16 %v1038, %v1035
        %v1072 = vpack.c.b16 %v1039, %v1036
        %v1073 = vpack.c.b16 %v1040, %v1037
        %v1074 = vpack.c.b16 %v1044, %v1041
        %v1075 = vpack.c.b16 %v1045, %v1042
        %v1076 = vpack.c.b16 %v1046, %v1043
        %v1077 = vpack.c.b16 %v1050, %v1047
        %v1078 = vpack.c.b16 %v1051, %v1048
        %v1079 = vpack.c.b16 %v1052, %v1049
        %v1080 = vpack.c.b16 %v1056, %v1053
        %v1081 = vpack.c.b16 %v1057, %v1054
        %v1082 = vpack.c.b16 %v1058, %v1055
        %1107 = vmatprep.subr.bf16.mxu0 %v1081
        %1108 = vmatpush1.bf16.msra.mxu0 %v1080
        %1109 = vmatprep.subr.bf16.mxu0 %v1078
        %1110 = vmatpush1.bf16.msra.mxu0 %v1077
        %1111 = vmatprep.subr.bf16.mxu0 %v1075
        %1112 = vmatpush1.bf16.msra.mxu0 %v1074
        %1113 = vmatprep.subr.bf16.mxu0 %v1072
        %1114 = vmatpush1.bf16.msra.mxu0 %v1071
        %1115 = vmatprep.subr.bf16.mxu0 %v1069
        %1116 = vmatpush1.bf16.msra.mxu0 %v1068
        %1117 = vmatprep.subr.bf16.mxu0 %v1066
        %1118 = vmatpush1.bf16.msra.mxu0 %v1065
        %1119 = vmatprep.subr.bf16.mxu0 %v1063
        %1120 = vmatpush1.bf16.msra.mxu0 %v1062
        %1121 = vmatprep.subr.bf16.mxu0 %v1060
        %1122 = vmatpush1.bf16.msra.mxu0 %v1059
        %1123 = vmatprep.subr.bf16.mxu0 0
        %1124 = vmatpush2.bf16.msra.mxu0 0
        %1125 = vmatprep.subr.bf16.mxu0 0
        %1126 = vmatpush2.bf16.msra.mxu0 0
        %1127 = vmatprep.subr.bf16.mxu0 0
        %1128 = vmatpush2.bf16.msra.mxu0 0
        %1129 = vmatprep.subr.bf16.mxu0 0
        %1130 = vmatpush2.bf16.msra.mxu0 0
        %1131 = vmatprep.subr.bf16.mxu0 0
        %1132 = vmatpush2.bf16.msra.mxu0 0
        %1133 = vmatprep.subr.bf16.mxu0 0
        %1134 = vmatpush2.bf16.msra.mxu0 0
        %1135 = vmatprep.subr.bf16.mxu0 0
        %1136 = vmatpush2.bf16.msra.mxu0 0
        %1137 = vmatprep.subr.bf16.mxu0 0
        %1138 = vmatpush2.bf16.msra.mxu0 0
        %1139 = vmatprep.mubr.bf16.mxu0 0
        %1140 = vmatmul.mubr.bf16.gmra.mxu0 %v976
        %v1141 = vpop.f32.mrf.mxu0
        %v1142 = vadd.f32 0.0, %v1141
        %v1143 = vpop.f32.mrf.mxu0
        %v1144 = vadd.f32 0.0, %v1143
        %v1145 = vpop.f32.mrf.mxu0
        %v1146 = vadd.f32 0.0, %v1145
        %v1147 = vpop.f32.mrf.mxu0
        %v1148 = vadd.f32 0.0, %v1147
        %1149 = vmatprep.mubr.bf16.mxu0 0
        %1150 = vmatmul.mubr.bf16.gmra.mxu0 %v975
        %v1151 = vpop.f32.mrf.mxu0
        %v1152 = vadd.f32 0.0, %v1151
        %v1153 = vpop.f32.mrf.mxu0
        %v1154 = vadd.f32 0.0, %v1153
        %v1155 = vpop.f32.mrf.mxu0
        %v1156 = vadd.f32 0.0, %v1155
        %v1157 = vpop.f32.mrf.mxu0
        %v1158 = vadd.f32 0.0, %v1157
        %1159 = vdwg.mxu0
        %1160 = vmatprep.subr.bf16.mxu0 0
        %1161 = vmatpush1.bf16.msra.mxu0 %v1082
        %1162 = vmatprep.subr.bf16.mxu0 0
        %1163 = vmatpush1.bf16.msra.mxu0 %v1079
        %1164 = vmatprep.subr.bf16.mxu0 0
        %1165 = vmatpush1.bf16.msra.mxu0 %v1076
        %1166 = vmatprep.subr.bf16.mxu0 0
        %1167 = vmatpush1.bf16.msra.mxu0 %v1073
        %1168 = vmatprep.subr.bf16.mxu0 0
        %1169 = vmatpush1.bf16.msra.mxu0 %v1070
        %1170 = vmatprep.subr.bf16.mxu0 0
        %1171 = vmatpush1.bf16.msra.mxu0 %v1067
        %1172 = vmatprep.subr.bf16.mxu0 0
        %1173 = vmatpush1.bf16.msra.mxu0 %v1064
        %1174 = vmatprep.subr.bf16.mxu0 0
        %1175 = vmatpush1.bf16.msra.mxu0 %v1061
        %1176 = vmatprep.subr.bf16.mxu0 0
        %1177 = vmatpush2.bf16.msra.mxu0 0
        %1178 = vmatprep.subr.bf16.mxu0 0
        %1179 = vmatpush2.bf16.msra.mxu0 0
        %1180 = vmatprep.subr.bf16.mxu0 0
        %1181 = vmatpush2.bf16.msra.mxu0 0
        %1182 = vmatprep.subr.bf16.mxu0 0
        %1183 = vmatpush2.bf16.msra.mxu0 0
        %1184 = vmatprep.subr.bf16.mxu0 0
        %1185 = vmatpush2.bf16.msra.mxu0 0
        %1186 = vmatprep.subr.bf16.mxu0 0
        %1187 = vmatpush2.bf16.msra.mxu0 0
        %1188 = vmatprep.subr.bf16.mxu0 0
        %1189 = vmatpush2.bf16.msra.mxu0 0
        %1190 = vmatprep.subr.bf16.mxu0 0
        %1191 = vmatpush2.bf16.msra.mxu0 0
        %1192 = vmatprep.mubr.bf16.mxu0 0
        %1193 = vmatmul.mubr.bf16.gmra.mxu0 %v976
        %v1194 = vpop.f32.mrf.mxu0
        %v1195 = vadd.f32 0.0, %v1194
        %v1196 = vpop.f32.mrf.mxu0
        %v1197 = vpop.f32.mrf.mxu0
        %v1198 = vadd.f32 0.0, %v1197
        %v1199 = vpop.f32.mrf.mxu0
        %1200 = vmatprep.mubr.bf16.mxu0 0
        %1201 = vmatmul.mubr.bf16.gmra.mxu0 %v975
        %v1202 = vpop.f32.mrf.mxu0
        %v1203 = vadd.f32 0.0, %v1202
        %v1204 = vpop.f32.mrf.mxu0
        %v1205 = vpop.f32.mrf.mxu0
        %v1206 = vadd.f32 0.0, %v1205
        %v1207 = vpop.f32.mrf.mxu0
        %1208 = vdwg.mxu0
        %v1209 = vadd.f32 %v871, %v1142
        %v1210 = vadd.f32 %v873, %v1144
        %v1211 = vadd.f32 %v924, %v1195
        %v1212 = vadd.f32 %v875, %v1146
        %v1213 = vadd.f32 %v877, %v1148
        %v1214 = vadd.f32 %v927, %v1198
        %v1215 = vadd.f32 %v881, %v1152
        %v1216 = vadd.f32 %v883, %v1154
        %v1217 = vadd.f32 %v932, %v1203
        %v1218 = vadd.f32 %v885, %v1156
        %v1219 = vadd.f32 %v887, %v1158
        %v1220 = vadd.f32 %v935, %v1206
        %s1221 = scalar_lea.vmem %s1, 576
        %v1222 = vld [vmem:[%s1221] sm:$0xff]
        %v1223 = vld [vmem:[%s1221 + $0x8] sm:$0xf]
        %v1224 = vld [vmem:[%s1221 + $0xc] sm:$0xff]
        %v1225 = vld [vmem:[%s1221 + $0x14] sm:$0xf]
        %v1226 = vld [vmem:[%s1221 + $0x18] sm:$0xff]
        %v1227 = vld [vmem:[%s1221 + $0x20] sm:$0xf]
        %v1228 = vld [vmem:[%s1221 + $0x24] sm:$0xff]
        %v1229 = vld [vmem:[%s1221 + $0x2c] sm:$0xf]
        %v1230 = vld [vmem:[%s1221 + $0x30] sm:$0xff]
        %v1231 = vld [vmem:[%s1221 + $0x38] sm:$0xf]
        %v1232 = vld [vmem:[%s1221 + $0x3c] sm:$0xff]
        %v1233 = vld [vmem:[%s1221 + $0x44] sm:$0xf]
        %v1234 = vld [vmem:[%s1221 + $0x48] sm:$0xff]
        %v1235 = vld [vmem:[%s1221 + $0x50] sm:$0xf]
        %v1236 = vld [vmem:[%s1221 + $0x54] sm:$0xff]
        %v1237 = vld [vmem:[%s1221 + $0x5c] sm:$0xf]
        %v1238 = vld [vmem:[%s1221 + $0x60] sm:$0xff]
        %v1239 = vld [vmem:[%s1221 + $0x68] sm:$0xf]
        %v1240 = vld [vmem:[%s1221 + $0x6c] sm:$0xff]
        %v1241 = vld [vmem:[%s1221 + $0x74] sm:$0xf]
        %v1242 = vld [vmem:[%s1221 + $0x78] sm:$0xff]
        %v1243 = vld [vmem:[%s1221 + $0x80] sm:$0xf]
        %v1244 = vld [vmem:[%s1221 + $0x84] sm:$0xff]
        %v1245 = vld [vmem:[%s1221 + $0x8c] sm:$0xf]
        %v1246 = vld [vmem:[%s1221 + $0x90] sm:$0xff]
        %v1247 = vld [vmem:[%s1221 + $0x98] sm:$0xf]
        %v1248 = vld [vmem:[%s1221 + $0x9c] sm:$0xff]
        %v1249 = vld [vmem:[%s1221 + $0xa4] sm:$0xf]
        %v1250 = vld [vmem:[%s1221 + $0xa8] sm:$0xff]
        %v1251 = vld [vmem:[%s1221 + $0xb0] sm:$0xf]
        %v1252 = vld [vmem:[%s1221 + $0xb4] sm:$0xff]
        %v1253 = vld [vmem:[%s1221 + $0xbc] sm:$0xf]
        %vm1254 = vsmask.f32 6400
        %v1255 = vrot.slane %v462, 1
        %v1256 = vrot.slane %v464, 2
        %v1257 = vor.u32 %v1255, %v1256
        %v1258 = vrot.slane %v473, 1
        %v1259 = vrot.slane %v469, 2
        %v1260 = vor.u32 %v1258, %v1259
        %v1261 = vsel %vm1254, %v1257, %v1260
        %v1296 = vunpack.c.l.b16 %v1222
        %v1297 = vunpack.c.h.b16 %v1222
        %v1298 = vunpack.c.l.b16 %v1223
        %v1299 = vunpack.c.l.b16 %v1224
        %v1300 = vunpack.c.h.b16 %v1224
        %v1301 = vunpack.c.l.b16 %v1225
        %v1302 = vunpack.c.l.b16 %v1226
        %v1303 = vunpack.c.h.b16 %v1226
        %v1304 = vunpack.c.l.b16 %v1227
        %v1305 = vunpack.c.l.b16 %v1228
        %v1306 = vunpack.c.h.b16 %v1228
        %v1307 = vunpack.c.l.b16 %v1229
        %v1308 = vunpack.c.l.b16 %v1230
        %v1309 = vunpack.c.h.b16 %v1230
        %v1310 = vunpack.c.l.b16 %v1231
        %v1311 = vunpack.c.l.b16 %v1232
        %v1312 = vunpack.c.h.b16 %v1232
        %v1313 = vunpack.c.l.b16 %v1233
        %v1314 = vunpack.c.l.b16 %v1234
        %v1315 = vunpack.c.h.b16 %v1234
        %v1316 = vunpack.c.l.b16 %v1235
        %v1317 = vunpack.c.l.b16 %v1236
        %v1318 = vunpack.c.h.b16 %v1236
        %v1319 = vunpack.c.l.b16 %v1237
        %v1320 = vunpack.c.l.b16 %v1238
        %v1321 = vunpack.c.h.b16 %v1238
        %v1322 = vunpack.c.l.b16 %v1239
        %v1323 = vunpack.c.l.b16 %v1240
        %v1324 = vunpack.c.h.b16 %v1240
        %v1325 = vunpack.c.l.b16 %v1241
        %v1326 = vunpack.c.l.b16 %v1242
        %v1327 = vunpack.c.h.b16 %v1242
        %v1328 = vunpack.c.l.b16 %v1243
        %v1329 = vunpack.c.l.b16 %v1244
        %v1330 = vunpack.c.h.b16 %v1244
        %v1331 = vunpack.c.l.b16 %v1245
        %v1332 = vunpack.c.l.b16 %v1246
        %v1333 = vunpack.c.h.b16 %v1246
        %v1334 = vunpack.c.l.b16 %v1247
        %v1335 = vunpack.c.l.b16 %v1248
        %v1336 = vunpack.c.h.b16 %v1248
        %v1337 = vunpack.c.l.b16 %v1249
        %v1338 = vunpack.c.l.b16 %v1250
        %v1339 = vunpack.c.h.b16 %v1250
        %v1340 = vunpack.c.l.b16 %v1251
        %v1341 = vunpack.c.l.b16 %v1252
        %v1342 = vunpack.c.h.b16 %v1252
        %v1343 = vunpack.c.l.b16 %v1253
        %v1344 = vpack.c.b16 %v1299, %v1296
        %v1345 = vpack.c.b16 %v1300, %v1297
        %v1346 = vpack.c.b16 %v1301, %v1298
        %v1347 = vpack.c.b16 %v1305, %v1302
        %v1348 = vpack.c.b16 %v1306, %v1303
        %v1349 = vpack.c.b16 %v1307, %v1304
        %v1350 = vpack.c.b16 %v1311, %v1308
        %v1351 = vpack.c.b16 %v1312, %v1309
        %v1352 = vpack.c.b16 %v1313, %v1310
        %v1353 = vpack.c.b16 %v1317, %v1314
        %v1354 = vpack.c.b16 %v1318, %v1315
        %v1355 = vpack.c.b16 %v1319, %v1316
        %v1356 = vpack.c.b16 %v1323, %v1320
        %v1357 = vpack.c.b16 %v1324, %v1321
        %v1358 = vpack.c.b16 %v1325, %v1322
        %v1359 = vpack.c.b16 %v1329, %v1326
        %v1360 = vpack.c.b16 %v1330, %v1327
        %v1361 = vpack.c.b16 %v1331, %v1328
        %v1362 = vpack.c.b16 %v1335, %v1332
        %v1363 = vpack.c.b16 %v1336, %v1333
        %v1364 = vpack.c.b16 %v1337, %v1334
        %v1365 = vpack.c.b16 %v1341, %v1338
        %v1366 = vpack.c.b16 %v1342, %v1339
        %v1367 = vpack.c.b16 %v1343, %v1340
        %1392 = vmatprep.subr.bf16.mxu0 %v1366
        %1393 = vmatpush1.bf16.msra.mxu0 %v1365
        %1394 = vmatprep.subr.bf16.mxu0 %v1363
        %1395 = vmatpush1.bf16.msra.mxu0 %v1362
        %1396 = vmatprep.subr.bf16.mxu0 %v1360
        %1397 = vmatpush1.bf16.msra.mxu0 %v1359
        %1398 = vmatprep.subr.bf16.mxu0 %v1357
        %1399 = vmatpush1.bf16.msra.mxu0 %v1356
        %1400 = vmatprep.subr.bf16.mxu0 %v1354
        %1401 = vmatpush1.bf16.msra.mxu0 %v1353
        %1402 = vmatprep.subr.bf16.mxu0 %v1351
        %1403 = vmatpush1.bf16.msra.mxu0 %v1350
        %1404 = vmatprep.subr.bf16.mxu0 %v1348
        %1405 = vmatpush1.bf16.msra.mxu0 %v1347
        %1406 = vmatprep.subr.bf16.mxu0 %v1345
        %1407 = vmatpush1.bf16.msra.mxu0 %v1344
        %1408 = vmatprep.subr.bf16.mxu0 0
        %1409 = vmatpush2.bf16.msra.mxu0 0
        %1410 = vmatprep.subr.bf16.mxu0 0
        %1411 = vmatpush2.bf16.msra.mxu0 0
        %1412 = vmatprep.subr.bf16.mxu0 0
        %1413 = vmatpush2.bf16.msra.mxu0 0
        %1414 = vmatprep.subr.bf16.mxu0 0
        %1415 = vmatpush2.bf16.msra.mxu0 0
        %1416 = vmatprep.subr.bf16.mxu0 0
        %1417 = vmatpush2.bf16.msra.mxu0 0
        %1418 = vmatprep.subr.bf16.mxu0 0
        %1419 = vmatpush2.bf16.msra.mxu0 0
        %1420 = vmatprep.subr.bf16.mxu0 0
        %1421 = vmatpush2.bf16.msra.mxu0 0
        %1422 = vmatprep.subr.bf16.mxu0 0
        %1423 = vmatpush2.bf16.msra.mxu0 0
        %1424 = vmatprep.mubr.bf16.mxu0 0
        %1425 = vmatmul.mubr.bf16.gmra.mxu0 %v1261
        %v1426 = vpop.f32.mrf.mxu0
        %v1427 = vadd.f32 0.0, %v1426
        %v1428 = vpop.f32.mrf.mxu0
        %v1429 = vadd.f32 0.0, %v1428
        %v1430 = vpop.f32.mrf.mxu0
        %v1431 = vadd.f32 0.0, %v1430
        %v1432 = vpop.f32.mrf.mxu0
        %v1433 = vadd.f32 0.0, %v1432
        %1434 = vmatprep.mubr.bf16.mxu0 0
        %1435 = vmatmul.mubr.bf16.gmra.mxu0 %v1260
        %v1436 = vpop.f32.mrf.mxu0
        %v1437 = vadd.f32 0.0, %v1436
        %v1438 = vpop.f32.mrf.mxu0
        %v1439 = vadd.f32 0.0, %v1438
        %v1440 = vpop.f32.mrf.mxu0
        %v1441 = vadd.f32 0.0, %v1440
        %v1442 = vpop.f32.mrf.mxu0
        %v1443 = vadd.f32 0.0, %v1442
        %1444 = vdwg.mxu0
        %1445 = vmatprep.subr.bf16.mxu0 0
        %1446 = vmatpush1.bf16.msra.mxu0 %v1367
        %1447 = vmatprep.subr.bf16.mxu0 0
        %1448 = vmatpush1.bf16.msra.mxu0 %v1364
        %1449 = vmatprep.subr.bf16.mxu0 0
        %1450 = vmatpush1.bf16.msra.mxu0 %v1361
        %1451 = vmatprep.subr.bf16.mxu0 0
        %1452 = vmatpush1.bf16.msra.mxu0 %v1358
        %1453 = vmatprep.subr.bf16.mxu0 0
        %1454 = vmatpush1.bf16.msra.mxu0 %v1355
        %1455 = vmatprep.subr.bf16.mxu0 0
        %1456 = vmatpush1.bf16.msra.mxu0 %v1352
        %1457 = vmatprep.subr.bf16.mxu0 0
        %1458 = vmatpush1.bf16.msra.mxu0 %v1349
        %1459 = vmatprep.subr.bf16.mxu0 0
        %1460 = vmatpush1.bf16.msra.mxu0 %v1346
        %1461 = vmatprep.subr.bf16.mxu0 0
        %1462 = vmatpush2.bf16.msra.mxu0 0
        %1463 = vmatprep.subr.bf16.mxu0 0
        %1464 = vmatpush2.bf16.msra.mxu0 0
        %1465 = vmatprep.subr.bf16.mxu0 0
        %1466 = vmatpush2.bf16.msra.mxu0 0
        %1467 = vmatprep.subr.bf16.mxu0 0
        %1468 = vmatpush2.bf16.msra.mxu0 0
        %1469 = vmatprep.subr.bf16.mxu0 0
        %1470 = vmatpush2.bf16.msra.mxu0 0
        %1471 = vmatprep.subr.bf16.mxu0 0
        %1472 = vmatpush2.bf16.msra.mxu0 0
        %1473 = vmatprep.subr.bf16.mxu0 0
        %1474 = vmatpush2.bf16.msra.mxu0 0
        %1475 = vmatprep.subr.bf16.mxu0 0
        %1476 = vmatpush2.bf16.msra.mxu0 0
        %1477 = vmatprep.mubr.bf16.mxu0 0
        %1478 = vmatmul.mubr.bf16.gmra.mxu0 %v1261
        %v1479 = vpop.f32.mrf.mxu0
        %v1480 = vadd.f32 0.0, %v1479
        %v1481 = vpop.f32.mrf.mxu0
        %v1482 = vpop.f32.mrf.mxu0
        %v1483 = vadd.f32 0.0, %v1482
        %v1484 = vpop.f32.mrf.mxu0
        %1485 = vmatprep.mubr.bf16.mxu0 0
        %1486 = vmatmul.mubr.bf16.gmra.mxu0 %v1260
        %v1487 = vpop.f32.mrf.mxu0
        %v1488 = vadd.f32 0.0, %v1487
        %v1489 = vpop.f32.mrf.mxu0
        %v1490 = vpop.f32.mrf.mxu0
        %v1491 = vadd.f32 0.0, %v1490
        %v1492 = vpop.f32.mrf.mxu0
        %1493 = vdwg.mxu0
        %v1494 = vadd.f32 %v1209, %v1427
        %v1495 = vadd.f32 %v1210, %v1429
        %v1496 = vadd.f32 %v1211, %v1480
        %v1497 = vadd.f32 %v1212, %v1431
        %v1498 = vadd.f32 %v1213, %v1433
        %v1499 = vadd.f32 %v1214, %v1483
        %v1500 = vadd.f32 %v1215, %v1437
        %v1501 = vadd.f32 %v1216, %v1439
        %v1502 = vadd.f32 %v1217, %v1488
        %v1503 = vadd.f32 %v1218, %v1441
        %v1504 = vadd.f32 %v1219, %v1443
        %v1505 = vadd.f32 %v1220, %v1491
        %s1506 = scalar_lea.vmem %s1, 768
        %v1507 = vld [vmem:[%s1506] sm:$0xff]
        %v1508 = vld [vmem:[%s1506 + $0x8] sm:$0xf]
        %v1509 = vld [vmem:[%s1506 + $0xc] sm:$0xff]
        %v1510 = vld [vmem:[%s1506 + $0x14] sm:$0xf]
        %v1511 = vld [vmem:[%s1506 + $0x18] sm:$0xff]
        %v1512 = vld [vmem:[%s1506 + $0x20] sm:$0xf]
        %v1513 = vld [vmem:[%s1506 + $0x24] sm:$0xff]
        %v1514 = vld [vmem:[%s1506 + $0x2c] sm:$0xf]
        %v1515 = vld [vmem:[%s1506 + $0x30] sm:$0xff]
        %v1516 = vld [vmem:[%s1506 + $0x38] sm:$0xf]
        %v1517 = vld [vmem:[%s1506 + $0x3c] sm:$0xff]
        %v1518 = vld [vmem:[%s1506 + $0x44] sm:$0xf]
        %v1519 = vld [vmem:[%s1506 + $0x48] sm:$0xff]
        %v1520 = vld [vmem:[%s1506 + $0x50] sm:$0xf]
        %v1521 = vld [vmem:[%s1506 + $0x54] sm:$0xff]
        %v1522 = vld [vmem:[%s1506 + $0x5c] sm:$0xf]
        %v1523 = vld [vmem:[%s1506 + $0x60] sm:$0xff]
        %v1524 = vld [vmem:[%s1506 + $0x68] sm:$0xf]
        %v1525 = vld [vmem:[%s1506 + $0x6c] sm:$0xff]
        %v1526 = vld [vmem:[%s1506 + $0x74] sm:$0xf]
        %v1527 = vld [vmem:[%s1506 + $0x78] sm:$0xff]
        %v1528 = vld [vmem:[%s1506 + $0x80] sm:$0xf]
        %v1529 = vld [vmem:[%s1506 + $0x84] sm:$0xff]
        %v1530 = vld [vmem:[%s1506 + $0x8c] sm:$0xf]
        %v1531 = vld [vmem:[%s1506 + $0x90] sm:$0xff]
        %v1532 = vld [vmem:[%s1506 + $0x98] sm:$0xf]
        %v1533 = vld [vmem:[%s1506 + $0x9c] sm:$0xff]
        %v1534 = vld [vmem:[%s1506 + $0xa4] sm:$0xf]
        %v1535 = vld [vmem:[%s1506 + $0xa8] sm:$0xff]
        %v1536 = vld [vmem:[%s1506 + $0xb0] sm:$0xf]
        %v1537 = vld [vmem:[%s1506 + $0xb4] sm:$0xff]
        %v1538 = vld [vmem:[%s1506 + $0xbc] sm:$0xf]
        %vm1539 = vcmask 1045504
        %v1540 = vrot.slane %v393, 2
        %v1541 = vrot.slane %v394, 2
        %v1542 = vsel %vm1539, %v1540, %v1541
        %v1577 = vunpack.c.l.b16 %v1507
        %v1578 = vunpack.c.h.b16 %v1507
        %v1579 = vunpack.c.l.b16 %v1508
        %v1580 = vunpack.c.l.b16 %v1509
        %v1581 = vunpack.c.h.b16 %v1509
        %v1582 = vunpack.c.l.b16 %v1510
        %v1583 = vunpack.c.l.b16 %v1511
        %v1584 = vunpack.c.h.b16 %v1511
        %v1585 = vunpack.c.l.b16 %v1512
        %v1586 = vunpack.c.l.b16 %v1513
        %v1587 = vunpack.c.h.b16 %v1513
        %v1588 = vunpack.c.l.b16 %v1514
        %v1589 = vunpack.c.l.b16 %v1515
        %v1590 = vunpack.c.h.b16 %v1515
        %v1591 = vunpack.c.l.b16 %v1516
        %v1592 = vunpack.c.l.b16 %v1517
        %v1593 = vunpack.c.h.b16 %v1517
        %v1594 = vunpack.c.l.b16 %v1518
        %v1595 = vunpack.c.l.b16 %v1519
        %v1596 = vunpack.c.h.b16 %v1519
        %v1597 = vunpack.c.l.b16 %v1520
        %v1598 = vunpack.c.l.b16 %v1521
        %v1599 = vunpack.c.h.b16 %v1521
        %v1600 = vunpack.c.l.b16 %v1522
        %v1601 = vunpack.c.l.b16 %v1523
        %v1602 = vunpack.c.h.b16 %v1523
        %v1603 = vunpack.c.l.b16 %v1524
        %v1604 = vunpack.c.l.b16 %v1525
        %v1605 = vunpack.c.h.b16 %v1525
        %v1606 = vunpack.c.l.b16 %v1526
        %v1607 = vunpack.c.l.b16 %v1527
        %v1608 = vunpack.c.h.b16 %v1527
        %v1609 = vunpack.c.l.b16 %v1528
        %v1610 = vunpack.c.l.b16 %v1529
        %v1611 = vunpack.c.h.b16 %v1529
        %v1612 = vunpack.c.l.b16 %v1530
        %v1613 = vunpack.c.l.b16 %v1531
        %v1614 = vunpack.c.h.b16 %v1531
        %v1615 = vunpack.c.l.b16 %v1532
        %v1616 = vunpack.c.l.b16 %v1533
        %v1617 = vunpack.c.h.b16 %v1533
        %v1618 = vunpack.c.l.b16 %v1534
        %v1619 = vunpack.c.l.b16 %v1535
        %v1620 = vunpack.c.h.b16 %v1535
        %v1621 = vunpack.c.l.b16 %v1536
        %v1622 = vunpack.c.l.b16 %v1537
        %v1623 = vunpack.c.h.b16 %v1537
        %v1624 = vunpack.c.l.b16 %v1538
        %v1625 = vpack.c.b16 %v1580, %v1577
        %v1626 = vpack.c.b16 %v1581, %v1578
        %v1627 = vpack.c.b16 %v1582, %v1579
        %v1628 = vpack.c.b16 %v1586, %v1583
        %v1629 = vpack.c.b16 %v1587, %v1584
        %v1630 = vpack.c.b16 %v1588, %v1585
        %v1631 = vpack.c.b16 %v1592, %v1589
        %v1632 = vpack.c.b16 %v1593, %v1590
        %v1633 = vpack.c.b16 %v1594, %v1591
        %v1634 = vpack.c.b16 %v1598, %v1595
        %v1635 = vpack.c.b16 %v1599, %v1596
        %v1636 = vpack.c.b16 %v1600, %v1597
        %v1637 = vpack.c.b16 %v1604, %v1601
        %v1638 = vpack.c.b16 %v1605, %v1602
        %v1639 = vpack.c.b16 %v1606, %v1603
        %v1640 = vpack.c.b16 %v1610, %v1607
        %v1641 = vpack.c.b16 %v1611, %v1608
        %v1642 = vpack.c.b16 %v1612, %v1609
        %v1643 = vpack.c.b16 %v1616, %v1613
        %v1644 = vpack.c.b16 %v1617, %v1614
        %v1645 = vpack.c.b16 %v1618, %v1615
        %v1646 = vpack.c.b16 %v1622, %v1619
        %v1647 = vpack.c.b16 %v1623, %v1620
        %v1648 = vpack.c.b16 %v1624, %v1621
        %1673 = vmatprep.subr.bf16.mxu0 %v1647
        %1674 = vmatpush1.bf16.msra.mxu0 %v1646
        %1675 = vmatprep.subr.bf16.mxu0 %v1644
        %1676 = vmatpush1.bf16.msra.mxu0 %v1643
        %1677 = vmatprep.subr.bf16.mxu0 %v1641
        %1678 = vmatpush1.bf16.msra.mxu0 %v1640
        %1679 = vmatprep.subr.bf16.mxu0 %v1638
        %1680 = vmatpush1.bf16.msra.mxu0 %v1637
        %1681 = vmatprep.subr.bf16.mxu0 %v1635
        %1682 = vmatpush1.bf16.msra.mxu0 %v1634
        %1683 = vmatprep.subr.bf16.mxu0 %v1632
        %1684 = vmatpush1.bf16.msra.mxu0 %v1631
        %1685 = vmatprep.subr.bf16.mxu0 %v1629
        %1686 = vmatpush1.bf16.msra.mxu0 %v1628
        %1687 = vmatprep.subr.bf16.mxu0 %v1626
        %1688 = vmatpush1.bf16.msra.mxu0 %v1625
        %1689 = vmatprep.subr.bf16.mxu0 0
        %1690 = vmatpush2.bf16.msra.mxu0 0
        %1691 = vmatprep.subr.bf16.mxu0 0
        %1692 = vmatpush2.bf16.msra.mxu0 0
        %1693 = vmatprep.subr.bf16.mxu0 0
        %1694 = vmatpush2.bf16.msra.mxu0 0
        %1695 = vmatprep.subr.bf16.mxu0 0
        %1696 = vmatpush2.bf16.msra.mxu0 0
        %1697 = vmatprep.subr.bf16.mxu0 0
        %1698 = vmatpush2.bf16.msra.mxu0 0
        %1699 = vmatprep.subr.bf16.mxu0 0
        %1700 = vmatpush2.bf16.msra.mxu0 0
        %1701 = vmatprep.subr.bf16.mxu0 0
        %1702 = vmatpush2.bf16.msra.mxu0 0
        %1703 = vmatprep.subr.bf16.mxu0 0
        %1704 = vmatpush2.bf16.msra.mxu0 0
        %1705 = vmatprep.mubr.bf16.mxu0 0
        %1706 = vmatmul.mubr.bf16.gmra.mxu0 %v1542
        %v1707 = vpop.f32.mrf.mxu0
        %v1708 = vadd.f32 0.0, %v1707
        %v1709 = vpop.f32.mrf.mxu0
        %v1710 = vadd.f32 0.0, %v1709
        %v1711 = vpop.f32.mrf.mxu0
        %v1712 = vadd.f32 0.0, %v1711
        %v1713 = vpop.f32.mrf.mxu0
        %v1714 = vadd.f32 0.0, %v1713
        %1715 = vmatprep.mubr.bf16.mxu0 0
        %1716 = vmatmul.mubr.bf16.gmra.mxu0 %v1541
        %v1717 = vpop.f32.mrf.mxu0
        %v1718 = vadd.f32 0.0, %v1717
        %v1719 = vpop.f32.mrf.mxu0
        %v1720 = vadd.f32 0.0, %v1719
        %v1721 = vpop.f32.mrf.mxu0
        %v1722 = vadd.f32 0.0, %v1721
        %v1723 = vpop.f32.mrf.mxu0
        %v1724 = vadd.f32 0.0, %v1723
        %1725 = vdwg.mxu0
        %1726 = vmatprep.subr.bf16.mxu0 0
        %1727 = vmatpush1.bf16.msra.mxu0 %v1648
        %1728 = vmatprep.subr.bf16.mxu0 0
        %1729 = vmatpush1.bf16.msra.mxu0 %v1645
        %1730 = vmatprep.subr.bf16.mxu0 0
        %1731 = vmatpush1.bf16.msra.mxu0 %v1642
        %1732 = vmatprep.subr.bf16.mxu0 0
        %1733 = vmatpush1.bf16.msra.mxu0 %v1639
        %1734 = vmatprep.subr.bf16.mxu0 0
        %1735 = vmatpush1.bf16.msra.mxu0 %v1636
        %1736 = vmatprep.subr.bf16.mxu0 0
        %1737 = vmatpush1.bf16.msra.mxu0 %v1633
        %1738 = vmatprep.subr.bf16.mxu0 0
        %1739 = vmatpush1.bf16.msra.mxu0 %v1630
        %1740 = vmatprep.subr.bf16.mxu0 0
        %1741 = vmatpush1.bf16.msra.mxu0 %v1627
        %1742 = vmatprep.subr.bf16.mxu0 0
        %1743 = vmatpush2.bf16.msra.mxu0 0
        %1744 = vmatprep.subr.bf16.mxu0 0
        %1745 = vmatpush2.bf16.msra.mxu0 0
        %1746 = vmatprep.subr.bf16.mxu0 0
        %1747 = vmatpush2.bf16.msra.mxu0 0
        %1748 = vmatprep.subr.bf16.mxu0 0
        %1749 = vmatpush2.bf16.msra.mxu0 0
        %1750 = vmatprep.subr.bf16.mxu0 0
        %1751 = vmatpush2.bf16.msra.mxu0 0
        %1752 = vmatprep.subr.bf16.mxu0 0
        %1753 = vmatpush2.bf16.msra.mxu0 0
        %1754 = vmatprep.subr.bf16.mxu0 0
        %1755 = vmatpush2.bf16.msra.mxu0 0
        %1756 = vmatprep.subr.bf16.mxu0 0
        %1757 = vmatpush2.bf16.msra.mxu0 0
        %1758 = vmatprep.mubr.bf16.mxu0 0
        %1759 = vmatmul.mubr.bf16.gmra.mxu0 %v1542
        %v1760 = vpop.f32.mrf.mxu0
        %v1761 = vadd.f32 0.0, %v1760
        %v1762 = vpop.f32.mrf.mxu0
        %v1763 = vpop.f32.mrf.mxu0
        %v1764 = vadd.f32 0.0, %v1763
        %v1765 = vpop.f32.mrf.mxu0
        %1766 = vmatprep.mubr.bf16.mxu0 0
        %1767 = vmatmul.mubr.bf16.gmra.mxu0 %v1541
        %v1768 = vpop.f32.mrf.mxu0
        %v1769 = vadd.f32 0.0, %v1768
        %v1770 = vpop.f32.mrf.mxu0
        %v1771 = vpop.f32.mrf.mxu0
        %v1772 = vadd.f32 0.0, %v1771
        %v1773 = vpop.f32.mrf.mxu0
        %1774 = vdwg.mxu0
        %v1775 = vadd.f32 %v1494, %v1708
        %v1776 = vadd.f32 %v1495, %v1710
        %v1777 = vadd.f32 %v1496, %v1761
        %v1778 = vadd.f32 %v1497, %v1712
        %v1779 = vadd.f32 %v1498, %v1714
        %v1780 = vadd.f32 %v1499, %v1764
        %v1781 = vadd.f32 %v1500, %v1718
        %v1782 = vadd.f32 %v1501, %v1720
        %v1783 = vadd.f32 %v1502, %v1769
        %v1784 = vadd.f32 %v1503, %v1722
        %v1785 = vadd.f32 %v1504, %v1724
        %v1786 = vadd.f32 %v1505, %v1772
        %v1787 = vld [vmem:[%s2] sm:$0x7]
        %v1789 = vlaneseq
        %v1790 = vshrl.u32 %v1789, 7
        %v1791 = vsub.s32 0, %v1790
        %v1792 = vrot.slane %v1787, %v1791
        %v1793 = vlaneseq
        %v1794 = vshrl.u32 %v1793, 7
        %v1795 = vsub.s32 1, %v1794
        %v1796 = vrot.slane %v1787, %v1795
        %v1797 = vlaneseq
        %v1798 = vshrl.u32 %v1797, 7
        %v1799 = vsub.s32 2, %v1798
        %v1800 = vrot.slane %v1787, %v1799
        %v1804 = vadd.f32 %v1775, %v1792
        %v1805 = vadd.f32 %v1776, %v1796
        %v1806 = vadd.f32 %v1777, %v1800
        %v1807 = vadd.f32 %v1778, %v1792
        %v1808 = vadd.f32 %v1779, %v1796
        %v1809 = vadd.f32 %v1780, %v1800
        %v1810 = vadd.f32 %v1781, %v1792
        %v1811 = vadd.f32 %v1782, %v1796
        %v1812 = vadd.f32 %v1783, %v1800
        %v1813 = vadd.f32 %v1784, %v1792
        %v1814 = vadd.f32 %v1785, %v1796
        %v1815 = vadd.f32 %v1786, %v1800
        %v1816 = vmax.f32 %v1804, 0.0
        %v1817 = vmax.f32 %v1805, 0.0
        %v1818 = vmax.f32 %v1806, 0.0
        %v1819 = vmax.f32 %v1807, 0.0
        %v1820 = vmax.f32 %v1808, 0.0
        %v1821 = vmax.f32 %v1809, 0.0
        %v1822 = vmax.f32 %v1810, 0.0
        %v1823 = vmax.f32 %v1811, 0.0
        %v1824 = vmax.f32 %v1812, 0.0
        %v1825 = vmax.f32 %v1813, 0.0
        %v1826 = vmax.f32 %v1814, 0.0
        %v1827 = vmax.f32 %v1815, 0.0
        %vm1840 = vcmask 1046528
        %v1841 = vrot.slane %v1816, 1
        %v1842 = vrot.slane %v1819, 1
        %v1843 = vsel %vm1840, %v1841, %v1842
        %v1844 = vrot.slane %v1817, 1
        %v1845 = vrot.slane %v1820, 1
        %v1846 = vsel %vm1840, %v1844, %v1845
        %v1847 = vrot.slane %v1818, 1
        %v1848 = vrot.slane %v1821, 1
        %v1849 = vsel %vm1840, %v1847, %v1848
        %v1850 = vrot.slane %v1822, 1
        %v1851 = vsel %vm1840, %v1842, %v1850
        %v1852 = vrot.slane %v1823, 1
        %v1853 = vsel %vm1840, %v1845, %v1852
        %v1854 = vrot.slane %v1824, 1
        %v1855 = vsel %vm1840, %v1848, %v1854
        %v1856 = vrot.slane %v1825, 1
        %v1857 = vsel %vm1840, %v1850, %v1856
        %v1858 = vrot.slane %v1826, 1
        %v1859 = vsel %vm1840, %v1852, %v1858
        %v1860 = vrot.slane %v1827, 1
        %v1861 = vsel %vm1840, %v1854, %v1860
        %v1874 = vmax.f32 %v1816, %v1843
        %v1875 = vmax.f32 %v1817, %v1846
        %v1876 = vmax.f32 %v1818, %v1849
        %v1877 = vmax.f32 %v1819, %v1851
        %v1878 = vmax.f32 %v1820, %v1853
        %v1879 = vmax.f32 %v1821, %v1855
        %v1880 = vmax.f32 %v1822, %v1857
        %v1881 = vmax.f32 %v1823, %v1859
        %v1882 = vmax.f32 %v1824, %v1861
        %v1883 = vmax.f32 %v1825, %v1856
        %v1884 = vmax.f32 %v1826, %v1858
        %v1885 = vmax.f32 %v1827, %v1860
        %v1886 = vlaneseq
        %v1887 = vshrl.u32 %v1886, 7
        %v1888 = vadd.s32 %v1887, 8
        %v1889 = vlaneseq
        %v1890 = vand.u32 %v1889, 127
        %v1891 = vmul.u32 %v1887, 2
        %v1892 = vmul.u32 %v1888, 2
        %vm1893 = vcmp.eq.s32.totalorder %v1890, %v1891
        %vm1894 = vcmp.eq.s32.totalorder %v1890, %v1892
        %v1895 = vsel %vm1893, 1, 0
        %v1896 = vsel %vm1894, 1, 0
        %v1897 = vcvt.s32.f32 %v1895
        %v1898 = vcvt.s32.f32 %v1896
        %v1899 = vpack.c.bf16 %v1898, %v1897
        %v1900 = vpack.c.bf16 %v1877, %v1874
        %v1901 = vpack.c.bf16 %v1878, %v1875
        %v1902 = vpack.c.bf16 %v1879, %v1876
        %v1903 = vpack.c.bf16 %v1883, %v1880
        %v1904 = vpack.c.bf16 %v1884, %v1881
        %v1905 = vpack.c.bf16 %v1885, %v1882
        %vm1906 = vcmask 220160
        %v1908 = vsel %vm1906, %v1899, 0
        %vm1910 = vcmask 1044480
        %vm1911 = vcmask 1045504
        %v1912 = vsel %vm1910, 4294967295, 65535
        %v1913 = vsel %vm1911, %v1912, 0
        %v1915 = vand.u32 %v1903, %v1913
        %v1918 = vand.u32 %v1904, %v1913
        %v1921 = vand.u32 %v1905, %v1913
        %1923 = vmatprep.subr.bf16.mxu0 0
        %1924 = vmatpush1.bf16.msra.mxu0 0
        %1925 = vmatprep.subr.bf16.mxu0 0
        %1926 = vmatpush1.bf16.msra.mxu0 0
        %1927 = vmatprep.subr.bf16.mxu0 0
        %1928 = vmatpush1.bf16.msra.mxu0 0
        %1929 = vmatprep.subr.bf16.mxu0 0
        %1930 = vmatpush1.bf16.msra.mxu0 0
        %1931 = vmatprep.subr.bf16.mxu0 0
        %1932 = vmatpush1.bf16.msra.mxu0 0
        %1933 = vmatprep.subr.bf16.mxu0 0
        %1934 = vmatpush1.bf16.msra.mxu0 0
        %1935 = vmatprep.subr.bf16.mxu0 %v1918
        %1936 = vmatpush1.bf16.msra.mxu0 %v1915
        %1937 = vmatprep.subr.bf16.mxu0 %v1901
        %1938 = vmatpush1.bf16.msra.mxu0 %v1900
        %1939 = vmatprep.subr.bf16.mxu0 0
        %1940 = vmatpush2.bf16.msra.mxu0 0
        %1941 = vmatprep.subr.bf16.mxu0 0
        %1942 = vmatpush2.bf16.msra.mxu0 0
        %1943 = vmatprep.subr.bf16.mxu0 0
        %1944 = vmatpush2.bf16.msra.mxu0 0
        %1945 = vmatprep.subr.bf16.mxu0 0
        %1946 = vmatpush2.bf16.msra.mxu0 0
        %1947 = vmatprep.subr.bf16.mxu0 0
        %1948 = vmatpush2.bf16.msra.mxu0 0
        %1949 = vmatprep.subr.bf16.mxu0 0
        %1950 = vmatpush2.bf16.msra.mxu0 0
        %1951 = vmatprep.subr.bf16.mxu0 0
        %1952 = vmatpush2.bf16.msra.mxu0 0
        %1953 = vmatprep.subr.bf16.mxu0 0
        %1954 = vmatpush2.bf16.msra.mxu0 0
        %1955 = vmatprep.mubr.bf16.mxu0 0
        %1956 = vmatmul.mubr.bf16.gmra.mxu0 %v1908
        %v1957 = vpop.f32.mrf.mxu0
        %v1958 = vadd.f32 0.0, %v1957
        %v1959 = vpop.f32.mrf.mxu0
        %v1960 = vadd.f32 0.0, %v1959
        %v1961 = vpop.f32.mrf.mxu0
        %v1962 = vadd.f32 0.0, %v1961
        %v1963 = vpop.f32.mrf.mxu0
        %v1964 = vadd.f32 0.0, %v1963
        %1965 = vdwg.mxu0
        %1966 = vmatprep.subr.bf16.mxu0 0
        %1967 = vmatpush1.bf16.msra.mxu0 0
        %1968 = vmatprep.subr.bf16.mxu0 0
        %1969 = vmatpush1.bf16.msra.mxu0 0
        %1970 = vmatprep.subr.bf16.mxu0 0
        %1971 = vmatpush1.bf16.msra.mxu0 0
        %1972 = vmatprep.subr.bf16.mxu0 0
        %1973 = vmatpush1.bf16.msra.mxu0 0
        %1974 = vmatprep.subr.bf16.mxu0 0
        %1975 = vmatpush1.bf16.msra.mxu0 0
        %1976 = vmatprep.subr.bf16.mxu0 0
        %1977 = vmatpush1.bf16.msra.mxu0 0
        %1978 = vmatprep.subr.bf16.mxu0 0
        %1979 = vmatpush1.bf16.msra.mxu0 %v1921
        %1980 = vmatprep.subr.bf16.mxu0 0
        %1981 = vmatpush1.bf16.msra.mxu0 %v1902
        %1982 = vmatprep.subr.bf16.mxu0 0
        %1983 = vmatpush2.bf16.msra.mxu0 0
        %1984 = vmatprep.subr.bf16.mxu0 0
        %1985 = vmatpush2.bf16.msra.mxu0 0
        %1986 = vmatprep.subr.bf16.mxu0 0
        %1987 = vmatpush2.bf16.msra.mxu0 0
        %1988 = vmatprep.subr.bf16.mxu0 0
        %1989 = vmatpush2.bf16.msra.mxu0 0
        %1990 = vmatprep.subr.bf16.mxu0 0
        %1991 = vmatpush2.bf16.msra.mxu0 0
        %1992 = vmatprep.subr.bf16.mxu0 0
        %1993 = vmatpush2.bf16.msra.mxu0 0
        %1994 = vmatprep.subr.bf16.mxu0 0
        %1995 = vmatpush2.bf16.msra.mxu0 0
        %1996 = vmatprep.subr.bf16.mxu0 0
        %1997 = vmatpush2.bf16.msra.mxu0 0
        %1998 = vmatprep.mubr.bf16.mxu0 0
        %1999 = vmatmul.mubr.bf16.gmra.mxu0 %v1908
        %v2000 = vpop.f32.mrf.mxu0
        %v2001 = vadd.f32 0.0, %v2000
        %v2002 = vpop.f32.mrf.mxu0
        %v2003 = vpop.f32.mrf.mxu0
        %v2004 = vadd.f32 0.0, %v2003
        %v2005 = vpop.f32.mrf.mxu0
        %2006 = vdwg.mxu0
        %2013 = vrot.lane.b32.xlu0 %v1958, 127
        %v2014 = vpop.permute.xlu0 %2013
        %2015 = vrot.lane.b32.xlu0 %v1960, 127
        %v2016 = vpop.permute.xlu0 %2015
        %2017 = vrot.lane.b32.xlu0 %v2001, 127
        %v2018 = vpop.permute.xlu0 %2017
        %2019 = vrot.lane.b32.xlu0 %v1962, 127
        %v2020 = vpop.permute.xlu0 %2019
        %2021 = vrot.lane.b32.xlu0 %v1964, 127
        %v2022 = vpop.permute.xlu0 %2021
        %2023 = vrot.lane.b32.xlu0 %v2004, 127
        %v2024 = vpop.permute.xlu0 %2023
        %vm2025 = vcmask 1039360
        %v2026 = vsel %vm2025, %v2014, %v2016
        %v2027 = vsel %vm2025, %v2016, %v2018
        %v2028 = vsel %vm2025, %v2020, %v2022
        %v2029 = vsel %vm2025, %v2022, %v2024
        %v2036 = vmax.f32 %v1958, %v2026
        %v2037 = vmax.f32 %v1960, %v2027
        %v2038 = vmax.f32 %v2001, %v2018
        %v2039 = vmax.f32 %v1962, %v2028
        %v2040 = vmax.f32 %v1964, %v2029
        %v2041 = vmax.f32 %v2004, %v2024
        %v2042 = vpack.c.bf16 %v2039, %v2036
        %v2043 = vpack.c.bf16 %v2040, %v2037
        %v2044 = vpack.c.bf16 %v2041, %v2038
        %v2045 = vld [vmem:[%s3] sm:$0xff]
        %v2046 = vld [vmem:[%s3 + $0x8] sm:$0xff]
        %v2047 = vld [vmem:[%s3 + $0x10] sm:$0xff]
        %v2048 = vld [vmem:[%s3 + $0x18] sm:$0xff]
        %v2049 = vld [vmem:[%s3 + $0x20] sm:$0xff]
        %v2050 = vld [vmem:[%s3 + $0x28] sm:$0xff]
        %v2051 = vld [vmem:[%s3 + $0x30] sm:$0xff]
        %v2052 = vld [vmem:[%s3 + $0x38] sm:$0xff]
        %v2053 = vld [vmem:[%s3 + $0x40] sm:$0xff]
        %v2054 = vld [vmem:[%s3 + $0x48] sm:$0xff]
        %v2055 = vld [vmem:[%s3 + $0x50] sm:$0xff]
        %v2056 = vld [vmem:[%s3 + $0x58] sm:$0xff]
        %v2057 = vld [vmem:[%s3 + $0x60] sm:$0xff]
        %v2058 = vld [vmem:[%s3 + $0x68] sm:$0xff]
        %v2059 = vld [vmem:[%s3 + $0x70] sm:$0xff]
        %v2060 = vld [vmem:[%s3 + $0x78] sm:$0xff]
        %v2061 = vld [vmem:[%s3 + $0x80] sm:$0xff]
        %v2062 = vld [vmem:[%s3 + $0x88] sm:$0xff]
        %v2063 = vld [vmem:[%s3 + $0x90] sm:$0xff]
        %v2064 = vld [vmem:[%s3 + $0x98] sm:$0xff]
        %v2065 = vld [vmem:[%s3 + $0xa0] sm:$0xff]
        %v2066 = vld [vmem:[%s3 + $0xa8] sm:$0xff]
        %v2067 = vld [vmem:[%s3 + $0xb0] sm:$0xff]
        %v2068 = vld [vmem:[%s3 + $0xb8] sm:$0xff]
        %v2069 = vld [vmem:[%s3 + $0xc0] sm:$0xff]
        %v2070 = vld [vmem:[%s3 + $0xc8] sm:$0xff]
        %v2071 = vld [vmem:[%s3 + $0xd0] sm:$0xff]
        %v2072 = vld [vmem:[%s3 + $0xd8] sm:$0xff]
        %v2073 = vld [vmem:[%s3 + $0xe0] sm:$0xff]
        %v2074 = vld [vmem:[%s3 + $0xe8] sm:$0xff]
        %v2075 = vld [vmem:[%s3 + $0xf0] sm:$0xff]
        %v2076 = vld [vmem:[%s3 + $0xf8] sm:$0xff]
        %v2077 = vld [vmem:[%s3 + $0x100] sm:$0xff]
        %v2078 = vld [vmem:[%s3 + $0x108] sm:$0xff]
        %v2079 = vld [vmem:[%s3 + $0x110] sm:$0xff]
        %s2080 = scalar_lea.vmem %s3, 280
        %v2081 = vld [vmem:[%s2080] sm:$0xff]
        %v2082 = vld [vmem:[%s2080 + $0x8] sm:$0xff]
        %v2083 = vld [vmem:[%s2080 + $0x10] sm:$0xff]
        %v2084 = vld [vmem:[%s2080 + $0x18] sm:$0xff]
        %v2085 = vld [vmem:[%s2080 + $0x20] sm:$0xff]
        %v2086 = vld [vmem:[%s2080 + $0x28] sm:$0xff]
        %v2087 = vld [vmem:[%s2080 + $0x30] sm:$0xff]
        %v2088 = vld [vmem:[%s2080 + $0x38] sm:$0xff]
        %v2089 = vld [vmem:[%s2080 + $0x40] sm:$0xff]
        %v2090 = vld [vmem:[%s2080 + $0x48] sm:$0xff]
        %v2091 = vld [vmem:[%s2080 + $0x50] sm:$0xff]
        %v2092 = vld [vmem:[%s2080 + $0x58] sm:$0xff]
        %v2093 = vld [vmem:[%s2080 + $0x60] sm:$0xff]
        %v2094 = vld [vmem:[%s2080 + $0x68] sm:$0xff]
        %v2095 = vld [vmem:[%s2080 + $0x70] sm:$0xff]
        %v2096 = vld [vmem:[%s2080 + $0x78] sm:$0xff]
        %v2097 = vld [vmem:[%s2080 + $0x80] sm:$0xff]
        %v2098 = vld [vmem:[%s2080 + $0x88] sm:$0xff]
        %v2099 = vld [vmem:[%s2080 + $0x90] sm:$0xff]
        %v2100 = vld [vmem:[%s2080 + $0x98] sm:$0xff]
        %v2101 = vld [vmem:[%s2080 + $0xa0] sm:$0xff]
        %v2102 = vld [vmem:[%s2080 + $0xa8] sm:$0xff]
        %v2103 = vld [vmem:[%s2080 + $0xb0] sm:$0xff]
        %v2104 = vld [vmem:[%s2080 + $0xb8] sm:$0xff]
        %v2105 = vld [vmem:[%s2080 + $0xc0] sm:$0xff]
        %v2106 = vld [vmem:[%s2080 + $0xc8] sm:$0xff]
        %v2107 = vld [vmem:[%s2080 + $0xd0] sm:$0xff]
        %v2108 = vld [vmem:[%s2080 + $0xd8] sm:$0xff]
        %v2109 = vld [vmem:[%s2080 + $0xe0] sm:$0xff]
        %v2110 = vld [vmem:[%s2080 + $0xe8] sm:$0xff]
        %v2111 = vld [vmem:[%s2080 + $0xf0] sm:$0xff]
        %v2112 = vld [vmem:[%s2080 + $0xf8] sm:$0xff]
        %v2113 = vld [vmem:[%s2080 + $0x100] sm:$0xff]
        %v2114 = vld [vmem:[%s2080 + $0x108] sm:$0xff]
        %v2115 = vld [vmem:[%s2080 + $0x110] sm:$0xff]
        %v2117 = vshrl.u32 %v2042, 16
        %v2119 = vshll.u32 %v2042, 16
        %v2121 = vrot.slane %v2119, 1
        %v2122 = vor.u32 %v2117, %v2121
        %v2124 = vshrl.u32 %v2043, 16
        %v2126 = vshll.u32 %v2043, 16
        %v2128 = vrot.slane %v2126, 1
        %v2129 = vor.u32 %v2124, %v2128
        %v2131 = vshrl.u32 %v2044, 16
        %v2133 = vshll.u32 %v2044, 16
        %v2135 = vrot.slane %v2133, 1
        %v2136 = vor.u32 %v2131, %v2135
        %v2174 = vunpack.c.l.b16 %v2081
        %v2175 = vunpack.c.h.b16 %v2081
        %v2176 = vunpack.c.l.b16 %v2082
        %v2177 = vunpack.c.h.b16 %v2082
        %v2178 = vunpack.c.l.b16 %v2083
        %v2179 = vunpack.c.h.b16 %v2083
        %v2180 = vunpack.c.l.b16 %v2084
        %v2181 = vunpack.c.h.b16 %v2084
        %v2182 = vunpack.c.l.b16 %v2085
        %v2183 = vunpack.c.h.b16 %v2085
        %v2184 = vunpack.c.l.b16 %v2086
        %v2185 = vunpack.c.h.b16 %v2086
        %v2186 = vunpack.c.l.b16 %v2087
        %v2187 = vunpack.c.h.b16 %v2087
        %v2188 = vunpack.c.l.b16 %v2088
        %v2189 = vunpack.c.h.b16 %v2088
        %v2190 = vunpack.c.l.b16 %v2089
        %v2191 = vunpack.c.h.b16 %v2089
        %v2192 = vunpack.c.l.b16 %v2090
        %v2193 = vunpack.c.h.b16 %v2090
        %v2194 = vunpack.c.l.b16 %v2091
        %v2195 = vunpack.c.h.b16 %v2091
        %v2196 = vunpack.c.l.b16 %v2092
        %v2197 = vunpack.c.h.b16 %v2092
        %v2198 = vunpack.c.l.b16 %v2093
        %v2199 = vunpack.c.h.b16 %v2093
        %v2200 = vunpack.c.l.b16 %v2094
        %v2201 = vunpack.c.h.b16 %v2094
        %v2202 = vunpack.c.l.b16 %v2095
        %v2203 = vunpack.c.h.b16 %v2095
        %v2204 = vunpack.c.l.b16 %v2096
        %v2205 = vunpack.c.h.b16 %v2096
        %v2206 = vunpack.c.l.b16 %v2097
        %v2207 = vunpack.c.h.b16 %v2097
        %v2208 = vunpack.c.l.b16 %v2098
        %v2209 = vunpack.c.h.b16 %v2098
        %v2210 = vunpack.c.l.b16 %v2099
        %v2211 = vunpack.c.h.b16 %v2099
        %v2212 = vunpack.c.l.b16 %v2100
        %v2213 = vunpack.c.h.b16 %v2100
        %v2214 = vunpack.c.l.b16 %v2101
        %v2215 = vunpack.c.h.b16 %v2101
        %v2216 = vunpack.c.l.b16 %v2102
        %v2217 = vunpack.c.h.b16 %v2102
        %v2218 = vunpack.c.l.b16 %v2103
        %v2219 = vunpack.c.h.b16 %v2103
        %v2220 = vunpack.c.l.b16 %v2104
        %v2221 = vunpack.c.h.b16 %v2104
        %v2222 = vunpack.c.l.b16 %v2105
        %v2223 = vunpack.c.h.b16 %v2105
        %v2224 = vunpack.c.l.b16 %v2106
        %v2225 = vunpack.c.h.b16 %v2106
        %v2226 = vunpack.c.l.b16 %v2107
        %v2227 = vunpack.c.h.b16 %v2107
        %v2228 = vunpack.c.l.b16 %v2108
        %v2229 = vunpack.c.h.b16 %v2108
        %v2230 = vunpack.c.l.b16 %v2109
        %v2231 = vunpack.c.h.b16 %v2109
        %v2232 = vunpack.c.l.b16 %v2110
        %v2233 = vunpack.c.h.b16 %v2110
        %v2234 = vunpack.c.l.b16 %v2111
        %v2235 = vunpack.c.h.b16 %v2111
        %v2236 = vunpack.c.l.b16 %v2112
        %v2237 = vunpack.c.h.b16 %v2112
        %v2238 = vunpack.c.l.b16 %v2113
        %v2239 = vunpack.c.h.b16 %v2113
        %v2240 = vunpack.c.l.b16 %v2114
        %v2241 = vunpack.c.h.b16 %v2114
        %v2242 = vunpack.c.l.b16 %v2115
        %v2243 = vunpack.c.h.b16 %v2115
        %v2244 = vpack.c.b16 %v2176, %v2174
        %v2245 = vpack.c.b16 %v2177, %v2175
        %v2246 = vpack.c.b16 %v2180, %v2178
        %v2247 = vpack.c.b16 %v2181, %v2179
        %v2248 = vpack.c.b16 %v2184, %v2182
        %v2249 = vpack.c.b16 %v2185, %v2183
        %v2250 = vpack.c.b16 %v2188, %v2186
        %v2251 = vpack.c.b16 %v2189, %v2187
        %v2252 = vpack.c.b16 %v2192, %v2190
        %v2253 = vpack.c.b16 %v2193, %v2191
        %v2254 = vpack.c.b16 %v2196, %v2194
        %v2255 = vpack.c.b16 %v2197, %v2195
        %v2256 = vpack.c.b16 %v2200, %v2198
        %v2257 = vpack.c.b16 %v2201, %v2199
        %v2258 = vpack.c.b16 %v2204, %v2202
        %v2259 = vpack.c.b16 %v2205, %v2203
        %v2260 = vpack.c.b16 %v2208, %v2206
        %v2261 = vpack.c.b16 %v2209, %v2207
        %v2262 = vpack.c.b16 %v2212, %v2210
        %v2263 = vpack.c.b16 %v2213, %v2211
        %v2264 = vpack.c.b16 %v2216, %v2214
        %v2265 = vpack.c.b16 %v2217, %v2215
        %v2266 = vpack.c.b16 %v2220, %v2218
        %v2267 = vpack.c.b16 %v2221, %v2219
        %v2268 = vpack.c.b16 %v2224, %v2222
        %v2269 = vpack.c.b16 %v2225, %v2223
        %v2270 = vpack.c.b16 %v2228, %v2226
        %v2271 = vpack.c.b16 %v2229, %v2227
        %v2272 = vpack.c.b16 %v2232, %v2230
        %v2273 = vpack.c.b16 %v2233, %v2231
        %v2274 = vpack.c.b16 %v2236, %v2234
        %v2275 = vpack.c.b16 %v2237, %v2235
        %v2276 = vpack.c.b16 %v2240, %v2238
        %v2277 = vpack.c.b16 %v2241, %v2239
        %v2278 = vpack.c.b16 %v2242, %v2242
        %v2279 = vpack.c.b16 %v2243, %v2243
        %vm2314 = vcmask 187392
        %v2316 = vsel %vm2314, %v2136, 0
        %vm2318 = vcmask 1042432
        %vm2319 = vcmask 1043456
        %v2320 = vsel %vm2318, 4294967295, 65535
        %v2321 = vsel %vm2319, %v2320, 0
        %v2323 = vand.u32 %v2278, %v2321
        %v2326 = vand.u32 %v2279, %v2321
        %2328 = vmatprep.subr.bf16.mxu0 %v2259
        %2329 = vmatpush1.bf16.msra.mxu0 %v2258
        %2330 = vmatprep.subr.bf16.mxu0 %v2257
        %2331 = vmatpush1.bf16.msra.mxu0 %v2256
        %2332 = vmatprep.subr.bf16.mxu0 %v2255
        %2333 = vmatpush1.bf16.msra.mxu0 %v2254
        %2334 = vmatprep.subr.bf16.mxu0 %v2253
        %2335 = vmatpush1.bf16.msra.mxu0 %v2252
        %2336 = vmatprep.subr.bf16.mxu0 %v2251
        %2337 = vmatpush1.bf16.msra.mxu0 %v2250
        %2338 = vmatprep.subr.bf16.mxu0 %v2249
        %2339 = vmatpush1.bf16.msra.mxu0 %v2248
        %2340 = vmatprep.subr.bf16.mxu0 %v2247
        %2341 = vmatpush1.bf16.msra.mxu0 %v2246
        %2342 = vmatprep.subr.bf16.mxu0 %v2245
        %2343 = vmatpush1.bf16.msra.mxu0 %v2244
        %2344 = vmatprep.subr.bf16.mxu0 %v2275
        %2345 = vmatpush2.bf16.msra.mxu0 %v2274
        %2346 = vmatprep.subr.bf16.mxu0 %v2273
        %2347 = vmatpush2.bf16.msra.mxu0 %v2272
        %2348 = vmatprep.subr.bf16.mxu0 %v2271
        %2349 = vmatpush2.bf16.msra.mxu0 %v2270
        %2350 = vmatprep.subr.bf16.mxu0 %v2269
        %2351 = vmatpush2.bf16.msra.mxu0 %v2268
        %2352 = vmatprep.subr.bf16.mxu0 %v2267
        %2353 = vmatpush2.bf16.msra.mxu0 %v2266
        %2354 = vmatprep.subr.bf16.mxu0 %v2265
        %2355 = vmatpush2.bf16.msra.mxu0 %v2264
        %2356 = vmatprep.subr.bf16.mxu0 %v2263
        %2357 = vmatpush2.bf16.msra.mxu0 %v2262
        %2358 = vmatprep.subr.bf16.mxu0 %v2261
        %2359 = vmatpush2.bf16.msra.mxu0 %v2260
        %2360 = vmatprep.mubr.bf16.mxu0 %v2129
        %2361 = vmatmul.mubr.bf16.gmra.mxu0 %v2122
        %v2362 = vpop.f32.mrf.mxu0
        %v2363 = vadd.f32 0.0, %v2362
        %v2364 = vpop.f32.mrf.mxu0
        %v2365 = vadd.f32 0.0, %v2364
        %v2366 = vpop.f32.mrf.mxu0
        %v2367 = vadd.f32 0.0, %v2366
        %v2368 = vpop.f32.mrf.mxu0
        %v2369 = vadd.f32 0.0, %v2368
        %2370 = vdwg.mxu0
        %2371 = vmatprep.subr.bf16.mxu0 0
        %2372 = vmatpush1.bf16.msra.mxu0 0
        %2373 = vmatprep.subr.bf16.mxu0 0
        %2374 = vmatpush1.bf16.msra.mxu0 0
        %2375 = vmatprep.subr.bf16.mxu0 0
        %2376 = vmatpush1.bf16.msra.mxu0 0
        %2377 = vmatprep.subr.bf16.mxu0 0
        %2378 = vmatpush1.bf16.msra.mxu0 0
        %2379 = vmatprep.subr.bf16.mxu0 0
        %2380 = vmatpush1.bf16.msra.mxu0 0
        %2381 = vmatprep.subr.bf16.mxu0 0
        %2382 = vmatpush1.bf16.msra.mxu0 0
        %2383 = vmatprep.subr.bf16.mxu0 %v2326
        %2384 = vmatpush1.bf16.msra.mxu0 %v2323
        %2385 = vmatprep.subr.bf16.mxu0 %v2277
        %2386 = vmatpush1.bf16.msra.mxu0 %v2276
        %2387 = vmatprep.subr.bf16.mxu0 0
        %2388 = vmatpush2.bf16.msra.mxu0 0
        %2389 = vmatprep.subr.bf16.mxu0 0
        %2390 = vmatpush2.bf16.msra.mxu0 0
        %2391 = vmatprep.subr.bf16.mxu0 0
        %2392 = vmatpush2.bf16.msra.mxu0 0
        %2393 = vmatprep.subr.bf16.mxu0 0
        %2394 = vmatpush2.bf16.msra.mxu0 0
        %2395 = vmatprep.subr.bf16.mxu0 0
        %2396 = vmatpush2.bf16.msra.mxu0 0
        %2397 = vmatprep.subr.bf16.mxu0 0
        %2398 = vmatpush2.bf16.msra.mxu0 0
        %2399 = vmatprep.subr.bf16.mxu0 0
        %2400 = vmatpush2.bf16.msra.mxu0 0
        %2401 = vmatprep.subr.bf16.mxu0 0
        %2402 = vmatpush2.bf16.msra.mxu0 0
        %2403 = vmatprep.mubr.bf16.mxu0 0
        %2404 = vmatmul.mubr.bf16.gmra.mxu0 %v2316
        %v2405 = vpop.f32.mrf.mxu0
        %v2406 = vadd.f32 %v2363, %v2405
        %v2407 = vpop.f32.mrf.mxu0
        %v2408 = vadd.f32 %v2365, %v2407
        %v2409 = vpop.f32.mrf.mxu0
        %v2410 = vadd.f32 %v2367, %v2409
        %v2411 = vpop.f32.mrf.mxu0
        %v2412 = vadd.f32 %v2369, %v2411
        %2413 = vdwg.mxu0
        %v2449 = vunpack.c.l.b16 %v2045
        %v2450 = vunpack.c.h.b16 %v2045
        %v2451 = vunpack.c.l.b16 %v2046
        %v2452 = vunpack.c.h.b16 %v2046
        %v2453 = vunpack.c.l.b16 %v2047
        %v2454 = vunpack.c.h.b16 %v2047
        %v2455 = vunpack.c.l.b16 %v2048
        %v2456 = vunpack.c.h.b16 %v2048
        %v2457 = vunpack.c.l.b16 %v2049
        %v2458 = vunpack.c.h.b16 %v2049
        %v2459 = vunpack.c.l.b16 %v2050
        %v2460 = vunpack.c.h.b16 %v2050
        %v2461 = vunpack.c.l.b16 %v2051
        %v2462 = vunpack.c.h.b16 %v2051
        %v2463 = vunpack.c.l.b16 %v2052
        %v2464 = vunpack.c.h.b16 %v2052
        %v2465 = vunpack.c.l.b16 %v2053
        %v2466 = vunpack.c.h.b16 %v2053
        %v2467 = vunpack.c.l.b16 %v2054
        %v2468 = vunpack.c.h.b16 %v2054
        %v2469 = vunpack.c.l.b16 %v2055
        %v2470 = vunpack.c.h.b16 %v2055
        %v2471 = vunpack.c.l.b16 %v2056
        %v2472 = vunpack.c.h.b16 %v2056
        %v2473 = vunpack.c.l.b16 %v2057
        %v2474 = vunpack.c.h.b16 %v2057
        %v2475 = vunpack.c.l.b16 %v2058
        %v2476 = vunpack.c.h.b16 %v2058
        %v2477 = vunpack.c.l.b16 %v2059
        %v2478 = vunpack.c.h.b16 %v2059
        %v2479 = vunpack.c.l.b16 %v2060
        %v2480 = vunpack.c.h.b16 %v2060
        %v2481 = vunpack.c.l.b16 %v2061
        %v2482 = vunpack.c.h.b16 %v2061
        %v2483 = vunpack.c.l.b16 %v2062
        %v2484 = vunpack.c.h.b16 %v2062
        %v2485 = vunpack.c.l.b16 %v2063
        %v2486 = vunpack.c.h.b16 %v2063
        %v2487 = vunpack.c.l.b16 %v2064
        %v2488 = vunpack.c.h.b16 %v2064
        %v2489 = vunpack.c.l.b16 %v2065
        %v2490 = vunpack.c.h.b16 %v2065
        %v2491 = vunpack.c.l.b16 %v2066
        %v2492 = vunpack.c.h.b16 %v2066
        %v2493 = vunpack.c.l.b16 %v2067
        %v2494 = vunpack.c.h.b16 %v2067
        %v2495 = vunpack.c.l.b16 %v2068
        %v2496 = vunpack.c.h.b16 %v2068
        %v2497 = vunpack.c.l.b16 %v2069
        %v2498 = vunpack.c.h.b16 %v2069
        %v2499 = vunpack.c.l.b16 %v2070
        %v2500 = vunpack.c.h.b16 %v2070
        %v2501 = vunpack.c.l.b16 %v2071
        %v2502 = vunpack.c.h.b16 %v2071
        %v2503 = vunpack.c.l.b16 %v2072
        %v2504 = vunpack.c.h.b16 %v2072
        %v2505 = vunpack.c.l.b16 %v2073
        %v2506 = vunpack.c.h.b16 %v2073
        %v2507 = vunpack.c.l.b16 %v2074
        %v2508 = vunpack.c.h.b16 %v2074
        %v2509 = vunpack.c.l.b16 %v2075
        %v2510 = vunpack.c.h.b16 %v2075
        %v2511 = vunpack.c.l.b16 %v2076
        %v2512 = vunpack.c.h.b16 %v2076
        %v2513 = vunpack.c.l.b16 %v2077
        %v2514 = vunpack.c.h.b16 %v2077
        %v2515 = vunpack.c.l.b16 %v2078
        %v2516 = vunpack.c.h.b16 %v2078
        %v2517 = vunpack.c.l.b16 %v2079
        %v2518 = vunpack.c.h.b16 %v2079
        %v2519 = vpack.c.b16 %v2451, %v2449
        %v2520 = vpack.c.b16 %v2452, %v2450
        %v2521 = vpack.c.b16 %v2455, %v2453
        %v2522 = vpack.c.b16 %v2456, %v2454
        %v2523 = vpack.c.b16 %v2459, %v2457
        %v2524 = vpack.c.b16 %v2460, %v2458
        %v2525 = vpack.c.b16 %v2463, %v2461
        %v2526 = vpack.c.b16 %v2464, %v2462
        %v2527 = vpack.c.b16 %v2467, %v2465
        %v2528 = vpack.c.b16 %v2468, %v2466
        %v2529 = vpack.c.b16 %v2471, %v2469
        %v2530 = vpack.c.b16 %v2472, %v2470
        %v2531 = vpack.c.b16 %v2475, %v2473
        %v2532 = vpack.c.b16 %v2476, %v2474
        %v2533 = vpack.c.b16 %v2479, %v2477
        %v2534 = vpack.c.b16 %v2480, %v2478
        %v2535 = vpack.c.b16 %v2483, %v2481
        %v2536 = vpack.c.b16 %v2484, %v2482
        %v2537 = vpack.c.b16 %v2487, %v2485
        %v2538 = vpack.c.b16 %v2488, %v2486
        %v2539 = vpack.c.b16 %v2491, %v2489
        %v2540 = vpack.c.b16 %v2492, %v2490
        %v2541 = vpack.c.b16 %v2495, %v2493
        %v2542 = vpack.c.b16 %v2496, %v2494
        %v2543 = vpack.c.b16 %v2499, %v2497
        %v2544 = vpack.c.b16 %v2500, %v2498
        %v2545 = vpack.c.b16 %v2503, %v2501
        %v2546 = vpack.c.b16 %v2504, %v2502
        %v2547 = vpack.c.b16 %v2507, %v2505
        %v2548 = vpack.c.b16 %v2508, %v2506
        %v2549 = vpack.c.b16 %v2511, %v2509
        %v2550 = vpack.c.b16 %v2512, %v2510
        %v2551 = vpack.c.b16 %v2515, %v2513
        %v2552 = vpack.c.b16 %v2516, %v2514
        %v2553 = vpack.c.b16 %v2517, %v2517
        %v2554 = vpack.c.b16 %v2518, %v2518
        %v2589 = vsel %vm2314, %v2044, 0
        %v2592 = vand.u32 %v2553, %v2321
        %v2595 = vand.u32 %v2554, %v2321
        %2597 = vmatprep.subr.bf16.mxu0 %v2534
        %2598 = vmatpush1.bf16.msra.mxu0 %v2533
        %2599 = vmatprep.subr.bf16.mxu0 %v2532
        %2600 = vmatpush1.bf16.msra.mxu0 %v2531
        %2601 = vmatprep.subr.bf16.mxu0 %v2530
        %2602 = vmatpush1.bf16.msra.mxu0 %v2529
        %2603 = vmatprep.subr.bf16.mxu0 %v2528
        %2604 = vmatpush1.bf16.msra.mxu0 %v2527
        %2605 = vmatprep.subr.bf16.mxu0 %v2526
        %2606 = vmatpush1.bf16.msra.mxu0 %v2525
        %2607 = vmatprep.subr.bf16.mxu0 %v2524
        %2608 = vmatpush1.bf16.msra.mxu0 %v2523
        %2609 = vmatprep.subr.bf16.mxu0 %v2522
        %2610 = vmatpush1.bf16.msra.mxu0 %v2521
        %2611 = vmatprep.subr.bf16.mxu0 %v2520
        %2612 = vmatpush1.bf16.msra.mxu0 %v2519
        %2613 = vmatprep.subr.bf16.mxu0 %v2550
        %2614 = vmatpush2.bf16.msra.mxu0 %v2549
        %2615 = vmatprep.subr.bf16.mxu0 %v2548
        %2616 = vmatpush2.bf16.msra.mxu0 %v2547
        %2617 = vmatprep.subr.bf16.mxu0 %v2546
        %2618 = vmatpush2.bf16.msra.mxu0 %v2545
        %2619 = vmatprep.subr.bf16.mxu0 %v2544
        %2620 = vmatpush2.bf16.msra.mxu0 %v2543
        %2621 = vmatprep.subr.bf16.mxu0 %v2542
        %2622 = vmatpush2.bf16.msra.mxu0 %v2541
        %2623 = vmatprep.subr.bf16.mxu0 %v2540
        %2624 = vmatpush2.bf16.msra.mxu0 %v2539
        %2625 = vmatprep.subr.bf16.mxu0 %v2538
        %2626 = vmatpush2.bf16.msra.mxu0 %v2537
        %2627 = vmatprep.subr.bf16.mxu0 %v2536
        %2628 = vmatpush2.bf16.msra.mxu0 %v2535
        %2629 = vmatprep.mubr.bf16.mxu0 %v2043
        %2630 = vmatmul.mubr.bf16.gmra.mxu0 %v2042
        %v2631 = vpop.f32.mrf.mxu0
        %v2632 = vadd.f32 %v2406, %v2631
        %v2633 = vpop.f32.mrf.mxu0
        %v2634 = vadd.f32 %v2408, %v2633
        %v2635 = vpop.f32.mrf.mxu0
        %v2636 = vadd.f32 %v2410, %v2635
        %v2637 = vpop.f32.mrf.mxu0
        %v2638 = vadd.f32 %v2412, %v2637
        %2639 = vdwg.mxu0
        %2640 = vmatprep.subr.bf16.mxu0 0
        %2641 = vmatpush1.bf16.msra.mxu0 0
        %2642 = vmatprep.subr.bf16.mxu0 0
        %2643 = vmatpush1.bf16.msra.mxu0 0
        %2644 = vmatprep.subr.bf16.mxu0 0
        %2645 = vmatpush1.bf16.msra.mxu0 0
        %2646 = vmatprep.subr.bf16.mxu0 0
        %2647 = vmatpush1.bf16.msra.mxu0 0
        %2648 = vmatprep.subr.bf16.mxu0 0
        %2649 = vmatpush1.bf16.msra.mxu0 0
        %2650 = vmatprep.subr.bf16.mxu0 0
        %2651 = vmatpush1.bf16.msra.mxu0 0
        %2652 = vmatprep.subr.bf16.mxu0 %v2595
        %2653 = vmatpush1.bf16.msra.mxu0 %v2592
        %2654 = vmatprep.subr.bf16.mxu0 %v2552
        %2655 = vmatpush1.bf16.msra.mxu0 %v2551
        %2656 = vmatprep.subr.bf16.mxu0 0
        %2657 = vmatpush2.bf16.msra.mxu0 0
        %2658 = vmatprep.subr.bf16.mxu0 0
        %2659 = vmatpush2.bf16.msra.mxu0 0
        %2660 = vmatprep.subr.bf16.mxu0 0
        %2661 = vmatpush2.bf16.msra.mxu0 0
        %2662 = vmatprep.subr.bf16.mxu0 0
        %2663 = vmatpush2.bf16.msra.mxu0 0
        %2664 = vmatprep.subr.bf16.mxu0 0
        %2665 = vmatpush2.bf16.msra.mxu0 0
        %2666 = vmatprep.subr.bf16.mxu0 0
        %2667 = vmatpush2.bf16.msra.mxu0 0
        %2668 = vmatprep.subr.bf16.mxu0 0
        %2669 = vmatpush2.bf16.msra.mxu0 0
        %2670 = vmatprep.subr.bf16.mxu0 0
        %2671 = vmatpush2.bf16.msra.mxu0 0
        %2672 = vmatprep.mubr.bf16.mxu0 0
        %2673 = vmatmul.mubr.bf16.gmra.mxu0 %v2589
        %v2674 = vpop.f32.mrf.mxu0
        %v2675 = vadd.f32 %v2632, %v2674
        %v2676 = vpop.f32.mrf.mxu0
        %v2677 = vadd.f32 %v2634, %v2676
        %v2678 = vpop.f32.mrf.mxu0
        %v2679 = vadd.f32 %v2636, %v2678
        %v2680 = vpop.f32.mrf.mxu0
        %v2681 = vadd.f32 %v2638, %v2680
        %2682 = vdwg.mxu0
        %s2683 = scalar_lea.vmem %s3, 560
        %v2684 = vld [vmem:[%s2683] sm:$0xff]
        %v2685 = vld [vmem:[%s2683 + $0x8] sm:$0xff]
        %v2686 = vld [vmem:[%s2683 + $0x10] sm:$0xff]
        %v2687 = vld [vmem:[%s2683 + $0x18] sm:$0xff]
        %v2688 = vld [vmem:[%s2683 + $0x20] sm:$0xff]
        %v2689 = vld [vmem:[%s2683 + $0x28] sm:$0xff]
        %v2690 = vld [vmem:[%s2683 + $0x30] sm:$0xff]
        %v2691 = vld [vmem:[%s2683 + $0x38] sm:$0xff]
        %v2692 = vld [vmem:[%s2683 + $0x40] sm:$0xff]
        %v2693 = vld [vmem:[%s2683 + $0x48] sm:$0xff]
        %v2694 = vld [vmem:[%s2683 + $0x50] sm:$0xff]
        %v2695 = vld [vmem:[%s2683 + $0x58] sm:$0xff]
        %v2696 = vld [vmem:[%s2683 + $0x60] sm:$0xff]
        %v2697 = vld [vmem:[%s2683 + $0x68] sm:$0xff]
        %v2698 = vld [vmem:[%s2683 + $0x70] sm:$0xff]
        %v2699 = vld [vmem:[%s2683 + $0x78] sm:$0xff]
        %v2700 = vld [vmem:[%s2683 + $0x80] sm:$0xff]
        %v2701 = vld [vmem:[%s2683 + $0x88] sm:$0xff]
        %v2702 = vld [vmem:[%s2683 + $0x90] sm:$0xff]
        %v2703 = vld [vmem:[%s2683 + $0x98] sm:$0xff]
        %v2704 = vld [vmem:[%s2683 + $0xa0] sm:$0xff]
        %v2705 = vld [vmem:[%s2683 + $0xa8] sm:$0xff]
        %v2706 = vld [vmem:[%s2683 + $0xb0] sm:$0xff]
        %v2707 = vld [vmem:[%s2683 + $0xb8] sm:$0xff]
        %v2708 = vld [vmem:[%s2683 + $0xc0] sm:$0xff]
        %v2709 = vld [vmem:[%s2683 + $0xc8] sm:$0xff]
        %v2710 = vld [vmem:[%s2683 + $0xd0] sm:$0xff]
        %v2711 = vld [vmem:[%s2683 + $0xd8] sm:$0xff]
        %v2712 = vld [vmem:[%s2683 + $0xe0] sm:$0xff]
        %v2713 = vld [vmem:[%s2683 + $0xe8] sm:$0xff]
        %v2714 = vld [vmem:[%s2683 + $0xf0] sm:$0xff]
        %v2715 = vld [vmem:[%s2683 + $0xf8] sm:$0xff]
        %v2716 = vld [vmem:[%s2683 + $0x100] sm:$0xff]
        %v2717 = vld [vmem:[%s2683 + $0x108] sm:$0xff]
        %v2718 = vld [vmem:[%s2683 + $0x110] sm:$0xff]
        %v2722 = vrot.slane %v2042, 1
        %v2723 = vrot.slane %v2043, 1
        %v2724 = vrot.slane %v2044, 1
        %v2762 = vunpack.c.l.b16 %v2684
        %v2763 = vunpack.c.h.b16 %v2684
        %v2764 = vunpack.c.l.b16 %v2685
        %v2765 = vunpack.c.h.b16 %v2685
        %v2766 = vunpack.c.l.b16 %v2686
        %v2767 = vunpack.c.h.b16 %v2686
        %v2768 = vunpack.c.l.b16 %v2687
        %v2769 = vunpack.c.h.b16 %v2687
        %v2770 = vunpack.c.l.b16 %v2688
        %v2771 = vunpack.c.h.b16 %v2688
        %v2772 = vunpack.c.l.b16 %v2689
        %v2773 = vunpack.c.h.b16 %v2689
        %v2774 = vunpack.c.l.b16 %v2690
        %v2775 = vunpack.c.h.b16 %v2690
        %v2776 = vunpack.c.l.b16 %v2691
        %v2777 = vunpack.c.h.b16 %v2691
        %v2778 = vunpack.c.l.b16 %v2692
        %v2779 = vunpack.c.h.b16 %v2692
        %v2780 = vunpack.c.l.b16 %v2693
        %v2781 = vunpack.c.h.b16 %v2693
        %v2782 = vunpack.c.l.b16 %v2694
        %v2783 = vunpack.c.h.b16 %v2694
        %v2784 = vunpack.c.l.b16 %v2695
        %v2785 = vunpack.c.h.b16 %v2695
        %v2786 = vunpack.c.l.b16 %v2696
        %v2787 = vunpack.c.h.b16 %v2696
        %v2788 = vunpack.c.l.b16 %v2697
        %v2789 = vunpack.c.h.b16 %v2697
        %v2790 = vunpack.c.l.b16 %v2698
        %v2791 = vunpack.c.h.b16 %v2698
        %v2792 = vunpack.c.l.b16 %v2699
        %v2793 = vunpack.c.h.b16 %v2699
        %v2794 = vunpack.c.l.b16 %v2700
        %v2795 = vunpack.c.h.b16 %v2700
        %v2796 = vunpack.c.l.b16 %v2701
        %v2797 = vunpack.c.h.b16 %v2701
        %v2798 = vunpack.c.l.b16 %v2702
        %v2799 = vunpack.c.h.b16 %v2702
        %v2800 = vunpack.c.l.b16 %v2703
        %v2801 = vunpack.c.h.b16 %v2703
        %v2802 = vunpack.c.l.b16 %v2704
        %v2803 = vunpack.c.h.b16 %v2704
        %v2804 = vunpack.c.l.b16 %v2705
        %v2805 = vunpack.c.h.b16 %v2705
        %v2806 = vunpack.c.l.b16 %v2706
        %v2807 = vunpack.c.h.b16 %v2706
        %v2808 = vunpack.c.l.b16 %v2707
        %v2809 = vunpack.c.h.b16 %v2707
        %v2810 = vunpack.c.l.b16 %v2708
        %v2811 = vunpack.c.h.b16 %v2708
        %v2812 = vunpack.c.l.b16 %v2709
        %v2813 = vunpack.c.h.b16 %v2709
        %v2814 = vunpack.c.l.b16 %v2710
        %v2815 = vunpack.c.h.b16 %v2710
        %v2816 = vunpack.c.l.b16 %v2711
        %v2817 = vunpack.c.h.b16 %v2711
        %v2818 = vunpack.c.l.b16 %v2712
        %v2819 = vunpack.c.h.b16 %v2712
        %v2820 = vunpack.c.l.b16 %v2713
        %v2821 = vunpack.c.h.b16 %v2713
        %v2822 = vunpack.c.l.b16 %v2714
        %v2823 = vunpack.c.h.b16 %v2714
        %v2824 = vunpack.c.l.b16 %v2715
        %v2825 = vunpack.c.h.b16 %v2715
        %v2826 = vunpack.c.l.b16 %v2716
        %v2827 = vunpack.c.h.b16 %v2716
        %v2828 = vunpack.c.l.b16 %v2717
        %v2829 = vunpack.c.h.b16 %v2717
        %v2830 = vunpack.c.l.b16 %v2718
        %v2831 = vunpack.c.h.b16 %v2718
        %v2832 = vpack.c.b16 %v2764, %v2762
        %v2833 = vpack.c.b16 %v2765, %v2763
        %v2834 = vpack.c.b16 %v2768, %v2766
        %v2835 = vpack.c.b16 %v2769, %v2767
        %v2836 = vpack.c.b16 %v2772, %v2770
        %v2837 = vpack.c.b16 %v2773, %v2771
        %v2838 = vpack.c.b16 %v2776, %v2774
        %v2839 = vpack.c.b16 %v2777, %v2775
        %v2840 = vpack.c.b16 %v2780, %v2778
        %v2841 = vpack.c.b16 %v2781, %v2779
        %v2842 = vpack.c.b16 %v2784, %v2782
        %v2843 = vpack.c.b16 %v2785, %v2783
        %v2844 = vpack.c.b16 %v2788, %v2786
        %v2845 = vpack.c.b16 %v2789, %v2787
        %v2846 = vpack.c.b16 %v2792, %v2790
        %v2847 = vpack.c.b16 %v2793, %v2791
        %v2848 = vpack.c.b16 %v2796, %v2794
        %v2849 = vpack.c.b16 %v2797, %v2795
        %v2850 = vpack.c.b16 %v2800, %v2798
        %v2851 = vpack.c.b16 %v2801, %v2799
        %v2852 = vpack.c.b16 %v2804, %v2802
        %v2853 = vpack.c.b16 %v2805, %v2803
        %v2854 = vpack.c.b16 %v2808, %v2806
        %v2855 = vpack.c.b16 %v2809, %v2807
        %v2856 = vpack.c.b16 %v2812, %v2810
        %v2857 = vpack.c.b16 %v2813, %v2811
        %v2858 = vpack.c.b16 %v2816, %v2814
        %v2859 = vpack.c.b16 %v2817, %v2815
        %v2860 = vpack.c.b16 %v2820, %v2818
        %v2861 = vpack.c.b16 %v2821, %v2819
        %v2862 = vpack.c.b16 %v2824, %v2822
        %v2863 = vpack.c.b16 %v2825, %v2823
        %v2864 = vpack.c.b16 %v2828, %v2826
        %v2865 = vpack.c.b16 %v2829, %v2827
        %v2866 = vpack.c.b16 %v2830, %v2830
        %v2867 = vpack.c.b16 %v2831, %v2831
        %v2903 = vsel %vm2314, %v2724, 0
        %v2906 = vand.u32 %v2866, %v2321
        %v2909 = vand.u32 %v2867, %v2321
        %2911 = vmatprep.subr.bf16.mxu0 %v2847
        %2912 = vmatpush1.bf16.msra.mxu0 %v2846
        %2913 = vmatprep.subr.bf16.mxu0 %v2845
        %2914 = vmatpush1.bf16.msra.mxu0 %v2844
        %2915 = vmatprep.subr.bf16.mxu0 %v2843
        %2916 = vmatpush1.bf16.msra.mxu0 %v2842
        %2917 = vmatprep.subr.bf16.mxu0 %v2841
        %2918 = vmatpush1.bf16.msra.mxu0 %v2840
        %2919 = vmatprep.subr.bf16.mxu0 %v2839
        %2920 = vmatpush1.bf16.msra.mxu0 %v2838
        %2921 = vmatprep.subr.bf16.mxu0 %v2837
        %2922 = vmatpush1.bf16.msra.mxu0 %v2836
        %2923 = vmatprep.subr.bf16.mxu0 %v2835
        %2924 = vmatpush1.bf16.msra.mxu0 %v2834
        %2925 = vmatprep.subr.bf16.mxu0 %v2833
        %2926 = vmatpush1.bf16.msra.mxu0 %v2832
        %2927 = vmatprep.subr.bf16.mxu0 %v2863
        %2928 = vmatpush2.bf16.msra.mxu0 %v2862
        %2929 = vmatprep.subr.bf16.mxu0 %v2861
        %2930 = vmatpush2.bf16.msra.mxu0 %v2860
        %2931 = vmatprep.subr.bf16.mxu0 %v2859
        %2932 = vmatpush2.bf16.msra.mxu0 %v2858
        %2933 = vmatprep.subr.bf16.mxu0 %v2857
        %2934 = vmatpush2.bf16.msra.mxu0 %v2856
        %2935 = vmatprep.subr.bf16.mxu0 %v2855
        %2936 = vmatpush2.bf16.msra.mxu0 %v2854
        %2937 = vmatprep.subr.bf16.mxu0 %v2853
        %2938 = vmatpush2.bf16.msra.mxu0 %v2852
        %2939 = vmatprep.subr.bf16.mxu0 %v2851
        %2940 = vmatpush2.bf16.msra.mxu0 %v2850
        %2941 = vmatprep.subr.bf16.mxu0 %v2849
        %2942 = vmatpush2.bf16.msra.mxu0 %v2848
        %2943 = vmatprep.mubr.bf16.mxu0 %v2723
        %2944 = vmatmul.mubr.bf16.gmra.mxu0 %v2722
        %v2945 = vpop.f32.mrf.mxu0
        %v2946 = vadd.f32 0.0, %v2945
        %v2947 = vpop.f32.mrf.mxu0
        %v2948 = vadd.f32 0.0, %v2947
        %v2949 = vpop.f32.mrf.mxu0
        %v2950 = vadd.f32 0.0, %v2949
        %v2951 = vpop.f32.mrf.mxu0
        %v2952 = vadd.f32 0.0, %v2951
        %2953 = vdwg.mxu0
        %2954 = vmatprep.subr.bf16.mxu0 0
        %2955 = vmatpush1.bf16.msra.mxu0 0
        %2956 = vmatprep.subr.bf16.mxu0 0
        %2957 = vmatpush1.bf16.msra.mxu0 0
        %2958 = vmatprep.subr.bf16.mxu0 0
        %2959 = vmatpush1.bf16.msra.mxu0 0
        %2960 = vmatprep.subr.bf16.mxu0 0
        %2961 = vmatpush1.bf16.msra.mxu0 0
        %2962 = vmatprep.subr.bf16.mxu0 0
        %2963 = vmatpush1.bf16.msra.mxu0 0
        %2964 = vmatprep.subr.bf16.mxu0 0
        %2965 = vmatpush1.bf16.msra.mxu0 0
        %2966 = vmatprep.subr.bf16.mxu0 %v2909
        %2967 = vmatpush1.bf16.msra.mxu0 %v2906
        %2968 = vmatprep.subr.bf16.mxu0 %v2865
        %2969 = vmatpush1.bf16.msra.mxu0 %v2864
        %2970 = vmatprep.subr.bf16.mxu0 0
        %2971 = vmatpush2.bf16.msra.mxu0 0
        %2972 = vmatprep.subr.bf16.mxu0 0
        %2973 = vmatpush2.bf16.msra.mxu0 0
        %2974 = vmatprep.subr.bf16.mxu0 0
        %2975 = vmatpush2.bf16.msra.mxu0 0
        %2976 = vmatprep.subr.bf16.mxu0 0
        %2977 = vmatpush2.bf16.msra.mxu0 0
        %2978 = vmatprep.subr.bf16.mxu0 0
        %2979 = vmatpush2.bf16.msra.mxu0 0
        %2980 = vmatprep.subr.bf16.mxu0 0
        %2981 = vmatpush2.bf16.msra.mxu0 0
        %2982 = vmatprep.subr.bf16.mxu0 0
        %2983 = vmatpush2.bf16.msra.mxu0 0
        %2984 = vmatprep.subr.bf16.mxu0 0
        %2985 = vmatpush2.bf16.msra.mxu0 0
        %2986 = vmatprep.mubr.bf16.mxu0 0
        %2987 = vmatmul.mubr.bf16.gmra.mxu0 %v2903
        %v2988 = vpop.f32.mrf.mxu0
        %v2989 = vadd.f32 %v2946, %v2988
        %v2990 = vpop.f32.mrf.mxu0
        %v2991 = vadd.f32 %v2948, %v2990
        %v2992 = vpop.f32.mrf.mxu0
        %v2993 = vadd.f32 %v2950, %v2992
        %v2994 = vpop.f32.mrf.mxu0
        %v2995 = vadd.f32 %v2952, %v2994
        %2996 = vdwg.mxu0
        %v2997 = vadd.f32 %v2675, %v2989
        %v2998 = vadd.f32 %v2677, %v2991
        %v2999 = vadd.f32 %v2679, %v2993
        %v3000 = vadd.f32 %v2681, %v2995
        %s3001 = scalar_lea.vmem %s3, 840
        %v3002 = vld [vmem:[%s3001] sm:$0xff]
        %v3003 = vld [vmem:[%s3001 + $0x8] sm:$0xff]
        %v3004 = vld [vmem:[%s3001 + $0x10] sm:$0xff]
        %v3005 = vld [vmem:[%s3001 + $0x18] sm:$0xff]
        %v3006 = vld [vmem:[%s3001 + $0x20] sm:$0xff]
        %v3007 = vld [vmem:[%s3001 + $0x28] sm:$0xff]
        %v3008 = vld [vmem:[%s3001 + $0x30] sm:$0xff]
        %v3009 = vld [vmem:[%s3001 + $0x38] sm:$0xff]
        %v3010 = vld [vmem:[%s3001 + $0x40] sm:$0xff]
        %v3011 = vld [vmem:[%s3001 + $0x48] sm:$0xff]
        %v3012 = vld [vmem:[%s3001 + $0x50] sm:$0xff]
        %v3013 = vld [vmem:[%s3001 + $0x58] sm:$0xff]
        %v3014 = vld [vmem:[%s3001 + $0x60] sm:$0xff]
        %v3015 = vld [vmem:[%s3001 + $0x68] sm:$0xff]
        %v3016 = vld [vmem:[%s3001 + $0x70] sm:$0xff]
        %v3017 = vld [vmem:[%s3001 + $0x78] sm:$0xff]
        %v3018 = vld [vmem:[%s3001 + $0x80] sm:$0xff]
        %v3019 = vld [vmem:[%s3001 + $0x88] sm:$0xff]
        %v3020 = vld [vmem:[%s3001 + $0x90] sm:$0xff]
        %v3021 = vld [vmem:[%s3001 + $0x98] sm:$0xff]
        %v3022 = vld [vmem:[%s3001 + $0xa0] sm:$0xff]
        %v3023 = vld [vmem:[%s3001 + $0xa8] sm:$0xff]
        %v3024 = vld [vmem:[%s3001 + $0xb0] sm:$0xff]
        %v3025 = vld [vmem:[%s3001 + $0xb8] sm:$0xff]
        %v3026 = vld [vmem:[%s3001 + $0xc0] sm:$0xff]
        %v3027 = vld [vmem:[%s3001 + $0xc8] sm:$0xff]
        %v3028 = vld [vmem:[%s3001 + $0xd0] sm:$0xff]
        %v3029 = vld [vmem:[%s3001 + $0xd8] sm:$0xff]
        %v3030 = vld [vmem:[%s3001 + $0xe0] sm:$0xff]
        %v3031 = vld [vmem:[%s3001 + $0xe8] sm:$0xff]
        %v3032 = vld [vmem:[%s3001 + $0xf0] sm:$0xff]
        %v3033 = vld [vmem:[%s3001 + $0xf8] sm:$0xff]
        %v3034 = vld [vmem:[%s3001 + $0x100] sm:$0xff]
        %v3035 = vld [vmem:[%s3001 + $0x108] sm:$0xff]
        %v3036 = vld [vmem:[%s3001 + $0x110] sm:$0xff]
        %v3037 = vrot.slane %v2117, 1
        %v3038 = vrot.slane %v2119, 2
        %v3039 = vor.u32 %v3037, %v3038
        %v3040 = vrot.slane %v2124, 1
        %v3041 = vrot.slane %v2126, 2
        %v3042 = vor.u32 %v3040, %v3041
        %v3043 = vrot.slane %v2131, 1
        %v3044 = vrot.slane %v2133, 2
        %v3045 = vor.u32 %v3043, %v3044
        %v3083 = vunpack.c.l.b16 %v3002
        %v3084 = vunpack.c.h.b16 %v3002
        %v3085 = vunpack.c.l.b16 %v3003
        %v3086 = vunpack.c.h.b16 %v3003
        %v3087 = vunpack.c.l.b16 %v3004
        %v3088 = vunpack.c.h.b16 %v3004
        %v3089 = vunpack.c.l.b16 %v3005
        %v3090 = vunpack.c.h.b16 %v3005
        %v3091 = vunpack.c.l.b16 %v3006
        %v3092 = vunpack.c.h.b16 %v3006
        %v3093 = vunpack.c.l.b16 %v3007
        %v3094 = vunpack.c.h.b16 %v3007
        %v3095 = vunpack.c.l.b16 %v3008
        %v3096 = vunpack.c.h.b16 %v3008
        %v3097 = vunpack.c.l.b16 %v3009
        %v3098 = vunpack.c.h.b16 %v3009
        %v3099 = vunpack.c.l.b16 %v3010
        %v3100 = vunpack.c.h.b16 %v3010
        %v3101 = vunpack.c.l.b16 %v3011
        %v3102 = vunpack.c.h.b16 %v3011
        %v3103 = vunpack.c.l.b16 %v3012
        %v3104 = vunpack.c.h.b16 %v3012
        %v3105 = vunpack.c.l.b16 %v3013
        %v3106 = vunpack.c.h.b16 %v3013
        %v3107 = vunpack.c.l.b16 %v3014
        %v3108 = vunpack.c.h.b16 %v3014
        %v3109 = vunpack.c.l.b16 %v3015
        %v3110 = vunpack.c.h.b16 %v3015
        %v3111 = vunpack.c.l.b16 %v3016
        %v3112 = vunpack.c.h.b16 %v3016
        %v3113 = vunpack.c.l.b16 %v3017
        %v3114 = vunpack.c.h.b16 %v3017
        %v3115 = vunpack.c.l.b16 %v3018
        %v3116 = vunpack.c.h.b16 %v3018
        %v3117 = vunpack.c.l.b16 %v3019
        %v3118 = vunpack.c.h.b16 %v3019
        %v3119 = vunpack.c.l.b16 %v3020
        %v3120 = vunpack.c.h.b16 %v3020
        %v3121 = vunpack.c.l.b16 %v3021
        %v3122 = vunpack.c.h.b16 %v3021
        %v3123 = vunpack.c.l.b16 %v3022
        %v3124 = vunpack.c.h.b16 %v3022
        %v3125 = vunpack.c.l.b16 %v3023
        %v3126 = vunpack.c.h.b16 %v3023
        %v3127 = vunpack.c.l.b16 %v3024
        %v3128 = vunpack.c.h.b16 %v3024
        %v3129 = vunpack.c.l.b16 %v3025
        %v3130 = vunpack.c.h.b16 %v3025
        %v3131 = vunpack.c.l.b16 %v3026
        %v3132 = vunpack.c.h.b16 %v3026
        %v3133 = vunpack.c.l.b16 %v3027
        %v3134 = vunpack.c.h.b16 %v3027
        %v3135 = vunpack.c.l.b16 %v3028
        %v3136 = vunpack.c.h.b16 %v3028
        %v3137 = vunpack.c.l.b16 %v3029
        %v3138 = vunpack.c.h.b16 %v3029
        %v3139 = vunpack.c.l.b16 %v3030
        %v3140 = vunpack.c.h.b16 %v3030
        %v3141 = vunpack.c.l.b16 %v3031
        %v3142 = vunpack.c.h.b16 %v3031
        %v3143 = vunpack.c.l.b16 %v3032
        %v3144 = vunpack.c.h.b16 %v3032
        %v3145 = vunpack.c.l.b16 %v3033
        %v3146 = vunpack.c.h.b16 %v3033
        %v3147 = vunpack.c.l.b16 %v3034
        %v3148 = vunpack.c.h.b16 %v3034
        %v3149 = vunpack.c.l.b16 %v3035
        %v3150 = vunpack.c.h.b16 %v3035
        %v3151 = vunpack.c.l.b16 %v3036
        %v3152 = vunpack.c.h.b16 %v3036
        %v3153 = vpack.c.b16 %v3085, %v3083
        %v3154 = vpack.c.b16 %v3086, %v3084
        %v3155 = vpack.c.b16 %v3089, %v3087
        %v3156 = vpack.c.b16 %v3090, %v3088
        %v3157 = vpack.c.b16 %v3093, %v3091
        %v3158 = vpack.c.b16 %v3094, %v3092
        %v3159 = vpack.c.b16 %v3097, %v3095
        %v3160 = vpack.c.b16 %v3098, %v3096
        %v3161 = vpack.c.b16 %v3101, %v3099
        %v3162 = vpack.c.b16 %v3102, %v3100
        %v3163 = vpack.c.b16 %v3105, %v3103
        %v3164 = vpack.c.b16 %v3106, %v3104
        %v3165 = vpack.c.b16 %v3109, %v3107
        %v3166 = vpack.c.b16 %v3110, %v3108
        %v3167 = vpack.c.b16 %v3113, %v3111
        %v3168 = vpack.c.b16 %v3114, %v3112
        %v3169 = vpack.c.b16 %v3117, %v3115
        %v3170 = vpack.c.b16 %v3118, %v3116
        %v3171 = vpack.c.b16 %v3121, %v3119
        %v3172 = vpack.c.b16 %v3122, %v3120
        %v3173 = vpack.c.b16 %v3125, %v3123
        %v3174 = vpack.c.b16 %v3126, %v3124
        %v3175 = vpack.c.b16 %v3129, %v3127
        %v3176 = vpack.c.b16 %v3130, %v3128
        %v3177 = vpack.c.b16 %v3133, %v3131
        %v3178 = vpack.c.b16 %v3134, %v3132
        %v3179 = vpack.c.b16 %v3137, %v3135
        %v3180 = vpack.c.b16 %v3138, %v3136
        %v3181 = vpack.c.b16 %v3141, %v3139
        %v3182 = vpack.c.b16 %v3142, %v3140
        %v3183 = vpack.c.b16 %v3145, %v3143
        %v3184 = vpack.c.b16 %v3146, %v3144
        %v3185 = vpack.c.b16 %v3149, %v3147
        %v3186 = vpack.c.b16 %v3150, %v3148
        %v3187 = vpack.c.b16 %v3151, %v3151
        %v3188 = vpack.c.b16 %v3152, %v3152
        %v3224 = vsel %vm2314, %v3045, 0
        %v3227 = vand.u32 %v3187, %v2321
        %v3230 = vand.u32 %v3188, %v2321
        %3232 = vmatprep.subr.bf16.mxu0 %v3168
        %3233 = vmatpush1.bf16.msra.mxu0 %v3167
        %3234 = vmatprep.subr.bf16.mxu0 %v3166
        %3235 = vmatpush1.bf16.msra.mxu0 %v3165
        %3236 = vmatprep.subr.bf16.mxu0 %v3164
        %3237 = vmatpush1.bf16.msra.mxu0 %v3163
        %3238 = vmatprep.subr.bf16.mxu0 %v3162
        %3239 = vmatpush1.bf16.msra.mxu0 %v3161
        %3240 = vmatprep.subr.bf16.mxu0 %v3160
        %3241 = vmatpush1.bf16.msra.mxu0 %v3159
        %3242 = vmatprep.subr.bf16.mxu0 %v3158
        %3243 = vmatpush1.bf16.msra.mxu0 %v3157
        %3244 = vmatprep.subr.bf16.mxu0 %v3156
        %3245 = vmatpush1.bf16.msra.mxu0 %v3155
        %3246 = vmatprep.subr.bf16.mxu0 %v3154
        %3247 = vmatpush1.bf16.msra.mxu0 %v3153
        %3248 = vmatprep.subr.bf16.mxu0 %v3184
        %3249 = vmatpush2.bf16.msra.mxu0 %v3183
        %3250 = vmatprep.subr.bf16.mxu0 %v3182
        %3251 = vmatpush2.bf16.msra.mxu0 %v3181
        %3252 = vmatprep.subr.bf16.mxu0 %v3180
        %3253 = vmatpush2.bf16.msra.mxu0 %v3179
        %3254 = vmatprep.subr.bf16.mxu0 %v3178
        %3255 = vmatpush2.bf16.msra.mxu0 %v3177
        %3256 = vmatprep.subr.bf16.mxu0 %v3176
        %3257 = vmatpush2.bf16.msra.mxu0 %v3175
        %3258 = vmatprep.subr.bf16.mxu0 %v3174
        %3259 = vmatpush2.bf16.msra.mxu0 %v3173
        %3260 = vmatprep.subr.bf16.mxu0 %v3172
        %3261 = vmatpush2.bf16.msra.mxu0 %v3171
        %3262 = vmatprep.subr.bf16.mxu0 %v3170
        %3263 = vmatpush2.bf16.msra.mxu0 %v3169
        %3264 = vmatprep.mubr.bf16.mxu0 %v3042
        %3265 = vmatmul.mubr.bf16.gmra.mxu0 %v3039
        %v3266 = vpop.f32.mrf.mxu0
        %v3267 = vadd.f32 0.0, %v3266
        %v3268 = vpop.f32.mrf.mxu0
        %v3269 = vadd.f32 0.0, %v3268
        %v3270 = vpop.f32.mrf.mxu0
        %v3271 = vadd.f32 0.0, %v3270
        %v3272 = vpop.f32.mrf.mxu0
        %v3273 = vadd.f32 0.0, %v3272
        %3274 = vdwg.mxu0
        %3275 = vmatprep.subr.bf16.mxu0 0
        %3276 = vmatpush1.bf16.msra.mxu0 0
        %3277 = vmatprep.subr.bf16.mxu0 0
        %3278 = vmatpush1.bf16.msra.mxu0 0
        %3279 = vmatprep.subr.bf16.mxu0 0
        %3280 = vmatpush1.bf16.msra.mxu0 0
        %3281 = vmatprep.subr.bf16.mxu0 0
        %3282 = vmatpush1.bf16.msra.mxu0 0
        %3283 = vmatprep.subr.bf16.mxu0 0
        %3284 = vmatpush1.bf16.msra.mxu0 0
        %3285 = vmatprep.subr.bf16.mxu0 0
        %3286 = vmatpush1.bf16.msra.mxu0 0
        %3287 = vmatprep.subr.bf16.mxu0 %v3230
        %3288 = vmatpush1.bf16.msra.mxu0 %v3227
        %3289 = vmatprep.subr.bf16.mxu0 %v3186
        %3290 = vmatpush1.bf16.msra.mxu0 %v3185
        %3291 = vmatprep.subr.bf16.mxu0 0
        %3292 = vmatpush2.bf16.msra.mxu0 0
        %3293 = vmatprep.subr.bf16.mxu0 0
        %3294 = vmatpush2.bf16.msra.mxu0 0
        %3295 = vmatprep.subr.bf16.mxu0 0
        %3296 = vmatpush2.bf16.msra.mxu0 0
        %3297 = vmatprep.subr.bf16.mxu0 0
        %3298 = vmatpush2.bf16.msra.mxu0 0
        %3299 = vmatprep.subr.bf16.mxu0 0
        %3300 = vmatpush2.bf16.msra.mxu0 0
        %3301 = vmatprep.subr.bf16.mxu0 0
        %3302 = vmatpush2.bf16.msra.mxu0 0
        %3303 = vmatprep.subr.bf16.mxu0 0
        %3304 = vmatpush2.bf16.msra.mxu0 0
        %3305 = vmatprep.subr.bf16.mxu0 0
        %3306 = vmatpush2.bf16.msra.mxu0 0
        %3307 = vmatprep.mubr.bf16.mxu0 0
        %3308 = vmatmul.mubr.bf16.gmra.mxu0 %v3224
        %v3309 = vpop.f32.mrf.mxu0
        %v3310 = vadd.f32 %v3267, %v3309
        %v3311 = vpop.f32.mrf.mxu0
        %v3312 = vadd.f32 %v3269, %v3311
        %v3313 = vpop.f32.mrf.mxu0
        %v3314 = vadd.f32 %v3271, %v3313
        %v3315 = vpop.f32.mrf.mxu0
        %v3316 = vadd.f32 %v3273, %v3315
        %3317 = vdwg.mxu0
        %v3318 = vadd.f32 %v2997, %v3310
        %v3319 = vadd.f32 %v2998, %v3312
        %v3320 = vadd.f32 %v2999, %v3314
        %v3321 = vadd.f32 %v3000, %v3316
        %s3322 = scalar_lea.vmem %s3, 1120
        %v3323 = vld [vmem:[%s3322] sm:$0xff]
        %v3324 = vld [vmem:[%s3322 + $0x8] sm:$0xff]
        %v3325 = vld [vmem:[%s3322 + $0x10] sm:$0xff]
        %v3326 = vld [vmem:[%s3322 + $0x18] sm:$0xff]
        %v3327 = vld [vmem:[%s3322 + $0x20] sm:$0xff]
        %v3328 = vld [vmem:[%s3322 + $0x28] sm:$0xff]
        %v3329 = vld [vmem:[%s3322 + $0x30] sm:$0xff]
        %v3330 = vld [vmem:[%s3322 + $0x38] sm:$0xff]
        %v3331 = vld [vmem:[%s3322 + $0x40] sm:$0xff]
        %v3332 = vld [vmem:[%s3322 + $0x48] sm:$0xff]
        %v3333 = vld [vmem:[%s3322 + $0x50] sm:$0xff]
        %v3334 = vld [vmem:[%s3322 + $0x58] sm:$0xff]
        %v3335 = vld [vmem:[%s3322 + $0x60] sm:$0xff]
        %v3336 = vld [vmem:[%s3322 + $0x68] sm:$0xff]
        %v3337 = vld [vmem:[%s3322 + $0x70] sm:$0xff]
        %v3338 = vld [vmem:[%s3322 + $0x78] sm:$0xff]
        %v3339 = vld [vmem:[%s3322 + $0x80] sm:$0xff]
        %v3340 = vld [vmem:[%s3322 + $0x88] sm:$0xff]
        %v3341 = vld [vmem:[%s3322 + $0x90] sm:$0xff]
        %v3342 = vld [vmem:[%s3322 + $0x98] sm:$0xff]
        %v3343 = vld [vmem:[%s3322 + $0xa0] sm:$0xff]
        %v3344 = vld [vmem:[%s3322 + $0xa8] sm:$0xff]
        %v3345 = vld [vmem:[%s3322 + $0xb0] sm:$0xff]
        %v3346 = vld [vmem:[%s3322 + $0xb8] sm:$0xff]
        %v3347 = vld [vmem:[%s3322 + $0xc0] sm:$0xff]
        %v3348 = vld [vmem:[%s3322 + $0xc8] sm:$0xff]
        %v3349 = vld [vmem:[%s3322 + $0xd0] sm:$0xff]
        %v3350 = vld [vmem:[%s3322 + $0xd8] sm:$0xff]
        %v3351 = vld [vmem:[%s3322 + $0xe0] sm:$0xff]
        %v3352 = vld [vmem:[%s3322 + $0xe8] sm:$0xff]
        %v3353 = vld [vmem:[%s3322 + $0xf0] sm:$0xff]
        %v3354 = vld [vmem:[%s3322 + $0xf8] sm:$0xff]
        %v3355 = vld [vmem:[%s3322 + $0x100] sm:$0xff]
        %v3356 = vld [vmem:[%s3322 + $0x108] sm:$0xff]
        %v3357 = vld [vmem:[%s3322 + $0x110] sm:$0xff]
        %v3358 = vrot.slane %v2042, 2
        %v3359 = vrot.slane %v2043, 2
        %v3360 = vrot.slane %v2044, 2
        %v3398 = vunpack.c.l.b16 %v3323
        %v3399 = vunpack.c.h.b16 %v3323
        %v3400 = vunpack.c.l.b16 %v3324
        %v3401 = vunpack.c.h.b16 %v3324
        %v3402 = vunpack.c.l.b16 %v3325
        %v3403 = vunpack.c.h.b16 %v3325
        %v3404 = vunpack.c.l.b16 %v3326
        %v3405 = vunpack.c.h.b16 %v3326
        %v3406 = vunpack.c.l.b16 %v3327
        %v3407 = vunpack.c.h.b16 %v3327
        %v3408 = vunpack.c.l.b16 %v3328
        %v3409 = vunpack.c.h.b16 %v3328
        %v3410 = vunpack.c.l.b16 %v3329
        %v3411 = vunpack.c.h.b16 %v3329
        %v3412 = vunpack.c.l.b16 %v3330
        %v3413 = vunpack.c.h.b16 %v3330
        %v3414 = vunpack.c.l.b16 %v3331
        %v3415 = vunpack.c.h.b16 %v3331
        %v3416 = vunpack.c.l.b16 %v3332
        %v3417 = vunpack.c.h.b16 %v3332
        %v3418 = vunpack.c.l.b16 %v3333
        %v3419 = vunpack.c.h.b16 %v3333
        %v3420 = vunpack.c.l.b16 %v3334
        %v3421 = vunpack.c.h.b16 %v3334
        %v3422 = vunpack.c.l.b16 %v3335
        %v3423 = vunpack.c.h.b16 %v3335
        %v3424 = vunpack.c.l.b16 %v3336
        %v3425 = vunpack.c.h.b16 %v3336
        %v3426 = vunpack.c.l.b16 %v3337
        %v3427 = vunpack.c.h.b16 %v3337
        %v3428 = vunpack.c.l.b16 %v3338
        %v3429 = vunpack.c.h.b16 %v3338
        %v3430 = vunpack.c.l.b16 %v3339
        %v3431 = vunpack.c.h.b16 %v3339
        %v3432 = vunpack.c.l.b16 %v3340
        %v3433 = vunpack.c.h.b16 %v3340
        %v3434 = vunpack.c.l.b16 %v3341
        %v3435 = vunpack.c.h.b16 %v3341
        %v3436 = vunpack.c.l.b16 %v3342
        %v3437 = vunpack.c.h.b16 %v3342
        %v3438 = vunpack.c.l.b16 %v3343
        %v3439 = vunpack.c.h.b16 %v3343
        %v3440 = vunpack.c.l.b16 %v3344
        %v3441 = vunpack.c.h.b16 %v3344
        %v3442 = vunpack.c.l.b16 %v3345
        %v3443 = vunpack.c.h.b16 %v3345
        %v3444 = vunpack.c.l.b16 %v3346
        %v3445 = vunpack.c.h.b16 %v3346
        %v3446 = vunpack.c.l.b16 %v3347
        %v3447 = vunpack.c.h.b16 %v3347
        %v3448 = vunpack.c.l.b16 %v3348
        %v3449 = vunpack.c.h.b16 %v3348
        %v3450 = vunpack.c.l.b16 %v3349
        %v3451 = vunpack.c.h.b16 %v3349
        %v3452 = vunpack.c.l.b16 %v3350
        %v3453 = vunpack.c.h.b16 %v3350
        %v3454 = vunpack.c.l.b16 %v3351
        %v3455 = vunpack.c.h.b16 %v3351
        %v3456 = vunpack.c.l.b16 %v3352
        %v3457 = vunpack.c.h.b16 %v3352
        %v3458 = vunpack.c.l.b16 %v3353
        %v3459 = vunpack.c.h.b16 %v3353
        %v3460 = vunpack.c.l.b16 %v3354
        %v3461 = vunpack.c.h.b16 %v3354
        %v3462 = vunpack.c.l.b16 %v3355
        %v3463 = vunpack.c.h.b16 %v3355
        %v3464 = vunpack.c.l.b16 %v3356
        %v3465 = vunpack.c.h.b16 %v3356
        %v3466 = vunpack.c.l.b16 %v3357
        %v3467 = vunpack.c.h.b16 %v3357
        %v3468 = vpack.c.b16 %v3400, %v3398
        %v3469 = vpack.c.b16 %v3401, %v3399
        %v3470 = vpack.c.b16 %v3404, %v3402
        %v3471 = vpack.c.b16 %v3405, %v3403
        %v3472 = vpack.c.b16 %v3408, %v3406
        %v3473 = vpack.c.b16 %v3409, %v3407
        %v3474 = vpack.c.b16 %v3412, %v3410
        %v3475 = vpack.c.b16 %v3413, %v3411
        %v3476 = vpack.c.b16 %v3416, %v3414
        %v3477 = vpack.c.b16 %v3417, %v3415
        %v3478 = vpack.c.b16 %v3420, %v3418
        %v3479 = vpack.c.b16 %v3421, %v3419
        %v3480 = vpack.c.b16 %v3424, %v3422
        %v3481 = vpack.c.b16 %v3425, %v3423
        %v3482 = vpack.c.b16 %v3428, %v3426
        %v3483 = vpack.c.b16 %v3429, %v3427
        %v3484 = vpack.c.b16 %v3432, %v3430
        %v3485 = vpack.c.b16 %v3433, %v3431
        %v3486 = vpack.c.b16 %v3436, %v3434
        %v3487 = vpack.c.b16 %v3437, %v3435
        %v3488 = vpack.c.b16 %v3440, %v3438
        %v3489 = vpack.c.b16 %v3441, %v3439
        %v3490 = vpack.c.b16 %v3444, %v3442
        %v3491 = vpack.c.b16 %v3445, %v3443
        %v3492 = vpack.c.b16 %v3448, %v3446
        %v3493 = vpack.c.b16 %v3449, %v3447
        %v3494 = vpack.c.b16 %v3452, %v3450
        %v3495 = vpack.c.b16 %v3453, %v3451
        %v3496 = vpack.c.b16 %v3456, %v3454
        %v3497 = vpack.c.b16 %v3457, %v3455
        %v3498 = vpack.c.b16 %v3460, %v3458
        %v3499 = vpack.c.b16 %v3461, %v3459
        %v3500 = vpack.c.b16 %v3464, %v3462
        %v3501 = vpack.c.b16 %v3465, %v3463
        %v3502 = vpack.c.b16 %v3466, %v3466
        %v3503 = vpack.c.b16 %v3467, %v3467
        %v3539 = vsel %vm2314, %v3360, 0
        %v3542 = vand.u32 %v3502, %v2321
        %v3545 = vand.u32 %v3503, %v2321
        %3547 = vmatprep.subr.bf16.mxu0 %v3483
        %3548 = vmatpush1.bf16.msra.mxu0 %v3482
        %3549 = vmatprep.subr.bf16.mxu0 %v3481
        %3550 = vmatpush1.bf16.msra.mxu0 %v3480
        %3551 = vmatprep.subr.bf16.mxu0 %v3479
        %3552 = vmatpush1.bf16.msra.mxu0 %v3478
        %3553 = vmatprep.subr.bf16.mxu0 %v3477
        %3554 = vmatpush1.bf16.msra.mxu0 %v3476
        %3555 = vmatprep.subr.bf16.mxu0 %v3475
        %3556 = vmatpush1.bf16.msra.mxu0 %v3474
        %3557 = vmatprep.subr.bf16.mxu0 %v3473
        %3558 = vmatpush1.bf16.msra.mxu0 %v3472
        %3559 = vmatprep.subr.bf16.mxu0 %v3471
        %3560 = vmatpush1.bf16.msra.mxu0 %v3470
        %3561 = vmatprep.subr.bf16.mxu0 %v3469
        %3562 = vmatpush1.bf16.msra.mxu0 %v3468
        %3563 = vmatprep.subr.bf16.mxu0 %v3499
        %3564 = vmatpush2.bf16.msra.mxu0 %v3498
        %3565 = vmatprep.subr.bf16.mxu0 %v3497
        %3566 = vmatpush2.bf16.msra.mxu0 %v3496
        %3567 = vmatprep.subr.bf16.mxu0 %v3495
        %3568 = vmatpush2.bf16.msra.mxu0 %v3494
        %3569 = vmatprep.subr.bf16.mxu0 %v3493
        %3570 = vmatpush2.bf16.msra.mxu0 %v3492
        %3571 = vmatprep.subr.bf16.mxu0 %v3491
        %3572 = vmatpush2.bf16.msra.mxu0 %v3490
        %3573 = vmatprep.subr.bf16.mxu0 %v3489
        %3574 = vmatpush2.bf16.msra.mxu0 %v3488
        %3575 = vmatprep.subr.bf16.mxu0 %v3487
        %3576 = vmatpush2.bf16.msra.mxu0 %v3486
        %3577 = vmatprep.subr.bf16.mxu0 %v3485
        %3578 = vmatpush2.bf16.msra.mxu0 %v3484
        %3579 = vmatprep.mubr.bf16.mxu0 %v3359
        %3580 = vmatmul.mubr.bf16.gmra.mxu0 %v3358
        %v3581 = vpop.f32.mrf.mxu0
        %v3582 = vadd.f32 0.0, %v3581
        %v3583 = vpop.f32.mrf.mxu0
        %v3584 = vadd.f32 0.0, %v3583
        %v3585 = vpop.f32.mrf.mxu0
        %v3586 = vadd.f32 0.0, %v3585
        %v3587 = vpop.f32.mrf.mxu0
        %v3588 = vadd.f32 0.0, %v3587
        %3589 = vdwg.mxu0
        %3590 = vmatprep.subr.bf16.mxu0 0
        %3591 = vmatpush1.bf16.msra.mxu0 0
        %3592 = vmatprep.subr.bf16.mxu0 0
        %3593 = vmatpush1.bf16.msra.mxu0 0
        %3594 = vmatprep.subr.bf16.mxu0 0
        %3595 = vmatpush1.bf16.msra.mxu0 0
        %3596 = vmatprep.subr.bf16.mxu0 0
        %3597 = vmatpush1.bf16.msra.mxu0 0
        %3598 = vmatprep.subr.bf16.mxu0 0
        %3599 = vmatpush1.bf16.msra.mxu0 0
        %3600 = vmatprep.subr.bf16.mxu0 0
        %3601 = vmatpush1.bf16.msra.mxu0 0
        %3602 = vmatprep.subr.bf16.mxu0 %v3545
        %3603 = vmatpush1.bf16.msra.mxu0 %v3542
        %3604 = vmatprep.subr.bf16.mxu0 %v3501
        %3605 = vmatpush1.bf16.msra.mxu0 %v3500
        %3606 = vmatprep.subr.bf16.mxu0 0
        %3607 = vmatpush2.bf16.msra.mxu0 0
        %3608 = vmatprep.subr.bf16.mxu0 0
        %3609 = vmatpush2.bf16.msra.mxu0 0
        %3610 = vmatprep.subr.bf16.mxu0 0
        %3611 = vmatpush2.bf16.msra.mxu0 0
        %3612 = vmatprep.subr.bf16.mxu0 0
        %3613 = vmatpush2.bf16.msra.mxu0 0
        %3614 = vmatprep.subr.bf16.mxu0 0
        %3615 = vmatpush2.bf16.msra.mxu0 0
        %3616 = vmatprep.subr.bf16.mxu0 0
        %3617 = vmatpush2.bf16.msra.mxu0 0
        %3618 = vmatprep.subr.bf16.mxu0 0
        %3619 = vmatpush2.bf16.msra.mxu0 0
        %3620 = vmatprep.subr.bf16.mxu0 0
        %3621 = vmatpush2.bf16.msra.mxu0 0
        %3622 = vmatprep.mubr.bf16.mxu0 0
        %3623 = vmatmul.mubr.bf16.gmra.mxu0 %v3539
        %v3624 = vpop.f32.mrf.mxu0
        %v3625 = vadd.f32 %v3582, %v3624
        %v3626 = vpop.f32.mrf.mxu0
        %v3627 = vadd.f32 %v3584, %v3626
        %v3628 = vpop.f32.mrf.mxu0
        %v3629 = vadd.f32 %v3586, %v3628
        %v3630 = vpop.f32.mrf.mxu0
        %v3631 = vadd.f32 %v3588, %v3630
        %3632 = vdwg.mxu0
        %v3633 = vadd.f32 %v3318, %v3625
        %v3634 = vadd.f32 %v3319, %v3627
        %v3635 = vadd.f32 %v3320, %v3629
        %v3636 = vadd.f32 %v3321, %v3631
        %v3637 = vld [vmem:[%s4] sm:$0x3]
        %v3639 = vlaneseq
        %v3640 = vshrl.u32 %v3639, 7
        %v3641 = vsub.s32 0, %v3640
        %v3642 = vrot.slane %v3637, %v3641
        %v3643 = vlaneseq
        %v3644 = vshrl.u32 %v3643, 7
        %v3645 = vsub.s32 1, %v3644
        %v3646 = vrot.slane %v3637, %v3645
        %v3649 = vadd.f32 %v3633, %v3642
        %v3650 = vadd.f32 %v3634, %v3646
        %v3651 = vadd.f32 %v3635, %v3642
        %v3652 = vadd.f32 %v3636, %v3646
        %v3653 = vmax.f32 %v3649, 0.0
        %v3654 = vmax.f32 %v3650, 0.0
        %v3655 = vmax.f32 %v3651, 0.0
        %v3656 = vmax.f32 %v3652, 0.0
        %v3661 = vrot.slane %v3653, 1
        %v3662 = vrot.slane %v3655, 1
        %v3663 = vsel %vm1840, %v3661, %v3662
        %v3664 = vrot.slane %v3654, 1
        %v3665 = vrot.slane %v3656, 1
        %v3666 = vsel %vm1840, %v3664, %v3665
        %v3671 = vmax.f32 %v3653, %v3663
        %v3672 = vmax.f32 %v3654, %v3666
        %v3673 = vmax.f32 %v3655, %v3662
        %v3674 = vmax.f32 %v3656, %v3665
        %v3675 = vpack.c.bf16 %v1897, %v1897
        %v3676 = vpack.c.bf16 %v3673, %v3671
        %v3677 = vpack.c.bf16 %v3674, %v3672
        %vm3678 = vcmask 72704
        %v3680 = vsel %vm3678, %v3675, 0
        %v3682 = vsel %vm2319, 4294967295, 65535
        %v3683 = vsel %vm1910, %v3682, 0
        %v3685 = vand.u32 %v3676, %v3683
        %v3688 = vand.u32 %v3677, %v3683
        %3690 = vmatprep.subr.bf16.mxu0 0
        %3691 = vmatpush1.bf16.msra.mxu0 0
        %3692 = vmatprep.subr.bf16.mxu0 0
        %3693 = vmatpush1.bf16.msra.mxu0 0
        %3694 = vmatprep.subr.bf16.mxu0 0
        %3695 = vmatpush1.bf16.msra.mxu0 0
        %3696 = vmatprep.subr.bf16.mxu0 0
        %3697 = vmatpush1.bf16.msra.mxu0 0
        %3698 = vmatprep.subr.bf16.mxu0 0
        %3699 = vmatpush1.bf16.msra.mxu0 0
        %3700 = vmatprep.subr.bf16.mxu0 0
        %3701 = vmatpush1.bf16.msra.mxu0 0
        %3702 = vmatprep.subr.bf16.mxu0 0
        %3703 = vmatpush1.bf16.msra.mxu0 0
        %3704 = vmatprep.subr.bf16.mxu0 %v3688
        %3705 = vmatpush1.bf16.msra.mxu0 %v3685
        %3706 = vmatprep.subr.bf16.mxu0 0
        %3707 = vmatpush2.bf16.msra.mxu0 0
        %3708 = vmatprep.subr.bf16.mxu0 0
        %3709 = vmatpush2.bf16.msra.mxu0 0
        %3710 = vmatprep.subr.bf16.mxu0 0
        %3711 = vmatpush2.bf16.msra.mxu0 0
        %3712 = vmatprep.subr.bf16.mxu0 0
        %3713 = vmatpush2.bf16.msra.mxu0 0
        %3714 = vmatprep.subr.bf16.mxu0 0
        %3715 = vmatpush2.bf16.msra.mxu0 0
        %3716 = vmatprep.subr.bf16.mxu0 0
        %3717 = vmatpush2.bf16.msra.mxu0 0
        %3718 = vmatprep.subr.bf16.mxu0 0
        %3719 = vmatpush2.bf16.msra.mxu0 0
        %3720 = vmatprep.subr.bf16.mxu0 0
        %3721 = vmatpush2.bf16.msra.mxu0 0
        %3722 = vmatprep.mubr.bf16.mxu0 0
        %3723 = vmatmul.mubr.bf16.gmra.mxu0 %v3680
        %v3724 = vpop.f32.mrf.mxu0
        %v3725 = vadd.f32 0.0, %v3724
        %v3726 = vpop.f32.mrf.mxu0
        %v3727 = vadd.f32 0.0, %v3726
        %v3728 = vpop.f32.mrf.mxu0
        %v3729 = vpop.f32.mrf.mxu0
        %3730 = vdwg.mxu0
        %3733 = vrot.lane.b32.xlu0 %v3725, 127
        %v3734 = vpop.permute.xlu0 %3733
        %3735 = vrot.lane.b32.xlu0 %v3727, 127
        %v3736 = vpop.permute.xlu0 %3735
        %v3737 = vsel %vm2025, %v3734, %v3736
        %v3740 = vmax.f32 %v3725, %v3737
        %v3741 = vmax.f32 %v3727, %v3736
        %v3742 = vpack.c.bf16 %v3740, %v3740
        %v3743 = vpack.c.bf16 %v3741, %v3741
        %v3744 = vld [vmem:[%s5] sm:$0xff]
        %v3745 = vld [vmem:[%s5 + $0x8] sm:$0xff]
        %v3746 = vld [vmem:[%s5 + $0x10] sm:$0xff]
        %v3747 = vld [vmem:[%s5 + $0x18] sm:$0xff]
        %v3748 = vld [vmem:[%s5 + $0x20] sm:$0xff]
        %v3749 = vld [vmem:[%s5 + $0x28] sm:$0xff]
        %v3750 = vld [vmem:[%s5 + $0x30] sm:$0xff]
        %v3751 = vld [vmem:[%s5 + $0x38] sm:$0xff]
        %v3752 = vld [vmem:[%s5 + $0x40] sm:$0xff]
        %v3753 = vld [vmem:[%s5 + $0x48] sm:$0xff]
        %v3754 = vld [vmem:[%s5 + $0x50] sm:$0xff]
        %v3755 = vld [vmem:[%s5 + $0x58] sm:$0xff]
        %v3756 = vld [vmem:[%s5 + $0x60] sm:$0xff]
        %v3757 = vld [vmem:[%s5 + $0x68] sm:$0xff]
        %v3758 = vld [vmem:[%s5 + $0x70] sm:$0xff]
        %v3759 = vld [vmem:[%s5 + $0x78] sm:$0xff]
        %v3760 = vld [vmem:[%s5 + $0x80] sm:$0xff]
        %v3761 = vld [vmem:[%s5 + $0x88] sm:$0xff]
        %v3762 = vld [vmem:[%s5 + $0x90] sm:$0xff]
        %v3763 = vld [vmem:[%s5 + $0x98] sm:$0xff]
        %v3764 = vld [vmem:[%s5 + $0xa0] sm:$0xff]
        %v3765 = vld [vmem:[%s5 + $0xa8] sm:$0xff]
        %v3766 = vld [vmem:[%s5 + $0xb0] sm:$0xff]
        %v3767 = vld [vmem:[%s5 + $0xb8] sm:$0xff]
        %v3768 = vld [vmem:[%s5 + $0xc0] sm:$0xff]
        %s3769 = scalar_lea.vmem %s5, 200
        %v3770 = vld [vmem:[%s3769] sm:$0xff]
        %v3771 = vld [vmem:[%s3769 + $0x8] sm:$0xff]
        %v3772 = vld [vmem:[%s3769 + $0x10] sm:$0xff]
        %v3773 = vld [vmem:[%s3769 + $0x18] sm:$0xff]
        %v3774 = vld [vmem:[%s3769 + $0x20] sm:$0xff]
        %v3775 = vld [vmem:[%s3769 + $0x28] sm:$0xff]
        %v3776 = vld [vmem:[%s3769 + $0x30] sm:$0xff]
        %v3777 = vld [vmem:[%s3769 + $0x38] sm:$0xff]
        %v3778 = vld [vmem:[%s3769 + $0x40] sm:$0xff]
        %v3779 = vld [vmem:[%s3769 + $0x48] sm:$0xff]
        %v3780 = vld [vmem:[%s3769 + $0x50] sm:$0xff]
        %v3781 = vld [vmem:[%s3769 + $0x58] sm:$0xff]
        %v3782 = vld [vmem:[%s3769 + $0x60] sm:$0xff]
        %v3783 = vld [vmem:[%s3769 + $0x68] sm:$0xff]
        %v3784 = vld [vmem:[%s3769 + $0x70] sm:$0xff]
        %v3785 = vld [vmem:[%s3769 + $0x78] sm:$0xff]
        %v3786 = vld [vmem:[%s3769 + $0x80] sm:$0xff]
        %v3787 = vld [vmem:[%s3769 + $0x88] sm:$0xff]
        %v3788 = vld [vmem:[%s3769 + $0x90] sm:$0xff]
        %v3789 = vld [vmem:[%s3769 + $0x98] sm:$0xff]
        %v3790 = vld [vmem:[%s3769 + $0xa0] sm:$0xff]
        %v3791 = vld [vmem:[%s3769 + $0xa8] sm:$0xff]
        %v3792 = vld [vmem:[%s3769 + $0xb0] sm:$0xff]
        %v3793 = vld [vmem:[%s3769 + $0xb8] sm:$0xff]
        %v3794 = vld [vmem:[%s3769 + $0xc0] sm:$0xff]
        %v3796 = vshrl.u32 %v3742, 16
        %v3799 = vshrl.u32 %v3743, 16
        %v3827 = vunpack.c.l.b16 %v3770
        %v3828 = vunpack.c.h.b16 %v3770
        %v3829 = vunpack.c.l.b16 %v3771
        %v3830 = vunpack.c.h.b16 %v3771
        %v3831 = vunpack.c.l.b16 %v3772
        %v3832 = vunpack.c.h.b16 %v3772
        %v3833 = vunpack.c.l.b16 %v3773
        %v3834 = vunpack.c.h.b16 %v3773
        %v3835 = vunpack.c.l.b16 %v3774
        %v3836 = vunpack.c.h.b16 %v3774
        %v3837 = vunpack.c.l.b16 %v3775
        %v3838 = vunpack.c.h.b16 %v3775
        %v3839 = vunpack.c.l.b16 %v3776
        %v3840 = vunpack.c.h.b16 %v3776
        %v3841 = vunpack.c.l.b16 %v3777
        %v3842 = vunpack.c.h.b16 %v3777
        %v3843 = vunpack.c.l.b16 %v3778
        %v3844 = vunpack.c.h.b16 %v3778
        %v3845 = vunpack.c.l.b16 %v3779
        %v3846 = vunpack.c.h.b16 %v3779
        %v3847 = vunpack.c.l.b16 %v3780
        %v3848 = vunpack.c.h.b16 %v3780
        %v3849 = vunpack.c.l.b16 %v3781
        %v3850 = vunpack.c.h.b16 %v3781
        %v3851 = vunpack.c.l.b16 %v3782
        %v3852 = vunpack.c.h.b16 %v3782
        %v3853 = vunpack.c.l.b16 %v3783
        %v3854 = vunpack.c.h.b16 %v3783
        %v3855 = vunpack.c.l.b16 %v3784
        %v3856 = vunpack.c.h.b16 %v3784
        %v3857 = vunpack.c.l.b16 %v3785
        %v3858 = vunpack.c.h.b16 %v3785
        %v3859 = vunpack.c.l.b16 %v3786
        %v3860 = vunpack.c.h.b16 %v3786
        %v3861 = vunpack.c.l.b16 %v3787
        %v3862 = vunpack.c.h.b16 %v3787
        %v3863 = vunpack.c.l.b16 %v3788
        %v3864 = vunpack.c.h.b16 %v3788
        %v3865 = vunpack.c.l.b16 %v3789
        %v3866 = vunpack.c.h.b16 %v3789
        %v3867 = vunpack.c.l.b16 %v3790
        %v3868 = vunpack.c.h.b16 %v3790
        %v3869 = vunpack.c.l.b16 %v3791
        %v3870 = vunpack.c.h.b16 %v3791
        %v3871 = vunpack.c.l.b16 %v3792
        %v3872 = vunpack.c.h.b16 %v3792
        %v3873 = vunpack.c.l.b16 %v3793
        %v3874 = vunpack.c.h.b16 %v3793
        %v3875 = vunpack.c.l.b16 %v3794
        %v3876 = vunpack.c.h.b16 %v3794
        %v3877 = vpack.c.b16 %v3829, %v3827
        %v3878 = vpack.c.b16 %v3830, %v3828
        %v3879 = vpack.c.b16 %v3833, %v3831
        %v3880 = vpack.c.b16 %v3834, %v3832
        %v3881 = vpack.c.b16 %v3837, %v3835
        %v3882 = vpack.c.b16 %v3838, %v3836
        %v3883 = vpack.c.b16 %v3841, %v3839
        %v3884 = vpack.c.b16 %v3842, %v3840
        %v3885 = vpack.c.b16 %v3845, %v3843
        %v3886 = vpack.c.b16 %v3846, %v3844
        %v3887 = vpack.c.b16 %v3849, %v3847
        %v3888 = vpack.c.b16 %v3850, %v3848
        %v3889 = vpack.c.b16 %v3853, %v3851
        %v3890 = vpack.c.b16 %v3854, %v3852
        %v3891 = vpack.c.b16 %v3857, %v3855
        %v3892 = vpack.c.b16 %v3858, %v3856
        %v3893 = vpack.c.b16 %v3861, %v3859
        %v3894 = vpack.c.b16 %v3862, %v3860
        %v3895 = vpack.c.b16 %v3865, %v3863
        %v3896 = vpack.c.b16 %v3866, %v3864
        %v3897 = vpack.c.b16 %v3869, %v3867
        %v3898 = vpack.c.b16 %v3870, %v3868
        %v3899 = vpack.c.b16 %v3873, %v3871
        %v3900 = vpack.c.b16 %v3874, %v3872
        %v3901 = vpack.c.b16 %v3875, %v3875
        %v3902 = vpack.c.b16 %v3876, %v3876
        %vm3927 = vcmask 580608
        %v3929 = vsel %vm3927, %v3799, 0
        %v3932 = vand.u32 %v3901, %v2321
        %v3935 = vand.u32 %v3902, %v2321
        %3937 = vmatprep.subr.bf16.mxu0 %v3892
        %3938 = vmatpush1.bf16.msra.mxu0 %v3891
        %3939 = vmatprep.subr.bf16.mxu0 %v3890
        %3940 = vmatpush1.bf16.msra.mxu0 %v3889
        %3941 = vmatprep.subr.bf16.mxu0 %v3888
        %3942 = vmatpush1.bf16.msra.mxu0 %v3887
        %3943 = vmatprep.subr.bf16.mxu0 %v3886
        %3944 = vmatpush1.bf16.msra.mxu0 %v3885
        %3945 = vmatprep.subr.bf16.mxu0 %v3884
        %3946 = vmatpush1.bf16.msra.mxu0 %v3883
        %3947 = vmatprep.subr.bf16.mxu0 %v3882
        %3948 = vmatpush1.bf16.msra.mxu0 %v3881
        %3949 = vmatprep.subr.bf16.mxu0 %v3880
        %3950 = vmatpush1.bf16.msra.mxu0 %v3879
        %3951 = vmatprep.subr.bf16.mxu0 %v3878
        %3952 = vmatpush1.bf16.msra.mxu0 %v3877
        %3953 = vmatprep.subr.bf16.mxu0 0
        %3954 = vmatpush2.bf16.msra.mxu0 0
        %3955 = vmatprep.subr.bf16.mxu0 0
        %3956 = vmatpush2.bf16.msra.mxu0 0
        %3957 = vmatprep.subr.bf16.mxu0 0
        %3958 = vmatpush2.bf16.msra.mxu0 0
        %3959 = vmatprep.subr.bf16.mxu0 %v3935
        %3960 = vmatpush2.bf16.msra.mxu0 %v3932
        %3961 = vmatprep.subr.bf16.mxu0 %v3900
        %3962 = vmatpush2.bf16.msra.mxu0 %v3899
        %3963 = vmatprep.subr.bf16.mxu0 %v3898
        %3964 = vmatpush2.bf16.msra.mxu0 %v3897
        %3965 = vmatprep.subr.bf16.mxu0 %v3896
        %3966 = vmatpush2.bf16.msra.mxu0 %v3895
        %3967 = vmatprep.subr.bf16.mxu0 %v3894
        %3968 = vmatpush2.bf16.msra.mxu0 %v3893
        %3969 = vmatprep.mubr.bf16.mxu0 %v3929
        %3970 = vmatmul.mubr.bf16.gmra.mxu0 %v3796
        %v3971 = vpop.f32.mrf.mxu0
        %v3972 = vadd.f32 0.0, %v3971
        %v3973 = vpop.f32.mrf.mxu0
        %v3974 = vadd.f32 0.0, %v3973
        %v3975 = vpop.f32.mrf.mxu0
        %v3976 = vpop.f32.mrf.mxu0
        %3977 = vdwg.mxu0
        %v4003 = vunpack.c.l.b16 %v3744
        %v4004 = vunpack.c.h.b16 %v3744
        %v4005 = vunpack.c.l.b16 %v3745
        %v4006 = vunpack.c.h.b16 %v3745
        %v4007 = vunpack.c.l.b16 %v3746
        %v4008 = vunpack.c.h.b16 %v3746
        %v4009 = vunpack.c.l.b16 %v3747
        %v4010 = vunpack.c.h.b16 %v3747
        %v4011 = vunpack.c.l.b16 %v3748
        %v4012 = vunpack.c.h.b16 %v3748
        %v4013 = vunpack.c.l.b16 %v3749
        %v4014 = vunpack.c.h.b16 %v3749
        %v4015 = vunpack.c.l.b16 %v3750
        %v4016 = vunpack.c.h.b16 %v3750
        %v4017 = vunpack.c.l.b16 %v3751
        %v4018 = vunpack.c.h.b16 %v3751
        %v4019 = vunpack.c.l.b16 %v3752
        %v4020 = vunpack.c.h.b16 %v3752
        %v4021 = vunpack.c.l.b16 %v3753
        %v4022 = vunpack.c.h.b16 %v3753
        %v4023 = vunpack.c.l.b16 %v3754
        %v4024 = vunpack.c.h.b16 %v3754
        %v4025 = vunpack.c.l.b16 %v3755
        %v4026 = vunpack.c.h.b16 %v3755
        %v4027 = vunpack.c.l.b16 %v3756
        %v4028 = vunpack.c.h.b16 %v3756
        %v4029 = vunpack.c.l.b16 %v3757
        %v4030 = vunpack.c.h.b16 %v3757
        %v4031 = vunpack.c.l.b16 %v3758
        %v4032 = vunpack.c.h.b16 %v3758
        %v4033 = vunpack.c.l.b16 %v3759
        %v4034 = vunpack.c.h.b16 %v3759
        %v4035 = vunpack.c.l.b16 %v3760
        %v4036 = vunpack.c.h.b16 %v3760
        %v4037 = vunpack.c.l.b16 %v3761
        %v4038 = vunpack.c.h.b16 %v3761
        %v4039 = vunpack.c.l.b16 %v3762
        %v4040 = vunpack.c.h.b16 %v3762
        %v4041 = vunpack.c.l.b16 %v3763
        %v4042 = vunpack.c.h.b16 %v3763
        %v4043 = vunpack.c.l.b16 %v3764
        %v4044 = vunpack.c.h.b16 %v3764
        %v4045 = vunpack.c.l.b16 %v3765
        %v4046 = vunpack.c.h.b16 %v3765
        %v4047 = vunpack.c.l.b16 %v3766
        %v4048 = vunpack.c.h.b16 %v3766
        %v4049 = vunpack.c.l.b16 %v3767
        %v4050 = vunpack.c.h.b16 %v3767
        %v4051 = vunpack.c.l.b16 %v3768
        %v4052 = vunpack.c.h.b16 %v3768
        %v4053 = vpack.c.b16 %v4005, %v4003
        %v4054 = vpack.c.b16 %v4006, %v4004
        %v4055 = vpack.c.b16 %v4009, %v4007
        %v4056 = vpack.c.b16 %v4010, %v4008
        %v4057 = vpack.c.b16 %v4013, %v4011
        %v4058 = vpack.c.b16 %v4014, %v4012
        %v4059 = vpack.c.b16 %v4017, %v4015
        %v4060 = vpack.c.b16 %v4018, %v4016
        %v4061 = vpack.c.b16 %v4021, %v4019
        %v4062 = vpack.c.b16 %v4022, %v4020
        %v4063 = vpack.c.b16 %v4025, %v4023
        %v4064 = vpack.c.b16 %v4026, %v4024
        %v4065 = vpack.c.b16 %v4029, %v4027
        %v4066 = vpack.c.b16 %v4030, %v4028
        %v4067 = vpack.c.b16 %v4033, %v4031
        %v4068 = vpack.c.b16 %v4034, %v4032
        %v4069 = vpack.c.b16 %v4037, %v4035
        %v4070 = vpack.c.b16 %v4038, %v4036
        %v4071 = vpack.c.b16 %v4041, %v4039
        %v4072 = vpack.c.b16 %v4042, %v4040
        %v4073 = vpack.c.b16 %v4045, %v4043
        %v4074 = vpack.c.b16 %v4046, %v4044
        %v4075 = vpack.c.b16 %v4049, %v4047
        %v4076 = vpack.c.b16 %v4050, %v4048
        %v4077 = vpack.c.b16 %v4051, %v4051
        %v4078 = vpack.c.b16 %v4052, %v4052
        %v4103 = vsel %vm3927, %v3743, 0
        %v4106 = vand.u32 %v4077, %v2321
        %v4109 = vand.u32 %v4078, %v2321
        %4111 = vmatprep.subr.bf16.mxu0 %v4068
        %4112 = vmatpush1.bf16.msra.mxu0 %v4067
        %4113 = vmatprep.subr.bf16.mxu0 %v4066
        %4114 = vmatpush1.bf16.msra.mxu0 %v4065
        %4115 = vmatprep.subr.bf16.mxu0 %v4064
        %4116 = vmatpush1.bf16.msra.mxu0 %v4063
        %4117 = vmatprep.subr.bf16.mxu0 %v4062
        %4118 = vmatpush1.bf16.msra.mxu0 %v4061
        %4119 = vmatprep.subr.bf16.mxu0 %v4060
        %4120 = vmatpush1.bf16.msra.mxu0 %v4059
        %4121 = vmatprep.subr.bf16.mxu0 %v4058
        %4122 = vmatpush1.bf16.msra.mxu0 %v4057
        %4123 = vmatprep.subr.bf16.mxu0 %v4056
        %4124 = vmatpush1.bf16.msra.mxu0 %v4055
        %4125 = vmatprep.subr.bf16.mxu0 %v4054
        %4126 = vmatpush1.bf16.msra.mxu0 %v4053
        %4127 = vmatprep.subr.bf16.mxu0 0
        %4128 = vmatpush2.bf16.msra.mxu0 0
        %4129 = vmatprep.subr.bf16.mxu0 0
        %4130 = vmatpush2.bf16.msra.mxu0 0
        %4131 = vmatprep.subr.bf16.mxu0 0
        %4132 = vmatpush2.bf16.msra.mxu0 0
        %4133 = vmatprep.subr.bf16.mxu0 %v4109
        %4134 = vmatpush2.bf16.msra.mxu0 %v4106
        %4135 = vmatprep.subr.bf16.mxu0 %v4076
        %4136 = vmatpush2.bf16.msra.mxu0 %v4075
        %4137 = vmatprep.subr.bf16.mxu0 %v4074
        %4138 = vmatpush2.bf16.msra.mxu0 %v4073
        %4139 = vmatprep.subr.bf16.mxu0 %v4072
        %4140 = vmatpush2.bf16.msra.mxu0 %v4071
        %4141 = vmatprep.subr.bf16.mxu0 %v4070
        %4142 = vmatpush2.bf16.msra.mxu0 %v4069
        %4143 = vmatprep.mubr.bf16.mxu0 %v4103
        %4144 = vmatmul.mubr.bf16.gmra.mxu0 %v3742
        %v4145 = vpop.f32.mrf.mxu0
        %v4146 = vadd.f32 %v3972, %v4145
        %v4147 = vpop.f32.mrf.mxu0
        %v4148 = vadd.f32 %v3974, %v4147
        %v4149 = vpop.f32.mrf.mxu0
        %v4150 = vpop.f32.mrf.mxu0
        %4151 = vdwg.mxu0
        %s4152 = scalar_lea.vmem %s5, 400
        %v4153 = vld [vmem:[%s4152] sm:$0xff]
        %v4154 = vld [vmem:[%s4152 + $0x8] sm:$0xff]
        %v4155 = vld [vmem:[%s4152 + $0x10] sm:$0xff]
        %v4156 = vld [vmem:[%s4152 + $0x18] sm:$0xff]
        %v4157 = vld [vmem:[%s4152 + $0x20] sm:$0xff]
        %v4158 = vld [vmem:[%s4152 + $0x28] sm:$0xff]
        %v4159 = vld [vmem:[%s4152 + $0x30] sm:$0xff]
        %v4160 = vld [vmem:[%s4152 + $0x38] sm:$0xff]
        %v4161 = vld [vmem:[%s4152 + $0x40] sm:$0xff]
        %v4162 = vld [vmem:[%s4152 + $0x48] sm:$0xff]
        %v4163 = vld [vmem:[%s4152 + $0x50] sm:$0xff]
        %v4164 = vld [vmem:[%s4152 + $0x58] sm:$0xff]
        %v4165 = vld [vmem:[%s4152 + $0x60] sm:$0xff]
        %v4166 = vld [vmem:[%s4152 + $0x68] sm:$0xff]
        %v4167 = vld [vmem:[%s4152 + $0x70] sm:$0xff]
        %v4168 = vld [vmem:[%s4152 + $0x78] sm:$0xff]
        %v4169 = vld [vmem:[%s4152 + $0x80] sm:$0xff]
        %v4170 = vld [vmem:[%s4152 + $0x88] sm:$0xff]
        %v4171 = vld [vmem:[%s4152 + $0x90] sm:$0xff]
        %v4172 = vld [vmem:[%s4152 + $0x98] sm:$0xff]
        %v4173 = vld [vmem:[%s4152 + $0xa0] sm:$0xff]
        %v4174 = vld [vmem:[%s4152 + $0xa8] sm:$0xff]
        %v4175 = vld [vmem:[%s4152 + $0xb0] sm:$0xff]
        %v4176 = vld [vmem:[%s4152 + $0xb8] sm:$0xff]
        %v4177 = vld [vmem:[%s4152 + $0xc0] sm:$0xff]
        %v4180 = vrot.slane %v3742, 1
        %v4181 = vrot.slane %v3743, 1
        %v4208 = vunpack.c.l.b16 %v4153
        %v4209 = vunpack.c.h.b16 %v4153
        %v4210 = vunpack.c.l.b16 %v4154
        %v4211 = vunpack.c.h.b16 %v4154
        %v4212 = vunpack.c.l.b16 %v4155
        %v4213 = vunpack.c.h.b16 %v4155
        %v4214 = vunpack.c.l.b16 %v4156
        %v4215 = vunpack.c.h.b16 %v4156
        %v4216 = vunpack.c.l.b16 %v4157
        %v4217 = vunpack.c.h.b16 %v4157
        %v4218 = vunpack.c.l.b16 %v4158
        %v4219 = vunpack.c.h.b16 %v4158
        %v4220 = vunpack.c.l.b16 %v4159
        %v4221 = vunpack.c.h.b16 %v4159
        %v4222 = vunpack.c.l.b16 %v4160
        %v4223 = vunpack.c.h.b16 %v4160
        %v4224 = vunpack.c.l.b16 %v4161
        %v4225 = vunpack.c.h.b16 %v4161
        %v4226 = vunpack.c.l.b16 %v4162
        %v4227 = vunpack.c.h.b16 %v4162
        %v4228 = vunpack.c.l.b16 %v4163
        %v4229 = vunpack.c.h.b16 %v4163
        %v4230 = vunpack.c.l.b16 %v4164
        %v4231 = vunpack.c.h.b16 %v4164
        %v4232 = vunpack.c.l.b16 %v4165
        %v4233 = vunpack.c.h.b16 %v4165
        %v4234 = vunpack.c.l.b16 %v4166
        %v4235 = vunpack.c.h.b16 %v4166
        %v4236 = vunpack.c.l.b16 %v4167
        %v4237 = vunpack.c.h.b16 %v4167
        %v4238 = vunpack.c.l.b16 %v4168
        %v4239 = vunpack.c.h.b16 %v4168
        %v4240 = vunpack.c.l.b16 %v4169
        %v4241 = vunpack.c.h.b16 %v4169
        %v4242 = vunpack.c.l.b16 %v4170
        %v4243 = vunpack.c.h.b16 %v4170
        %v4244 = vunpack.c.l.b16 %v4171
        %v4245 = vunpack.c.h.b16 %v4171
        %v4246 = vunpack.c.l.b16 %v4172
        %v4247 = vunpack.c.h.b16 %v4172
        %v4248 = vunpack.c.l.b16 %v4173
        %v4249 = vunpack.c.h.b16 %v4173
        %v4250 = vunpack.c.l.b16 %v4174
        %v4251 = vunpack.c.h.b16 %v4174
        %v4252 = vunpack.c.l.b16 %v4175
        %v4253 = vunpack.c.h.b16 %v4175
        %v4254 = vunpack.c.l.b16 %v4176
        %v4255 = vunpack.c.h.b16 %v4176
        %v4256 = vunpack.c.l.b16 %v4177
        %v4257 = vunpack.c.h.b16 %v4177
        %v4258 = vpack.c.b16 %v4210, %v4208
        %v4259 = vpack.c.b16 %v4211, %v4209
        %v4260 = vpack.c.b16 %v4214, %v4212
        %v4261 = vpack.c.b16 %v4215, %v4213
        %v4262 = vpack.c.b16 %v4218, %v4216
        %v4263 = vpack.c.b16 %v4219, %v4217
        %v4264 = vpack.c.b16 %v4222, %v4220
        %v4265 = vpack.c.b16 %v4223, %v4221
        %v4266 = vpack.c.b16 %v4226, %v4224
        %v4267 = vpack.c.b16 %v4227, %v4225
        %v4268 = vpack.c.b16 %v4230, %v4228
        %v4269 = vpack.c.b16 %v4231, %v4229
        %v4270 = vpack.c.b16 %v4234, %v4232
        %v4271 = vpack.c.b16 %v4235, %v4233
        %v4272 = vpack.c.b16 %v4238, %v4236
        %v4273 = vpack.c.b16 %v4239, %v4237
        %v4274 = vpack.c.b16 %v4242, %v4240
        %v4275 = vpack.c.b16 %v4243, %v4241
        %v4276 = vpack.c.b16 %v4246, %v4244
        %v4277 = vpack.c.b16 %v4247, %v4245
        %v4278 = vpack.c.b16 %v4250, %v4248
        %v4279 = vpack.c.b16 %v4251, %v4249
        %v4280 = vpack.c.b16 %v4254, %v4252
        %v4281 = vpack.c.b16 %v4255, %v4253
        %v4282 = vpack.c.b16 %v4256, %v4256
        %v4283 = vpack.c.b16 %v4257, %v4257
        %v4309 = vsel %vm3927, %v4181, 0
        %v4312 = vand.u32 %v4282, %v2321
        %v4315 = vand.u32 %v4283, %v2321
        %4317 = vmatprep.subr.bf16.mxu0 %v4273
        %4318 = vmatpush1.bf16.msra.mxu0 %v4272
        %4319 = vmatprep.subr.bf16.mxu0 %v4271
        %4320 = vmatpush1.bf16.msra.mxu0 %v4270
        %4321 = vmatprep.subr.bf16.mxu0 %v4269
        %4322 = vmatpush1.bf16.msra.mxu0 %v4268
        %4323 = vmatprep.subr.bf16.mxu0 %v4267
        %4324 = vmatpush1.bf16.msra.mxu0 %v4266
        %4325 = vmatprep.subr.bf16.mxu0 %v4265
        %4326 = vmatpush1.bf16.msra.mxu0 %v4264
        %4327 = vmatprep.subr.bf16.mxu0 %v4263
        %4328 = vmatpush1.bf16.msra.mxu0 %v4262
        %4329 = vmatprep.subr.bf16.mxu0 %v4261
        %4330 = vmatpush1.bf16.msra.mxu0 %v4260
        %4331 = vmatprep.subr.bf16.mxu0 %v4259
        %4332 = vmatpush1.bf16.msra.mxu0 %v4258
        %4333 = vmatprep.subr.bf16.mxu0 0
        %4334 = vmatpush2.bf16.msra.mxu0 0
        %4335 = vmatprep.subr.bf16.mxu0 0
        %4336 = vmatpush2.bf16.msra.mxu0 0
        %4337 = vmatprep.subr.bf16.mxu0 0
        %4338 = vmatpush2.bf16.msra.mxu0 0
        %4339 = vmatprep.subr.bf16.mxu0 %v4315
        %4340 = vmatpush2.bf16.msra.mxu0 %v4312
        %4341 = vmatprep.subr.bf16.mxu0 %v4281
        %4342 = vmatpush2.bf16.msra.mxu0 %v4280
        %4343 = vmatprep.subr.bf16.mxu0 %v4279
        %4344 = vmatpush2.bf16.msra.mxu0 %v4278
        %4345 = vmatprep.subr.bf16.mxu0 %v4277
        %4346 = vmatpush2.bf16.msra.mxu0 %v4276
        %4347 = vmatprep.subr.bf16.mxu0 %v4275
        %4348 = vmatpush2.bf16.msra.mxu0 %v4274
        %4349 = vmatprep.mubr.bf16.mxu0 %v4309
        %4350 = vmatmul.mubr.bf16.gmra.mxu0 %v4180
        %v4351 = vpop.f32.mrf.mxu0
        %v4352 = vadd.f32 0.0, %v4351
        %v4353 = vpop.f32.mrf.mxu0
        %v4354 = vadd.f32 0.0, %v4353
        %v4355 = vpop.f32.mrf.mxu0
        %v4356 = vpop.f32.mrf.mxu0
        %4357 = vdwg.mxu0
        %v4358 = vadd.f32 %v4146, %v4352
        %v4359 = vadd.f32 %v4148, %v4354
        %s4360 = scalar_lea.vmem %s5, 600
        %v4361 = vld [vmem:[%s4360] sm:$0xff]
        %v4362 = vld [vmem:[%s4360 + $0x8] sm:$0xff]
        %v4363 = vld [vmem:[%s4360 + $0x10] sm:$0xff]
        %v4364 = vld [vmem:[%s4360 + $0x18] sm:$0xff]
        %v4365 = vld [vmem:[%s4360 + $0x20] sm:$0xff]
        %v4366 = vld [vmem:[%s4360 + $0x28] sm:$0xff]
        %v4367 = vld [vmem:[%s4360 + $0x30] sm:$0xff]
        %v4368 = vld [vmem:[%s4360 + $0x38] sm:$0xff]
        %v4369 = vld [vmem:[%s4360 + $0x40] sm:$0xff]
        %v4370 = vld [vmem:[%s4360 + $0x48] sm:$0xff]
        %v4371 = vld [vmem:[%s4360 + $0x50] sm:$0xff]
        %v4372 = vld [vmem:[%s4360 + $0x58] sm:$0xff]
        %v4373 = vld [vmem:[%s4360 + $0x60] sm:$0xff]
        %v4374 = vld [vmem:[%s4360 + $0x68] sm:$0xff]
        %v4375 = vld [vmem:[%s4360 + $0x70] sm:$0xff]
        %v4376 = vld [vmem:[%s4360 + $0x78] sm:$0xff]
        %v4377 = vld [vmem:[%s4360 + $0x80] sm:$0xff]
        %v4378 = vld [vmem:[%s4360 + $0x88] sm:$0xff]
        %v4379 = vld [vmem:[%s4360 + $0x90] sm:$0xff]
        %v4380 = vld [vmem:[%s4360 + $0x98] sm:$0xff]
        %v4381 = vld [vmem:[%s4360 + $0xa0] sm:$0xff]
        %v4382 = vld [vmem:[%s4360 + $0xa8] sm:$0xff]
        %v4383 = vld [vmem:[%s4360 + $0xb0] sm:$0xff]
        %v4384 = vld [vmem:[%s4360 + $0xb8] sm:$0xff]
        %v4385 = vld [vmem:[%s4360 + $0xc0] sm:$0xff]
        %v4386 = vrot.slane %v3796, 1
        %v4387 = vrot.slane %v3799, 1
        %v4414 = vunpack.c.l.b16 %v4361
        %v4415 = vunpack.c.h.b16 %v4361
        %v4416 = vunpack.c.l.b16 %v4362
        %v4417 = vunpack.c.h.b16 %v4362
        %v4418 = vunpack.c.l.b16 %v4363
        %v4419 = vunpack.c.h.b16 %v4363
        %v4420 = vunpack.c.l.b16 %v4364
        %v4421 = vunpack.c.h.b16 %v4364
        %v4422 = vunpack.c.l.b16 %v4365
        %v4423 = vunpack.c.h.b16 %v4365
        %v4424 = vunpack.c.l.b16 %v4366
        %v4425 = vunpack.c.h.b16 %v4366
        %v4426 = vunpack.c.l.b16 %v4367
        %v4427 = vunpack.c.h.b16 %v4367
        %v4428 = vunpack.c.l.b16 %v4368
        %v4429 = vunpack.c.h.b16 %v4368
        %v4430 = vunpack.c.l.b16 %v4369
        %v4431 = vunpack.c.h.b16 %v4369
        %v4432 = vunpack.c.l.b16 %v4370
        %v4433 = vunpack.c.h.b16 %v4370
        %v4434 = vunpack.c.l.b16 %v4371
        %v4435 = vunpack.c.h.b16 %v4371
        %v4436 = vunpack.c.l.b16 %v4372
        %v4437 = vunpack.c.h.b16 %v4372
        %v4438 = vunpack.c.l.b16 %v4373
        %v4439 = vunpack.c.h.b16 %v4373
        %v4440 = vunpack.c.l.b16 %v4374
        %v4441 = vunpack.c.h.b16 %v4374
        %v4442 = vunpack.c.l.b16 %v4375
        %v4443 = vunpack.c.h.b16 %v4375
        %v4444 = vunpack.c.l.b16 %v4376
        %v4445 = vunpack.c.h.b16 %v4376
        %v4446 = vunpack.c.l.b16 %v4377
        %v4447 = vunpack.c.h.b16 %v4377
        %v4448 = vunpack.c.l.b16 %v4378
        %v4449 = vunpack.c.h.b16 %v4378
        %v4450 = vunpack.c.l.b16 %v4379
        %v4451 = vunpack.c.h.b16 %v4379
        %v4452 = vunpack.c.l.b16 %v4380
        %v4453 = vunpack.c.h.b16 %v4380
        %v4454 = vunpack.c.l.b16 %v4381
        %v4455 = vunpack.c.h.b16 %v4381
        %v4456 = vunpack.c.l.b16 %v4382
        %v4457 = vunpack.c.h.b16 %v4382
        %v4458 = vunpack.c.l.b16 %v4383
        %v4459 = vunpack.c.h.b16 %v4383
        %v4460 = vunpack.c.l.b16 %v4384
        %v4461 = vunpack.c.h.b16 %v4384
        %v4462 = vunpack.c.l.b16 %v4385
        %v4463 = vunpack.c.h.b16 %v4385
        %v4464 = vpack.c.b16 %v4416, %v4414
        %v4465 = vpack.c.b16 %v4417, %v4415
        %v4466 = vpack.c.b16 %v4420, %v4418
        %v4467 = vpack.c.b16 %v4421, %v4419
        %v4468 = vpack.c.b16 %v4424, %v4422
        %v4469 = vpack.c.b16 %v4425, %v4423
        %v4470 = vpack.c.b16 %v4428, %v4426
        %v4471 = vpack.c.b16 %v4429, %v4427
        %v4472 = vpack.c.b16 %v4432, %v4430
        %v4473 = vpack.c.b16 %v4433, %v4431
        %v4474 = vpack.c.b16 %v4436, %v4434
        %v4475 = vpack.c.b16 %v4437, %v4435
        %v4476 = vpack.c.b16 %v4440, %v4438
        %v4477 = vpack.c.b16 %v4441, %v4439
        %v4478 = vpack.c.b16 %v4444, %v4442
        %v4479 = vpack.c.b16 %v4445, %v4443
        %v4480 = vpack.c.b16 %v4448, %v4446
        %v4481 = vpack.c.b16 %v4449, %v4447
        %v4482 = vpack.c.b16 %v4452, %v4450
        %v4483 = vpack.c.b16 %v4453, %v4451
        %v4484 = vpack.c.b16 %v4456, %v4454
        %v4485 = vpack.c.b16 %v4457, %v4455
        %v4486 = vpack.c.b16 %v4460, %v4458
        %v4487 = vpack.c.b16 %v4461, %v4459
        %v4488 = vpack.c.b16 %v4462, %v4462
        %v4489 = vpack.c.b16 %v4463, %v4463
        %v4515 = vsel %vm3927, %v4387, 0
        %v4518 = vand.u32 %v4488, %v2321
        %v4521 = vand.u32 %v4489, %v2321
        %4523 = vmatprep.subr.bf16.mxu0 %v4479
        %4524 = vmatpush1.bf16.msra.mxu0 %v4478
        %4525 = vmatprep.subr.bf16.mxu0 %v4477
        %4526 = vmatpush1.bf16.msra.mxu0 %v4476
        %4527 = vmatprep.subr.bf16.mxu0 %v4475
        %4528 = vmatpush1.bf16.msra.mxu0 %v4474
        %4529 = vmatprep.subr.bf16.mxu0 %v4473
        %4530 = vmatpush1.bf16.msra.mxu0 %v4472
        %4531 = vmatprep.subr.bf16.mxu0 %v4471
        %4532 = vmatpush1.bf16.msra.mxu0 %v4470
        %4533 = vmatprep.subr.bf16.mxu0 %v4469
        %4534 = vmatpush1.bf16.msra.mxu0 %v4468
        %4535 = vmatprep.subr.bf16.mxu0 %v4467
        %4536 = vmatpush1.bf16.msra.mxu0 %v4466
        %4537 = vmatprep.subr.bf16.mxu0 %v4465
        %4538 = vmatpush1.bf16.msra.mxu0 %v4464
        %4539 = vmatprep.subr.bf16.mxu0 0
        %4540 = vmatpush2.bf16.msra.mxu0 0
        %4541 = vmatprep.subr.bf16.mxu0 0
        %4542 = vmatpush2.bf16.msra.mxu0 0
        %4543 = vmatprep.subr.bf16.mxu0 0
        %4544 = vmatpush2.bf16.msra.mxu0 0
        %4545 = vmatprep.subr.bf16.mxu0 %v4521
        %4546 = vmatpush2.bf16.msra.mxu0 %v4518
        %4547 = vmatprep.subr.bf16.mxu0 %v4487
        %4548 = vmatpush2.bf16.msra.mxu0 %v4486
        %4549 = vmatprep.subr.bf16.mxu0 %v4485
        %4550 = vmatpush2.bf16.msra.mxu0 %v4484
        %4551 = vmatprep.subr.bf16.mxu0 %v4483
        %4552 = vmatpush2.bf16.msra.mxu0 %v4482
        %4553 = vmatprep.subr.bf16.mxu0 %v4481
        %4554 = vmatpush2.bf16.msra.mxu0 %v4480
        %4555 = vmatprep.mubr.bf16.mxu0 %v4515
        %4556 = vmatmul.mubr.bf16.gmra.mxu0 %v4386
        %v4557 = vpop.f32.mrf.mxu0
        %v4558 = vadd.f32 0.0, %v4557
        %v4559 = vpop.f32.mrf.mxu0
        %v4560 = vadd.f32 0.0, %v4559
        %v4561 = vpop.f32.mrf.mxu0
        %v4562 = vpop.f32.mrf.mxu0
        %4563 = vdwg.mxu0
        %v4564 = vadd.f32 %v4358, %v4558
        %v4565 = vadd.f32 %v4359, %v4560
        %s4566 = scalar_lea.vmem %s5, 800
        %v4567 = vld [vmem:[%s4566] sm:$0xff]
        %v4568 = vld [vmem:[%s4566 + $0x8] sm:$0xff]
        %v4569 = vld [vmem:[%s4566 + $0x10] sm:$0xff]
        %v4570 = vld [vmem:[%s4566 + $0x18] sm:$0xff]
        %v4571 = vld [vmem:[%s4566 + $0x20] sm:$0xff]
        %v4572 = vld [vmem:[%s4566 + $0x28] sm:$0xff]
        %v4573 = vld [vmem:[%s4566 + $0x30] sm:$0xff]
        %v4574 = vld [vmem:[%s4566 + $0x38] sm:$0xff]
        %v4575 = vld [vmem:[%s4566 + $0x40] sm:$0xff]
        %v4576 = vld [vmem:[%s4566 + $0x48] sm:$0xff]
        %v4577 = vld [vmem:[%s4566 + $0x50] sm:$0xff]
        %v4578 = vld [vmem:[%s4566 + $0x58] sm:$0xff]
        %v4579 = vld [vmem:[%s4566 + $0x60] sm:$0xff]
        %v4580 = vld [vmem:[%s4566 + $0x68] sm:$0xff]
        %v4581 = vld [vmem:[%s4566 + $0x70] sm:$0xff]
        %v4582 = vld [vmem:[%s4566 + $0x78] sm:$0xff]
        %v4583 = vld [vmem:[%s4566 + $0x80] sm:$0xff]
        %v4584 = vld [vmem:[%s4566 + $0x88] sm:$0xff]
        %v4585 = vld [vmem:[%s4566 + $0x90] sm:$0xff]
        %v4586 = vld [vmem:[%s4566 + $0x98] sm:$0xff]
        %v4587 = vld [vmem:[%s4566 + $0xa0] sm:$0xff]
        %v4588 = vld [vmem:[%s4566 + $0xa8] sm:$0xff]
        %v4589 = vld [vmem:[%s4566 + $0xb0] sm:$0xff]
        %v4590 = vld [vmem:[%s4566 + $0xb8] sm:$0xff]
        %v4591 = vld [vmem:[%s4566 + $0xc0] sm:$0xff]
        %v4592 = vrot.slane %v3742, 2
        %v4593 = vrot.slane %v3743, 2
        %v4620 = vunpack.c.l.b16 %v4567
        %v4621 = vunpack.c.h.b16 %v4567
        %v4622 = vunpack.c.l.b16 %v4568
        %v4623 = vunpack.c.h.b16 %v4568
        %v4624 = vunpack.c.l.b16 %v4569
        %v4625 = vunpack.c.h.b16 %v4569
        %v4626 = vunpack.c.l.b16 %v4570
        %v4627 = vunpack.c.h.b16 %v4570
        %v4628 = vunpack.c.l.b16 %v4571
        %v4629 = vunpack.c.h.b16 %v4571
        %v4630 = vunpack.c.l.b16 %v4572
        %v4631 = vunpack.c.h.b16 %v4572
        %v4632 = vunpack.c.l.b16 %v4573
        %v4633 = vunpack.c.h.b16 %v4573
        %v4634 = vunpack.c.l.b16 %v4574
        %v4635 = vunpack.c.h.b16 %v4574
        %v4636 = vunpack.c.l.b16 %v4575
        %v4637 = vunpack.c.h.b16 %v4575
        %v4638 = vunpack.c.l.b16 %v4576
        %v4639 = vunpack.c.h.b16 %v4576
        %v4640 = vunpack.c.l.b16 %v4577
        %v4641 = vunpack.c.h.b16 %v4577
        %v4642 = vunpack.c.l.b16 %v4578
        %v4643 = vunpack.c.h.b16 %v4578
        %v4644 = vunpack.c.l.b16 %v4579
        %v4645 = vunpack.c.h.b16 %v4579
        %v4646 = vunpack.c.l.b16 %v4580
        %v4647 = vunpack.c.h.b16 %v4580
        %v4648 = vunpack.c.l.b16 %v4581
        %v4649 = vunpack.c.h.b16 %v4581
        %v4650 = vunpack.c.l.b16 %v4582
        %v4651 = vunpack.c.h.b16 %v4582
        %v4652 = vunpack.c.l.b16 %v4583
        %v4653 = vunpack.c.h.b16 %v4583
        %v4654 = vunpack.c.l.b16 %v4584
        %v4655 = vunpack.c.h.b16 %v4584
        %v4656 = vunpack.c.l.b16 %v4585
        %v4657 = vunpack.c.h.b16 %v4585
        %v4658 = vunpack.c.l.b16 %v4586
        %v4659 = vunpack.c.h.b16 %v4586
        %v4660 = vunpack.c.l.b16 %v4587
        %v4661 = vunpack.c.h.b16 %v4587
        %v4662 = vunpack.c.l.b16 %v4588
        %v4663 = vunpack.c.h.b16 %v4588
        %v4664 = vunpack.c.l.b16 %v4589
        %v4665 = vunpack.c.h.b16 %v4589
        %v4666 = vunpack.c.l.b16 %v4590
        %v4667 = vunpack.c.h.b16 %v4590
        %v4668 = vunpack.c.l.b16 %v4591
        %v4669 = vunpack.c.h.b16 %v4591
        %v4670 = vpack.c.b16 %v4622, %v4620
        %v4671 = vpack.c.b16 %v4623, %v4621
        %v4672 = vpack.c.b16 %v4626, %v4624
        %v4673 = vpack.c.b16 %v4627, %v4625
        %v4674 = vpack.c.b16 %v4630, %v4628
        %v4675 = vpack.c.b16 %v4631, %v4629
        %v4676 = vpack.c.b16 %v4634, %v4632
        %v4677 = vpack.c.b16 %v4635, %v4633
        %v4678 = vpack.c.b16 %v4638, %v4636
        %v4679 = vpack.c.b16 %v4639, %v4637
        %v4680 = vpack.c.b16 %v4642, %v4640
        %v4681 = vpack.c.b16 %v4643, %v4641
        %v4682 = vpack.c.b16 %v4646, %v4644
        %v4683 = vpack.c.b16 %v4647, %v4645
        %v4684 = vpack.c.b16 %v4650, %v4648
        %v4685 = vpack.c.b16 %v4651, %v4649
        %v4686 = vpack.c.b16 %v4654, %v4652
        %v4687 = vpack.c.b16 %v4655, %v4653
        %v4688 = vpack.c.b16 %v4658, %v4656
        %v4689 = vpack.c.b16 %v4659, %v4657
        %v4690 = vpack.c.b16 %v4662, %v4660
        %v4691 = vpack.c.b16 %v4663, %v4661
        %v4692 = vpack.c.b16 %v4666, %v4664
        %v4693 = vpack.c.b16 %v4667, %v4665
        %v4694 = vpack.c.b16 %v4668, %v4668
        %v4695 = vpack.c.b16 %v4669, %v4669
        %v4721 = vsel %vm3927, %v4593, 0
        %v4724 = vand.u32 %v4694, %v2321
        %v4727 = vand.u32 %v4695, %v2321
        %4729 = vmatprep.subr.bf16.mxu0 %v4685
        %4730 = vmatpush1.bf16.msra.mxu0 %v4684
        %4731 = vmatprep.subr.bf16.mxu0 %v4683
        %4732 = vmatpush1.bf16.msra.mxu0 %v4682
        %4733 = vmatprep.subr.bf16.mxu0 %v4681
        %4734 = vmatpush1.bf16.msra.mxu0 %v4680
        %4735 = vmatprep.subr.bf16.mxu0 %v4679
        %4736 = vmatpush1.bf16.msra.mxu0 %v4678
        %4737 = vmatprep.subr.bf16.mxu0 %v4677
        %4738 = vmatpush1.bf16.msra.mxu0 %v4676
        %4739 = vmatprep.subr.bf16.mxu0 %v4675
        %4740 = vmatpush1.bf16.msra.mxu0 %v4674
        %4741 = vmatprep.subr.bf16.mxu0 %v4673
        %4742 = vmatpush1.bf16.msra.mxu0 %v4672
        %4743 = vmatprep.subr.bf16.mxu0 %v4671
        %4744 = vmatpush1.bf16.msra.mxu0 %v4670
        %4745 = vmatprep.subr.bf16.mxu0 0
        %4746 = vmatpush2.bf16.msra.mxu0 0
        %4747 = vmatprep.subr.bf16.mxu0 0
        %4748 = vmatpush2.bf16.msra.mxu0 0
        %4749 = vmatprep.subr.bf16.mxu0 0
        %4750 = vmatpush2.bf16.msra.mxu0 0
        %4751 = vmatprep.subr.bf16.mxu0 %v4727
        %4752 = vmatpush2.bf16.msra.mxu0 %v4724
        %4753 = vmatprep.subr.bf16.mxu0 %v4693
        %4754 = vmatpush2.bf16.msra.mxu0 %v4692
        %4755 = vmatprep.subr.bf16.mxu0 %v4691
        %4756 = vmatpush2.bf16.msra.mxu0 %v4690
        %4757 = vmatprep.subr.bf16.mxu0 %v4689
        %4758 = vmatpush2.bf16.msra.mxu0 %v4688
        %4759 = vmatprep.subr.bf16.mxu0 %v4687
        %4760 = vmatpush2.bf16.msra.mxu0 %v4686
        %4761 = vmatprep.mubr.bf16.mxu0 %v4721
        %4762 = vmatmul.mubr.bf16.gmra.mxu0 %v4592
        %v4763 = vpop.f32.mrf.mxu0
        %v4764 = vadd.f32 0.0, %v4763
        %v4765 = vpop.f32.mrf.mxu0
        %v4766 = vadd.f32 0.0, %v4765
        %v4767 = vpop.f32.mrf.mxu0
        %v4768 = vpop.f32.mrf.mxu0
        %4769 = vdwg.mxu0
        %v4770 = vadd.f32 %v4564, %v4764
        %v4771 = vadd.f32 %v4565, %v4766
        %v4772 = vld [vmem:[%s6] sm:$0x3]
        %v4774 = vlaneseq
        %v4775 = vshrl.u32 %v4774, 7
        %v4776 = vsub.s32 0, %v4775
        %v4777 = vrot.slane %v4772, %v4776
        %v4778 = vlaneseq
        %v4779 = vshrl.u32 %v4778, 7
        %v4780 = vsub.s32 1, %v4779
        %v4781 = vrot.slane %v4772, %v4780
        %v4784 = vadd.f32 %v4770, %v4777
        %v4785 = vadd.f32 %v4771, %v4781
        %v4786 = vmax.f32 %v4784, 0.0
        %v4787 = vmax.f32 %v4785, 0.0
        %v4788 = vpack.c.bf16 %v4786, %v4786
        %v4789 = vpack.c.bf16 %v4787, %v4787
        %v4790 = vld [vmem:[%s7] sm:$0xf]
        %v4791 = vld [vmem:[%s7 + $0x4] sm:$0xf]
        %v4792 = vld [vmem:[%s7 + $0x8] sm:$0xf]
        %v4793 = vld [vmem:[%s7 + $0xc] sm:$0xf]
        %v4794 = vld [vmem:[%s7 + $0x10] sm:$0xf]
        %v4795 = vld [vmem:[%s7 + $0x14] sm:$0xf]
        %v4796 = vld [vmem:[%s7 + $0x18] sm:$0xf]
        %v4797 = vld [vmem:[%s7 + $0x1c] sm:$0xf]
        %v4798 = vld [vmem:[%s7 + $0x20] sm:$0xf]
        %v4799 = vld [vmem:[%s7 + $0x24] sm:$0xf]
        %v4800 = vld [vmem:[%s7 + $0x28] sm:$0xf]
        %v4801 = vld [vmem:[%s7 + $0x2c] sm:$0xf]
        %v4802 = vld [vmem:[%s7 + $0x30] sm:$0xf]
        %v4803 = vld [vmem:[%s7 + $0x34] sm:$0xf]
        %v4804 = vld [vmem:[%s7 + $0x38] sm:$0xf]
        %v4805 = vld [vmem:[%s7 + $0x3c] sm:$0xf]
        %v4806 = vld [vmem:[%s7 + $0x40] sm:$0xf]
        %v4807 = vld [vmem:[%s7 + $0x44] sm:$0xf]
        %v4808 = vld [vmem:[%s7 + $0x48] sm:$0xf]
        %v4809 = vld [vmem:[%s7 + $0x4c] sm:$0xf]
        %v4810 = vld [vmem:[%s7 + $0x50] sm:$0xf]
        %v4811 = vld [vmem:[%s7 + $0x54] sm:$0xf]
        %v4812 = vld [vmem:[%s7 + $0x58] sm:$0xf]
        %v4813 = vld [vmem:[%s7 + $0x5c] sm:$0xf]
        %v4814 = vld [vmem:[%s7 + $0x60] sm:$0xf]
        %v4815 = vld [vmem:[%s7 + $0x64] sm:$0xf]
        %v4816 = vld [vmem:[%s7 + $0x68] sm:$0xf]
        %v4817 = vld [vmem:[%s7 + $0x6c] sm:$0xf]
        %v4818 = vld [vmem:[%s7 + $0x70] sm:$0xf]
        %v4819 = vld [vmem:[%s7 + $0x74] sm:$0xf]
        %v4820 = vld [vmem:[%s7 + $0x78] sm:$0xf]
        %v4821 = vld [vmem:[%s7 + $0x7c] sm:$0xf]
        %v4822 = vld [vmem:[%s8] sm:$0x1]
        %v4855 = vunpack.c.l.b16 %v4790
        %v4856 = vunpack.c.l.b16 %v4791
        %v4857 = vunpack.c.l.b16 %v4792
        %v4858 = vunpack.c.l.b16 %v4793
        %v4859 = vunpack.c.l.b16 %v4794
        %v4860 = vunpack.c.l.b16 %v4795
        %v4861 = vunpack.c.l.b16 %v4796
        %v4862 = vunpack.c.l.b16 %v4797
        %v4863 = vunpack.c.l.b16 %v4798
        %v4864 = vunpack.c.l.b16 %v4799
        %v4865 = vunpack.c.l.b16 %v4800
        %v4866 = vunpack.c.l.b16 %v4801
        %v4867 = vunpack.c.l.b16 %v4802
        %v4868 = vunpack.c.l.b16 %v4803
        %v4869 = vunpack.c.l.b16 %v4804
        %v4870 = vunpack.c.l.b16 %v4805
        %v4871 = vunpack.c.l.b16 %v4806
        %v4872 = vunpack.c.l.b16 %v4807
        %v4873 = vunpack.c.l.b16 %v4808
        %v4874 = vunpack.c.l.b16 %v4809
        %v4875 = vunpack.c.l.b16 %v4810
        %v4876 = vunpack.c.l.b16 %v4811
        %v4877 = vunpack.c.l.b16 %v4812
        %v4878 = vunpack.c.l.b16 %v4813
        %v4879 = vunpack.c.l.b16 %v4814
        %v4880 = vunpack.c.l.b16 %v4815
        %v4881 = vunpack.c.l.b16 %v4816
        %v4882 = vunpack.c.l.b16 %v4817
        %v4883 = vunpack.c.l.b16 %v4818
        %v4884 = vunpack.c.l.b16 %v4819
        %v4885 = vunpack.c.l.b16 %v4820
        %v4886 = vunpack.c.l.b16 %v4821
        %v4887 = vpack.c.b16 %v4856, %v4855
        %v4888 = vpack.c.b16 %v4858, %v4857
        %v4889 = vpack.c.b16 %v4860, %v4859
        %v4890 = vpack.c.b16 %v4862, %v4861
        %v4891 = vpack.c.b16 %v4864, %v4863
        %v4892 = vpack.c.b16 %v4866, %v4865
        %v4893 = vpack.c.b16 %v4868, %v4867
        %v4894 = vpack.c.b16 %v4870, %v4869
        %v4895 = vpack.c.b16 %v4872, %v4871
        %v4896 = vpack.c.b16 %v4874, %v4873
        %v4897 = vpack.c.b16 %v4876, %v4875
        %v4898 = vpack.c.b16 %v4878, %v4877
        %v4899 = vpack.c.b16 %v4880, %v4879
        %v4900 = vpack.c.b16 %v4882, %v4881
        %v4901 = vpack.c.b16 %v4884, %v4883
        %v4902 = vpack.c.b16 %v4886, %v4885
        %4919 = vmatprep.subr.bf16.mxu0 0
        %4920 = vmatpush1.bf16.msra.mxu0 %v4894
        %4921 = vmatprep.subr.bf16.mxu0 0
        %4922 = vmatpush1.bf16.msra.mxu0 %v4893
        %4923 = vmatprep.subr.bf16.mxu0 0
        %4924 = vmatpush1.bf16.msra.mxu0 %v4892
        %4925 = vmatprep.subr.bf16.mxu0 0
        %4926 = vmatpush1.bf16.msra.mxu0 %v4891
        %4927 = vmatprep.subr.bf16.mxu0 0
        %4928 = vmatpush1.bf16.msra.mxu0 %v4890
        %4929 = vmatprep.subr.bf16.mxu0 0
        %4930 = vmatpush1.bf16.msra.mxu0 %v4889
        %4931 = vmatprep.subr.bf16.mxu0 0
        %4932 = vmatpush1.bf16.msra.mxu0 %v4888
        %4933 = vmatprep.subr.bf16.mxu0 0
        %4934 = vmatpush1.bf16.msra.mxu0 %v4887
        %4935 = vmatprep.subr.bf16.mxu0 0
        %4936 = vmatpush2.bf16.msra.mxu0 %v4902
        %4937 = vmatprep.subr.bf16.mxu0 0
        %4938 = vmatpush2.bf16.msra.mxu0 %v4901
        %4939 = vmatprep.subr.bf16.mxu0 0
        %4940 = vmatpush2.bf16.msra.mxu0 %v4900
        %4941 = vmatprep.subr.bf16.mxu0 0
        %4942 = vmatpush2.bf16.msra.mxu0 %v4899
        %4943 = vmatprep.subr.bf16.mxu0 0
        %4944 = vmatpush2.bf16.msra.mxu0 %v4898
        %4945 = vmatprep.subr.bf16.mxu0 0
        %4946 = vmatpush2.bf16.msra.mxu0 %v4897
        %4947 = vmatprep.subr.bf16.mxu0 0
        %4948 = vmatpush2.bf16.msra.mxu0 %v4896
        %4949 = vmatprep.subr.bf16.mxu0 0
        %4950 = vmatpush2.bf16.msra.mxu0 %v4895
        %4951 = vmatprep.mubr.bf16.mxu0 %v4789
        %4952 = vmatmul.mubr.bf16.gmra.mxu0 %v4788
        %v4953 = vpop.f32.mrf.mxu0
        %v4954 = vadd.f32 %v4822, %v4953
        %v4955 = vpop.f32.mrf.mxu0
        %v4956 = vpop.f32.mrf.mxu0
        %v4957 = vpop.f32.mrf.mxu0
        %4958 = vdwg.mxu0
        %v4959 = vmax.f32 %v4954, 0.0
        %v4960 = vpack.c.bf16 %v4959, %v4959
        %v4961 = vld [vmem:[%s9] sm:$0xf]
        %v4962 = vld [vmem:[%s9 + $0x4] sm:$0xf]
        %v4963 = vld [vmem:[%s9 + $0x8] sm:$0xf]
        %v4964 = vld [vmem:[%s9 + $0xc] sm:$0xf]
        %v4965 = vld [vmem:[%s9 + $0x10] sm:$0xf]
        %v4966 = vld [vmem:[%s9 + $0x14] sm:$0xf]
        %v4967 = vld [vmem:[%s9 + $0x18] sm:$0xf]
        %v4968 = vld [vmem:[%s9 + $0x1c] sm:$0xf]
        %v4969 = vld [vmem:[%s9 + $0x20] sm:$0xf]
        %v4970 = vld [vmem:[%s9 + $0x24] sm:$0xf]
        %v4971 = vld [vmem:[%s9 + $0x28] sm:$0xf]
        %v4972 = vld [vmem:[%s9 + $0x2c] sm:$0xf]
        %v4973 = vld [vmem:[%s9 + $0x30] sm:$0xf]
        %v4974 = vld [vmem:[%s9 + $0x34] sm:$0xf]
        %v4975 = vld [vmem:[%s9 + $0x38] sm:$0xf]
        %v4976 = vld [vmem:[%s9 + $0x3c] sm:$0xf]
        %v4977 = vld [vmem:[%s10] sm:$0x1]
        %v4994 = vunpack.c.l.b16 %v4961
        %v4995 = vunpack.c.l.b16 %v4962
        %v4996 = vunpack.c.l.b16 %v4963
        %v4997 = vunpack.c.l.b16 %v4964
        %v4998 = vunpack.c.l.b16 %v4965
        %v4999 = vunpack.c.l.b16 %v4966
        %v5000 = vunpack.c.l.b16 %v4967
        %v5001 = vunpack.c.l.b16 %v4968
        %v5002 = vunpack.c.l.b16 %v4969
        %v5003 = vunpack.c.l.b16 %v4970
        %v5004 = vunpack.c.l.b16 %v4971
        %v5005 = vunpack.c.l.b16 %v4972
        %v5006 = vunpack.c.l.b16 %v4973
        %v5007 = vunpack.c.l.b16 %v4974
        %v5008 = vunpack.c.l.b16 %v4975
        %v5009 = vunpack.c.l.b16 %v4976
        %v5010 = vpack.c.b16 %v4995, %v4994
        %v5011 = vpack.c.b16 %v4997, %v4996
        %v5012 = vpack.c.b16 %v4999, %v4998
        %v5013 = vpack.c.b16 %v5001, %v5000
        %v5014 = vpack.c.b16 %v5003, %v5002
        %v5015 = vpack.c.b16 %v5005, %v5004
        %v5016 = vpack.c.b16 %v5007, %v5006
        %v5017 = vpack.c.b16 %v5009, %v5008
        %5026 = vmatprep.subr.bf16.mxu0 0
        %5027 = vmatpush1.bf16.msra.mxu0 %v5017
        %5028 = vmatprep.subr.bf16.mxu0 0
        %5029 = vmatpush1.bf16.msra.mxu0 %v5016
        %5030 = vmatprep.subr.bf16.mxu0 0
        %5031 = vmatpush1.bf16.msra.mxu0 %v5015
        %5032 = vmatprep.subr.bf16.mxu0 0
        %5033 = vmatpush1.bf16.msra.mxu0 %v5014
        %5034 = vmatprep.subr.bf16.mxu0 0
        %5035 = vmatpush1.bf16.msra.mxu0 %v5013
        %5036 = vmatprep.subr.bf16.mxu0 0
        %5037 = vmatpush1.bf16.msra.mxu0 %v5012
        %5038 = vmatprep.subr.bf16.mxu0 0
        %5039 = vmatpush1.bf16.msra.mxu0 %v5011
        %5040 = vmatprep.subr.bf16.mxu0 0
        %5041 = vmatpush1.bf16.msra.mxu0 %v5010
        %5042 = vmatprep.subr.bf16.mxu0 0
        %5043 = vmatpush2.bf16.msra.mxu0 0
        %5044 = vmatprep.subr.bf16.mxu0 0
        %5045 = vmatpush2.bf16.msra.mxu0 0
        %5046 = vmatprep.subr.bf16.mxu0 0
        %5047 = vmatpush2.bf16.msra.mxu0 0
        %5048 = vmatprep.subr.bf16.mxu0 0
        %5049 = vmatpush2.bf16.msra.mxu0 0
        %5050 = vmatprep.subr.bf16.mxu0 0
        %5051 = vmatpush2.bf16.msra.mxu0 0
        %5052 = vmatprep.subr.bf16.mxu0 0
        %5053 = vmatpush2.bf16.msra.mxu0 0
        %5054 = vmatprep.subr.bf16.mxu0 0
        %5055 = vmatpush2.bf16.msra.mxu0 0
        %5056 = vmatprep.subr.bf16.mxu0 0
        %5057 = vmatpush2.bf16.msra.mxu0 0
        %5058 = vmatprep.mubr.bf16.mxu0 0
        %5059 = vmatmul.mubr.bf16.gmra.mxu0 %v4960
        %v5060 = vpop.f32.mrf.mxu0
        %v5061 = vadd.f32 %v4977, %v5060
        %v5062 = vpop.f32.mrf.mxu0
        %v5063 = vpop.f32.mrf.mxu0
        %v5064 = vpop.f32.mrf.mxu0
        %5065 = vdwg.mxu0
        %vm5066 = vcmask 8192
        %v5067 = vsel %vm5066, %v5061, -inf
        %5068 = vmax.xlane.f32.xlu0 %v5067
        %v5069 = vpop.xlane.xlu0 %5068
        %v5070 = vsub.f32 %v5061, %v5069
        %v5071 = vmul.f32 %v5070, 1.442695
        %v5072 = vpow.pop %v5071
        %v5073 = vsel %vm5066, %v5072, 0.0
        %5074 = vadd.xlane.f32.xlu0 %v5073
        %v5075 = vpop.xlane.xlu0 %5074
        %v5076 = vrcp.pop %v5075
        %v5077 = vmul.f32 %v5072, %v5076
        %5078 = vst.msk [vmem:[%s378] sm:$0x1] %vm5066, %v5077
        %s5079 = sand.u32 %s269, 1
        %s5080 = scalar_lea.sflag [#allocation3], %s5079
        %s5081 = sand.u32 %s269, 1
        %s5082 = scalar_lea.vmem [#allocation2], %s5081
        // Predicated region
        $region65: #{policy_forward.1} parent=63 // pred_check
          %p5083 = pneg %p279
        $region66: #{policy_forward.1} parent=63 // pred_check_branch
          %5085 = sbr.rel (%p5083) target = $region68
        $region67: #{policy_forward.1} parent=63 // pred_region
          %s5087 = ssub.s32 16, 16
          %5088 = vsyncadd %s5080, %s5087
          %s5089 = smul.addr %s25, 16
          %s5090 = scalar_lea.hbm %s11, %s5089
          %s5092 = sshll.u32 %s5082, 4
          %s5093 = int_to_ptr.vmem [resolvable:$true] %s5092
          %5095 = dma.vmem_to_hbm [thread:$0]  %s5093, 16, %s5090, %s5080
        $region68: #{policy_forward.1} parent=63 // pred_fallthru
          _
      $region64: #{policy_forward.1} parent=5 // pred_fallthru
        _
      %p5096 = scmp.le.s32.totalorder 2, %s20
      // Predicated region
      $region69: #{policy_forward.1} parent=5 // pred_check
        %p5097 = pneg %p5096
      $region70: #{policy_forward.1} parent=5 // pred_check_branch
        %5099 = sbr.rel (%p5097) target = $region72
      $region71: #{policy_forward.1} parent=5 // pred_region
        %s5100 = ssub.s32 %s20, 2
        // Predicated region
        $region73: #{policy_forward.1} parent=71 // pred_check
          %p5101 = pneg %p285
        $region74: #{policy_forward.1} parent=71 // pred_check_branch
          %5103 = sbr.rel (%p5101) target = $region76
        $region75: #{policy_forward.1} parent=71 // pred_region
          %s5104 = sand.u32 %s270, 1
          %s5105 = scalar_lea.sflag [#allocation3], %s5104
          %s5106 = sand.u32 %s270, 1
          %s5107 = scalar_lea.vmem [#allocation2], %s5106
          %5108 = dma.done %s5105, 16
        $region76: #{policy_forward.1} parent=71 // pred_fallthru
          _
      $region72: #{policy_forward.1} parent=5 // pred_fallthru
        _
    $region6: #{policy_forward.1} parent=1 // loop_footer
      %s24 = sadd.s32 1, %s20
    $region7: #{policy_forward.1} parent=1 // loop_footer_branch
      %19 = sbr.rel target = $region3
    $region8: #{policy_forward.1} parent=1 // loop_exit
      _
    %5109 = vsyncpa [#allocation3], 1
    %s5110 = scalar_lea.sflag [#allocation3], 1
    %5111 = vsyncpa %s5110, 1

</llo_original>
